<compile_context>
chip_gen: v6e
topology: v6e:2x2x1
jax: 0.10.0
libtpu: 0.0.40
codegen_flags: <defaults>
</compile_context>

<pallas_src>
import functools

import jax
import jax.numpy as jnp
import numpy as np
from jax.experimental import pallas as pl
from jax.experimental.pallas import tpu as pltpu  # noqa: F401  (TPU backend; no pltpu-specific calls needed at this size)

# ----------------------------- configuration -----------------------------
VOCAB_Y   = 30
EMBED_DIM = 32
N_HEADS   = 4
POSFF_DIM = 64
N_LAYERS  = 1
BATCH     = 2
TY        = 8     # decoder (target) sequence length
TX        = 10    # encoder (context) sequence length


def _round_up(x, m):
    return ((x + m - 1) // m) * m


# ------------------------------ Pallas kernel -----------------------------
def decoder_stack_kernel(tok_ref, ctx_ref, emb_ref, w_ref, v_ref, o_ref, *,
                         batch, t_y, t_x, n_heads, posff_dim):
    f32 = jnp.float32
    n_layers = w_ref.shape[0]
    E = emb_ref.shape[1]
    F = posff_dim
    hd = E // n_heads
    BT = batch * t_y
    t_xp = ctx_ref.shape[0] // batch            # padded context length (multiple of 8)
    inv_scale = 1.0 / (float(E) ** 0.5)         # module scales by sqrt(embed_dim)
    sqrt_e = float(E) ** 0.5

    # ---- embedding lookup (one-hot matmul gather) + positional encoding ----
    tok = tok_ref[...]                                                     # (BT, 1) int32
    vocab_p = emb_ref.shape[0]
    onehot = (jax.lax.broadcasted_iota(jnp.int32, (BT, vocab_p), 1) == tok).astype(f32)
    x = jnp.dot(onehot, emb_ref[...], preferred_element_type=f32) * sqrt_e  # (BT, E)
    pos = jax.lax.broadcasted_iota(jnp.int32, (batch, t_y, E), 1).astype(f32)  # pos[b,t,e] = t
    x = (x.reshape(batch, t_y, E) + pos).reshape(BT, E)
    # dropout == identity (eval mode / deterministic)

    ctx2d = ctx_ref[...]                                                   # (B*Txp, E)

    # per-head lane masks: zero out other heads' lanes instead of lane-slicing (exact)
    lane = jax.lax.broadcasted_iota(jnp.int32, (1, 1, E), 2)
    head_masks = [((lane >= h * hd) & (lane < (h + 1) * hd)).astype(f32)
                  for h in range(n_heads)]
    # additive bias hiding the artificial context padding rows (exp -> exactly 0)
    if t_xp != t_x:
        kpos = jax.lax.broadcasted_iota(jnp.int32, (1, 1, t_xp), 2)
        ctx_pad_bias = jnp.where(kpos < t_x, 0.0, -1e30)
    else:
        ctx_pad_bias = None

    def softmax_last(e):
        m = jnp.max(e, axis=-1, keepdims=True)
        p = jnp.exp(e - m)
        return p * pl.reciprocal(jnp.sum(p, axis=-1, keepdims=True), approx=False)

    def layernorm(v2d, g, b, eps=1e-5):
        mu = jnp.mean(v2d, axis=-1, keepdims=True)
        var = jnp.mean((v2d - mu) ** 2, axis=-1, keepdims=True)
        return (v2d - mu) * jax.lax.rsqrt(var + eps) * g + b

    def mha(q3, k3, v3, wo, bo, key_bias=None):
        # q3: (B, Ty, E); k3/v3: (B, Tk, E). Heads via lane masks so every matmul is a
        # full-width batched einsum (no per-head lane slices, no explicit transpose).
        heads = jnp.zeros((batch, t_y, E), f32)
        for mh in head_masks:                                   # static unroll (n_heads)
            energy = jnp.einsum('bqe,bke->bqk', q3 * mh, k3,
                                preferred_element_type=f32) * inv_scale
            if key_bias is not None:
                energy = energy + key_bias
            attn = softmax_last(energy)
            heads = heads + jnp.einsum('bqk,bke->bqe', attn, v3 * mh,
                                       preferred_element_type=f32)
        # single output projection of the (implicitly concatenated) heads
        return jnp.dot(heads.reshape(BT, E), wo, preferred_element_type=f32) + bo

    for l in range(n_layers):                                   # static unroll over layers
        # -------- packed parameter views (static slices of the two slabs) --------
        w_qkv1 = w_ref[l, 0:E,             0:3 * E]
        w_o1   = w_ref[l, E:2 * E,         0:E]
        w_q2   = w_ref[l, 2 * E:3 * E,     0:E]
        w_kv2  = w_ref[l, 3 * E:4 * E,     0:2 * E]
        w_o2   = w_ref[l, 4 * E:5 * E,     0:E]
        w_f1   = w_ref[l, 5 * E:6 * E,     0:F]
        w_f2   = w_ref[l, 6 * E:6 * E + F, 0:E]

        b_qkv1 = v_ref[l, 0:1,   0:3 * E]
        b_o1   = v_ref[l, 1:2,   0:E]
        b_q2   = v_ref[l, 2:3,   0:E]
        b_kv2  = v_ref[l, 3:4,   0:2 * E]
        b_o2   = v_ref[l, 4:5,   0:E]
        b_f1   = v_ref[l, 5:6,   0:F]
        b_f2   = v_ref[l, 6:7,   0:E]
        g1, be1 = v_ref[l, 7:8,   0:E], v_ref[l, 8:9,   0:E]
        g2, be2 = v_ref[l, 9:10,  0:E], v_ref[l, 10:11, 0:E]
        g3, be3 = v_ref[l, 11:12, 0:E], v_ref[l, 12:13, 0:E]

        # -------- self attention (fused QKV projection) + residual + LN --------
        qkv = jnp.dot(x, w_qkv1, preferred_element_type=f32) + b_qkv1       # (BT, 3E)
        q3 = qkv[:, 0:E].reshape(batch, t_y, E)
        k3 = qkv[:, E:2 * E].reshape(batch, t_y, E)
        v3 = qkv[:, 2 * E:3 * E].reshape(batch, t_y, E)
        sa = mha(q3, k3, v3, w_o1, b_o1)
        x1 = layernorm(x + sa, g1, be1)

        # -------- cross attention over the encoder context + residual + LN --------
        qc = (jnp.dot(x1, w_q2, preferred_element_type=f32) + b_q2).reshape(batch, t_y, E)
        kvc = jnp.dot(ctx2d, w_kv2, preferred_element_type=f32) + b_kv2     # (B*Txp, 2E)
        kc = kvc[:, 0:E].reshape(batch, t_xp, E)
        vc = kvc[:, E:2 * E].reshape(batch, t_xp, E)
        ea = mha(qc, kc, vc, w_o2, b_o2, key_bias=ctx_pad_bias)
        x2 = layernorm(x1 + ea, g2, be2)

        # -------- position-wise FFN (ReLU) + LN (no residual, per original code) --------
        h1 = jnp.maximum(jnp.dot(x2, w_f1, preferred_element_type=f32) + b_f1, 0.0)
        ff = jnp.dot(h1, w_f2, preferred_element_type=f32) + b_f2
        x = layernorm(ff, g3, be3)

    o_ref[...] = x.reshape(batch, t_y, E)


# ------------------------------ host-side glue ------------------------------
def pack_decoder_params(params):
    """Pack embedding + all per-layer weights into a few dense slabs (few DMAs)."""
    emb = jnp.asarray(params["embed"], jnp.float32)
    vocab, E = emb.shape
    F = params["layers"][0]["wf1"].shape[1]

    vocab_p = _round_up(vocab, 8)
    emb_p = jnp.zeros((vocab_p, E), jnp.float32).at[:vocab, :].set(emb)

    wcols = _round_up(max(3 * E, 2 * E, F), 128)
    wrows = _round_up(6 * E + F, 8)
    vrows = _round_up(13, 8)

    wls, vls = [], []
    for p in params["layers"]:
        w = jnp.zeros((wrows, wcols), jnp.float32)
        w = w.at[0:E,             0:3 * E].set(jnp.concatenate([p["wq1"], p["wk1"], p["wv1"]], axis=1))
        w = w.at[E:2 * E,         0:E    ].set(p["wo1"])
        w = w.at[2 * E:3 * E,     0:E    ].set(p["wq2"])
        w = w.at[3 * E:4 * E,     0:2 * E].set(jnp.concatenate([p["wk2"], p["wv2"]], axis=1))
        w = w.at[4 * E:5 * E,     0:E    ].set(p["wo2"])
        w = w.at[5 * E:6 * E,     0:F    ].set(p["wf1"])
        w = w.at[6 * E:6 * E + F, 0:E    ].set(p["wf2"])

        v = jnp.zeros((vrows, wcols), jnp.float32)
        v = v.at[0:1,   0:3 * E].set(jnp.concatenate([p["bq1"], p["bk1"], p["bv1"]], axis=1))
        v = v.at[1:2,   0:E    ].set(p["bo1"])
        v = v.at[2:3,   0:E    ].set(p["bq2"])
        v = v.at[3:4,   0:2 * E].set(jnp.concatenate([p["bk2"], p["bv2"]], axis=1))
        v = v.at[4:5,   0:E    ].set(p["bo2"])
        v = v.at[5:6,   0:F    ].set(p["bf1"])
        v = v.at[6:7,   0:E    ].set(p["bf2"])
        v = v.at[7:8,   0:E    ].set(p["g1"])
        v = v.at[8:9,   0:E    ].set(p["be1"])
        v = v.at[9:10,  0:E    ].set(p["g2"])
        v = v.at[10:11, 0:E    ].set(p["be2"])
        v = v.at[11:12, 0:E    ].set(p["g3"])
        v = v.at[12:13, 0:E    ].set(p["be3"])
        wls.append(w)
        vls.append(v)

    return {"emb": emb_p, "wstack": jnp.stack(wls), "vstack": jnp.stack(vls),
            "embed_dim": E, "posff_dim": F}


def decoder_forward_pallas(y_tokens, context, packed, *, n_heads):
    B, Ty = y_tokens.shape
    _, Tx, E = context.shape
    assert E == packed["embed_dim"] and E % n_heads == 0
    F = packed["posff_dim"]

    # Pad the encoder context to a sublane-aligned length (masked out in-kernel).
    Txp = _round_up(Tx, 8)
    ctx_p = jnp.zeros((B, Txp, E), jnp.float32).at[:, :Tx, :].set(context.astype(jnp.float32))
    ctx2d = ctx_p.reshape(B * Txp, E)
    tok2d = y_tokens.reshape(B * Ty, 1).astype(jnp.int32)

    kernel = functools.partial(decoder_stack_kernel, batch=B, t_y=Ty, t_x=Tx,
                               n_heads=n_heads, posff_dim=F)
    # Single invocation, no grid: every operand is a whole-array VMEM block
    # (default BlockSpec), so there are only 5 input DMAs + 1 output DMA total.
    return pl.pallas_call(
        kernel,
        out_shape=jax.ShapeDtypeStruct((B, Ty, E), jnp.float32),
    )(tok2d, ctx2d, packed["emb"], packed["wstack"], packed["vstack"])


# ------------------------- pure-JAX reference (check) -----------------------
def decoder_forward_ref(y_tokens, context, params, *, n_heads):
    emb = params["embed"]
    E = emb.shape[1]
    x = emb[y_tokens] * jnp.sqrt(jnp.float32(E))
    Ty = y_tokens.shape[1]
    pos = jnp.arange(Ty, dtype=jnp.float32)[:, None] * jnp.ones((1, E), jnp.float32)
    x = x + pos[None, :, :]
    scale = float(E) ** 0.5
    hd = E // n_heads

    def mha(q_in, kv_in, wq, bq, wk, bk, wv, bv, wo, bo):
        Q = q_in @ wq + bq
        K = kv_in @ wk + bk
        V = kv_in @ wv + bv
        B = Q.shape[0]
        Qh = Q.reshape(B, -1, n_heads, hd).transpose(0, 2, 1, 3)
        Kh = K.reshape(B, -1, n_heads, hd).transpose(0, 2, 1, 3)
        Vh = V.reshape(B, -1, n_heads, hd).transpose(0, 2, 1, 3)
        energy = jnp.einsum("bhqd,bhkd->bhqk", Qh, Kh) / scale
        m = jnp.max(energy, axis=-1, keepdims=True)
        e = jnp.exp(energy - m)
        attn = e / jnp.sum(e, axis=-1, keepdims=True)
        w = jnp.einsum("bhqk,bhkd->bhqd", attn, Vh)
        w = w.transpose(0, 2, 1, 3).reshape(B, -1, E)
        return w @ wo + bo

    def ln(v, g, b, eps=1e-5):
        mu = jnp.mean(v, axis=-1, keepdims=True)
        var = jnp.mean((v - mu) ** 2, axis=-1, keepdims=True)
        return (v - mu) * jax.lax.rsqrt(var + eps) * g + b

    for p in params["layers"]:
        sa = mha(x, x, p["wq1"], p["bq1"], p["wk1"], p["bk1"],
                 p["wv1"], p["bv1"], p["wo1"], p["bo1"])
        x1 = ln(x + sa, p["g1"], p["be1"])
        ea = mha(x1, context, p["wq2"], p["bq2"], p["wk2"], p["bk2"],
                 p["wv2"], p["bv2"], p["wo2"], p["bo2"])
        x2 = ln(x1 + ea, p["g2"], p["be2"])
        h = jnp.maximum(x2 @ p["wf1"] + p["bf1"], 0.0)
        ff = h @ p["wf2"] + p["bf2"]
        x = ln(ff, p["g3"], p["be3"])
    return x


# ------------------------------ parameter init -----------------------------
def init_params(key, vocab, E, F, n_layers):
    keys = jax.random.split(key, 1 + n_layers)
    params = {"embed": jax.random.normal(keys[0], (vocab, E), jnp.float32) * 0.1,
              "layers": []}
    for li in range(n_layers):
        lk = jax.random.split(keys[1 + li], 20)

        def lin(k, din, dout):
            return jax.random.normal(k, (din, dout), jnp.float32) * (1.0 / np.sqrt(din))

        p = {}
        # self-attention
        p["wq1"], p["wk1"], p["wv1"], p["wo1"] = (lin(lk[i], E, E) for i in range(4))
        p["bq1"] = jax.random.normal(lk[4], (1, E), jnp.float32) * 0.01
        p["bk1"] = jax.random.normal(lk[5], (1, E), jnp.float32) * 0.01
        p["bv1"] = jax.random.normal(lk[6], (1, E), jnp.float32) * 0.01
        p["bo1"] = jax.random.normal(lk[7], (1, E), jnp.float32) * 0.01
        p["g1"], p["be1"] = jnp.ones((1, E), jnp.float32), jnp.zeros((1, E), jnp.float32)
        # cross-attention
        p["wq2"], p["wk2"], p["wv2"], p["wo2"] = (lin(lk[8 + i], E, E) for i in range(4))
        p["bq2"] = jax.random.normal(lk[12], (1, E), jnp.float32) * 0.01
        p["bk2"] = jax.random.normal(lk[13], (1, E), jnp.float32) * 0.01
        p["bv2"] = jax.random.normal(lk[14], (1, E), jnp.float32) * 0.01
        p["bo2"] = jax.random.normal(lk[15], (1, E), jnp.float32) * 0.01
        p["g2"], p["be2"] = jnp.ones((1, E), jnp.float32), jnp.zeros((1, E), jnp.float32)
        # feed-forward
        p["wf1"] = lin(lk[16], E, F)
        p["bf1"] = jax.random.normal(lk[17], (1, F), jnp.float32) * 0.01
        p["wf2"] = lin(lk[18], F, E)
        p["bf2"] = jax.random.normal(lk[19], (1, E), jnp.float32) * 0.01
        p["g3"], p["be3"] = jnp.ones((1, E), jnp.float32), jnp.zeros((1, E), jnp.float32)
        params["layers"].append(p)
    return params


# ---------------------------------- main -----------------------------------
if __name__ == "__main__":
    key = jax.random.PRNGKey(0)
    k_tok, k_ctx, k_par = jax.random.split(key, 3)

    y_tokens = jax.random.randint(k_tok, (BATCH, TY), 0, VOCAB_Y, dtype=jnp.int32)
    context = jax.random.normal(k_ctx, (BATCH, TX, EMBED_DIM), jnp.float32)
    params = init_params(k_par, VOCAB_Y, EMBED_DIM, POSFF_DIM, N_LAYERS)

    packed = pack_decoder_params(params)
    out = decoder_forward_pallas(y_tokens, context, packed, n_heads=N_HEADS)
    out = jax.block_until_ready(out)

    ref = jax.block_until_ready(
        decoder_forward_ref(y_tokens, context, params, n_heads=N_HEADS))

    np.testing.assert_allclose(np.asarray(out), np.asarray(ref), rtol=1e-4, atol=1e-4)
    assert out.shape == (BATCH, TY, EMBED_DIM)
    print("KERNEL_OK")
</pallas_src>

<mosaic_0001>
module attributes {stable_mosaic.version = 11 : i64} {
  func.func @decoder_stack_kernel(%arg0: memref<16x1xi32, #tpu.memory_space<vmem>>, %arg1: memref<32x32xf32, #tpu.memory_space<vmem>>, %arg2: memref<32x32xf32, #tpu.memory_space<vmem>>, %arg3: memref<1x256x128xf32, #tpu.memory_space<vmem>>, %arg4: memref<1x16x128xf32, #tpu.memory_space<vmem>>, %arg5: memref<2x8x32xf32, #tpu.memory_space<vmem>>) attributes {dimension_semantics = [], scalar_prefetch = 0 : i64, scratch_operands = 0 : i64, tpu.core_type = #tpu.core_type<tc>} {
    %c0 = arith.constant 0 : index
    %c0_0 = arith.constant 0 : index
    %0 = vector.load %arg0[%c0, %c0_0] : memref<16x1xi32, #tpu.memory_space<vmem>>, vector<16x1xi32>
    %1 = tpu.iota {dimensions = array<i32: 1>} : vector<16x32xi32>
    %2 = vector.broadcast %0 : vector<16x1xi32> to vector<16x32xi32>
    %3 = arith.cmpi eq, %1, %2 : vector<16x32xi32>
    %4 = arith.extui %3 : vector<16x32xi1> to vector<16x32xi32>
    %5 = arith.sitofp %4 : vector<16x32xi32> to vector<16x32xf32>
    %c0_1 = arith.constant 0 : index
    %c0_2 = arith.constant 0 : index
    %6 = vector.load %arg2[%c0_1, %c0_2] : memref<32x32xf32, #tpu.memory_space<vmem>>, vector<32x32xf32>
    %cst = arith.constant dense<0.000000e+00> : vector<16x32xf32>
    %7 = tpu.matmul %5, %6, %cst {dimension_numbers = #tpu.dot_dimension_numbers<[1], [0], [0], [1], [0, 0, 1, 1], [], []>} : vector<16x32xf32>, vector<32x32xf32>, vector<16x32xf32> -> vector<16x32xf32>
    %cst_3 = arith.constant 5.65685415 : f32
    %8 = vector.broadcast %cst_3 : f32 to vector<16x32xf32>
    %9 = arith.mulf %7, %8 : vector<16x32xf32>
    %10 = tpu.iota {dimensions = array<i32: 1>} : vector<2x8x32xi32>
    %11 = arith.sitofp %10 : vector<2x8x32xi32> to vector<2x8x32xf32>
    %12 = vector.shape_cast %9 : vector<16x32xf32> to vector<2x8x32xf32>
    %13 = arith.addf %12, %11 : vector<2x8x32xf32>
    %14 = vector.shape_cast %13 : vector<2x8x32xf32> to vector<16x32xf32>
    %c0_4 = arith.constant 0 : index
    %c0_5 = arith.constant 0 : index
    %15 = vector.load %arg1[%c0_4, %c0_5] : memref<32x32xf32, #tpu.memory_space<vmem>>, vector<32x32xf32>
    %16 = tpu.iota {dimensions = array<i32: 2>} : vector<1x1x32xi32>
    %c0_i32 = arith.constant 0 : i32
    %17 = vector.broadcast %c0_i32 : i32 to vector<1x1x32xi32>
    %18 = arith.cmpi sge, %16, %17 : vector<1x1x32xi32>
    %c8_i32 = arith.constant 8 : i32
    %19 = vector.broadcast %c8_i32 : i32 to vector<1x1x32xi32>
    %20 = arith.cmpi slt, %16, %19 : vector<1x1x32xi32>
    %21 = arith.andi %18, %20 : vector<1x1x32xi1>
    %22 = arith.extui %21 : vector<1x1x32xi1> to vector<1x1x32xi32>
    %23 = arith.sitofp %22 : vector<1x1x32xi32> to vector<1x1x32xf32>
    %c8_i32_6 = arith.constant 8 : i32
    %24 = vector.broadcast %c8_i32_6 : i32 to vector<1x1x32xi32>
    %25 = arith.cmpi sge, %16, %24 : vector<1x1x32xi32>
    %c16_i32 = arith.constant 16 : i32
    %26 = vector.broadcast %c16_i32 : i32 to vector<1x1x32xi32>
    %27 = arith.cmpi slt, %16, %26 : vector<1x1x32xi32>
    %28 = arith.andi %25, %27 : vector<1x1x32xi1>
    %29 = arith.extui %28 : vector<1x1x32xi1> to vector<1x1x32xi32>
    %30 = arith.sitofp %29 : vector<1x1x32xi32> to vector<1x1x32xf32>
    %c16_i32_7 = arith.constant 16 : i32
    %31 = vector.broadcast %c16_i32_7 : i32 to vector<1x1x32xi32>
    %32 = arith.cmpi sge, %16, %31 : vector<1x1x32xi32>
    %c24_i32 = arith.constant 24 : i32
    %33 = vector.broadcast %c24_i32 : i32 to vector<1x1x32xi32>
    %34 = arith.cmpi slt, %16, %33 : vector<1x1x32xi32>
    %35 = arith.andi %32, %34 : vector<1x1x32xi1>
    %36 = arith.extui %35 : vector<1x1x32xi1> to vector<1x1x32xi32>
    %37 = arith.sitofp %36 : vector<1x1x32xi32> to vector<1x1x32xf32>
    %c24_i32_8 = arith.constant 24 : i32
    %38 = vector.broadcast %c24_i32_8 : i32 to vector<1x1x32xi32>
    %39 = arith.cmpi sge, %16, %38 : vector<1x1x32xi32>
    %c32_i32 = arith.constant 32 : i32
    %40 = vector.broadcast %c32_i32 : i32 to vector<1x1x32xi32>
    %41 = arith.cmpi slt, %16, %40 : vector<1x1x32xi32>
    %42 = arith.andi %39, %41 : vector<1x1x32xi1>
    %43 = arith.extui %42 : vector<1x1x32xi1> to vector<1x1x32xi32>
    %44 = arith.sitofp %43 : vector<1x1x32xi32> to vector<1x1x32xf32>
    %45 = tpu.iota {dimensions = array<i32: 2>} : vector<1x1x16xi32>
    %c10_i32 = arith.constant 10 : i32
    %46 = vector.broadcast %c10_i32 : i32 to vector<1x1x16xi32>
    %47 = arith.cmpi slt, %45, %46 : vector<1x1x16xi32>
    %cst_9 = arith.constant 0.000000e+00 : f32
    %cst_10 = arith.constant -1.000000e+30 : f32
    %48 = vector.broadcast %cst_9 : f32 to vector<1x1x16xf32>
    %49 = vector.broadcast %cst_10 : f32 to vector<1x1x16xf32>
    %50 = arith.select %47, %48, %49 : vector<1x1x16xi1>, vector<1x1x16xf32>
    %c0_11 = arith.constant 0 : index
    %c0_12 = arith.constant 0 : index
    %c0_13 = arith.constant 0 : index
    %51 = vector.load %arg3[%c0_11, %c0_12, %c0_13] : memref<1x256x128xf32, #tpu.memory_space<vmem>>, vector<1x32x96xf32>
    %52 = vector.shape_cast %51 : vector<1x32x96xf32> to vector<32x96xf32>
    %c0_14 = arith.constant 0 : index
    %c32 = arith.constant 32 : index
    %c0_15 = arith.constant 0 : index
    %53 = vector.load %arg3[%c0_14, %c32, %c0_15] : memref<1x256x128xf32, #tpu.memory_space<vmem>>, vector<1x32x32xf32>
    %54 = vector.shape_cast %53 : vector<1x32x32xf32> to vector<32x32xf32>
    %c0_16 = arith.constant 0 : index
    %c64 = arith.constant 64 : index
    %c0_17 = arith.constant 0 : index
    %55 = vector.load %arg3[%c0_16, %c64, %c0_17] : memref<1x256x128xf32, #tpu.memory_space<vmem>>, vector<1x32x32xf32>
    %56 = vector.shape_cast %55 : vector<1x32x32xf32> to vector<32x32xf32>
    %c0_18 = arith.constant 0 : index
    %c96 = arith.constant 96 : index
    %c0_19 = arith.constant 0 : index
    %57 = vector.load %arg3[%c0_18, %c96, %c0_19] : memref<1x256x128xf32, #tpu.memory_space<vmem>>, vector<1x32x64xf32>
    %58 = vector.shape_cast %57 : vector<1x32x64xf32> to vector<32x64xf32>
    %c0_20 = arith.constant 0 : index
    %c128 = arith.constant 128 : index
    %c0_21 = arith.constant 0 : index
    %59 = vector.load %arg3[%c0_20, %c128, %c0_21] : memref<1x256x128xf32, #tpu.memory_space<vmem>>, vector<1x32x32xf32>
    %60 = vector.shape_cast %59 : vector<1x32x32xf32> to vector<32x32xf32>
    %c0_22 = arith.constant 0 : index
    %c160 = arith.constant 160 : index
    %c0_23 = arith.constant 0 : index
    %61 = vector.load %arg3[%c0_22, %c160, %c0_23] : memref<1x256x128xf32, #tpu.memory_space<vmem>>, vector<1x32x64xf32>
    %62 = vector.shape_cast %61 : vector<1x32x64xf32> to vector<32x64xf32>
    %c0_24 = arith.constant 0 : index
    %c192 = arith.constant 192 : index
    %c0_25 = arith.constant 0 : index
    %63 = vector.load %arg3[%c0_24, %c192, %c0_25] : memref<1x256x128xf32, #tpu.memory_space<vmem>>, vector<1x64x32xf32>
    %64 = vector.shape_cast %63 : vector<1x64x32xf32> to vector<64x32xf32>
    %c0_26 = arith.constant 0 : index
    %c0_27 = arith.constant 0 : index
    %c0_28 = arith.constant 0 : index
    %65 = vector.load %arg4[%c0_26, %c0_27, %c0_28] : memref<1x16x128xf32, #tpu.memory_space<vmem>>, vector<1x1x96xf32>
    %66 = vector.shape_cast %65 : vector<1x1x96xf32> to vector<1x96xf32>
    %c0_29 = arith.constant 0 : index
    %c1 = arith.constant 1 : index
    %c0_30 = arith.constant 0 : index
    %67 = vector.load %arg4[%c0_29, %c1, %c0_30] : memref<1x16x128xf32, #tpu.memory_space<vmem>>, vector<1x1x32xf32>
    %68 = vector.shape_cast %67 : vector<1x1x32xf32> to vector<1x32xf32>
    %c0_31 = arith.constant 0 : index
    %c2 = arith.constant 2 : index
    %c0_32 = arith.constant 0 : index
    %69 = vector.load %arg4[%c0_31, %c2, %c0_32] : memref<1x16x128xf32, #tpu.memory_space<vmem>>, vector<1x1x32xf32>
    %70 = vector.shape_cast %69 : vector<1x1x32xf32> to vector<1x32xf32>
    %c0_33 = arith.constant 0 : index
    %c3 = arith.constant 3 : index
    %c0_34 = arith.constant 0 : index
    %71 = vector.load %arg4[%c0_33, %c3, %c0_34] : memref<1x16x128xf32, #tpu.memory_space<vmem>>, vector<1x1x64xf32>
    %72 = vector.shape_cast %71 : vector<1x1x64xf32> to vector<1x64xf32>
    %c0_35 = arith.constant 0 : index
    %c4 = arith.constant 4 : index
    %c0_36 = arith.constant 0 : index
    %73 = vector.load %arg4[%c0_35, %c4, %c0_36] : memref<1x16x128xf32, #tpu.memory_space<vmem>>, vector<1x1x32xf32>
    %74 = vector.shape_cast %73 : vector<1x1x32xf32> to vector<1x32xf32>
    %c0_37 = arith.constant 0 : index
    %c5 = arith.constant 5 : index
    %c0_38 = arith.constant 0 : index
    %75 = vector.load %arg4[%c0_37, %c5, %c0_38] : memref<1x16x128xf32, #tpu.memory_space<vmem>>, vector<1x1x64xf32>
    %76 = vector.shape_cast %75 : vector<1x1x64xf32> to vector<1x64xf32>
    %c0_39 = arith.constant 0 : index
    %c6 = arith.constant 6 : index
    %c0_40 = arith.constant 0 : index
    %77 = vector.load %arg4[%c0_39, %c6, %c0_40] : memref<1x16x128xf32, #tpu.memory_space<vmem>>, vector<1x1x32xf32>
    %78 = vector.shape_cast %77 : vector<1x1x32xf32> to vector<1x32xf32>
    %c0_41 = arith.constant 0 : index
    %c7 = arith.constant 7 : index
    %c0_42 = arith.constant 0 : index
    %79 = vector.load %arg4[%c0_41, %c7, %c0_42] : memref<1x16x128xf32, #tpu.memory_space<vmem>>, vector<1x1x32xf32>
    %80 = vector.shape_cast %79 : vector<1x1x32xf32> to vector<1x32xf32>
    %c0_43 = arith.constant 0 : index
    %c8 = arith.constant 8 : index
    %c0_44 = arith.constant 0 : index
    %81 = vector.load %arg4[%c0_43, %c8, %c0_44] : memref<1x16x128xf32, #tpu.memory_space<vmem>>, vector<1x1x32xf32>
    %82 = vector.shape_cast %81 : vector<1x1x32xf32> to vector<1x32xf32>
    %c0_45 = arith.constant 0 : index
    %c9 = arith.constant 9 : index
    %c0_46 = arith.constant 0 : index
    %83 = vector.load %arg4[%c0_45, %c9, %c0_46] : memref<1x16x128xf32, #tpu.memory_space<vmem>>, vector<1x1x32xf32>
    %84 = vector.shape_cast %83 : vector<1x1x32xf32> to vector<1x32xf32>
    %c0_47 = arith.constant 0 : index
    %c10 = arith.constant 10 : index
    %c0_48 = arith.constant 0 : index
    %85 = vector.load %arg4[%c0_47, %c10, %c0_48] : memref<1x16x128xf32, #tpu.memory_space<vmem>>, vector<1x1x32xf32>
    %86 = vector.shape_cast %85 : vector<1x1x32xf32> to vector<1x32xf32>
    %c0_49 = arith.constant 0 : index
    %c11 = arith.constant 11 : index
    %c0_50 = arith.constant 0 : index
    %87 = vector.load %arg4[%c0_49, %c11, %c0_50] : memref<1x16x128xf32, #tpu.memory_space<vmem>>, vector<1x1x32xf32>
    %88 = vector.shape_cast %87 : vector<1x1x32xf32> to vector<1x32xf32>
    %c0_51 = arith.constant 0 : index
    %c12 = arith.constant 12 : index
    %c0_52 = arith.constant 0 : index
    %89 = vector.load %arg4[%c0_51, %c12, %c0_52] : memref<1x16x128xf32, #tpu.memory_space<vmem>>, vector<1x1x32xf32>
    %90 = vector.shape_cast %89 : vector<1x1x32xf32> to vector<1x32xf32>
    %cst_53 = arith.constant dense<0.000000e+00> : vector<16x96xf32>
    %91 = tpu.matmul %14, %52, %cst_53 {dimension_numbers = #tpu.dot_dimension_numbers<[1], [0], [0], [1], [0, 0, 1, 1], [], []>} : vector<16x32xf32>, vector<32x96xf32>, vector<16x96xf32> -> vector<16x96xf32>
    %92 = vector.broadcast %66 : vector<1x96xf32> to vector<16x96xf32>
    %93 = arith.addf %91, %92 : vector<16x96xf32>
    %94 = vector.extract_strided_slice %93 {offsets = [0, 0], sizes = [16, 32], strides = [1, 1]} : vector<16x96xf32> to vector<16x32xf32>
    %95 = vector.shape_cast %94 : vector<16x32xf32> to vector<2x8x32xf32>
    %96 = vector.extract_strided_slice %93 {offsets = [0, 32], sizes = [16, 32], strides = [1, 1]} : vector<16x96xf32> to vector<16x32xf32>
    %97 = vector.shape_cast %96 : vector<16x32xf32> to vector<2x8x32xf32>
    %98 = vector.extract_strided_slice %93 {offsets = [0, 64], sizes = [16, 32], strides = [1, 1]} : vector<16x96xf32> to vector<16x32xf32>
    %99 = vector.shape_cast %98 : vector<16x32xf32> to vector<2x8x32xf32>
    %cst_54 = arith.constant 0.000000e+00 : f32
    %100 = vector.broadcast %cst_54 : f32 to vector<2x8x32xf32>
    %101 = vector.broadcast %23 : vector<1x1x32xf32> to vector<2x8x32xf32>
    %102 = arith.mulf %95, %101 : vector<2x8x32xf32>
    "tpu.trace_start"() <{level = 10 : i32, message = "bqe,bke->bqk"}> : () -> ()
    %cst_55 = arith.constant dense<0.000000e+00> : vector<2x8x8xf32>
    %103 = tpu.matmul %102, %97, %cst_55 {dimension_numbers = #tpu.dot_dimension_numbers<[2], [2], [1], [1], [0, 0, 0, 1, 1, 1], [0], [0]>} : vector<2x8x32xf32>, vector<2x8x32xf32>, vector<2x8x8xf32> -> vector<2x8x8xf32>
    "tpu.trace_stop"() : () -> ()
    %cst_56 = arith.constant 0.176776692 : f32
    %104 = vector.broadcast %cst_56 : f32 to vector<2x8x8xf32>
    %105 = arith.mulf %103, %104 : vector<2x8x8xf32>
    %cst_57 = arith.constant dense<0xFF800000> : vector<2x8xf32>
    %106 = vector.multi_reduction <maximumf>, %105, %cst_57 [2] : vector<2x8x8xf32> to vector<2x8xf32>
    %107 = vector.shape_cast %106 : vector<2x8xf32> to vector<2x8x1xf32>
    %108 = vector.broadcast %107 : vector<2x8x1xf32> to vector<2x8x8xf32>
    %109 = arith.subf %105, %108 : vector<2x8x8xf32>
    %110 = math.exp %109 : vector<2x8x8xf32>
    %cst_58 = arith.constant dense<0.000000e+00> : vector<2x8xf32>
    %111 = vector.multi_reduction <add>, %110, %cst_58 [2] : vector<2x8x8xf32> to vector<2x8xf32>
    %112 = vector.shape_cast %111 : vector<2x8xf32> to vector<2x8x1xf32>
    %113 = tpu.reciprocal %112 : vector<2x8x1xf32> -> vector<2x8x1xf32>
    %114 = vector.broadcast %113 : vector<2x8x1xf32> to vector<2x8x8xf32>
    %115 = arith.mulf %110, %114 : vector<2x8x8xf32>
    %116 = vector.broadcast %23 : vector<1x1x32xf32> to vector<2x8x32xf32>
    %117 = arith.mulf %99, %116 : vector<2x8x32xf32>
    "tpu.trace_start"() <{level = 10 : i32, message = "bqk,bke->bqe"}> : () -> ()
    %cst_59 = arith.constant dense<0.000000e+00> : vector<2x8x32xf32>
    %118 = tpu.matmul %115, %117, %cst_59 {dimension_numbers = #tpu.dot_dimension_numbers<[2], [1], [1], [2], [0, 0, 0, 1, 1, 2], [0], [0]>} : vector<2x8x8xf32>, vector<2x8x32xf32>, vector<2x8x32xf32> -> vector<2x8x32xf32>
    "tpu.trace_stop"() : () -> ()
    %119 = arith.addf %100, %118 : vector<2x8x32xf32>
    %120 = vector.broadcast %30 : vector<1x1x32xf32> to vector<2x8x32xf32>
    %121 = arith.mulf %95, %120 : vector<2x8x32xf32>
    "tpu.trace_start"() <{level = 10 : i32, message = "bqe,bke->bqk"}> : () -> ()
    %cst_60 = arith.constant dense<0.000000e+00> : vector<2x8x8xf32>
    %122 = tpu.matmul %121, %97, %cst_60 {dimension_numbers = #tpu.dot_dimension_numbers<[2], [2], [1], [1], [0, 0, 0, 1, 1, 1], [0], [0]>} : vector<2x8x32xf32>, vector<2x8x32xf32>, vector<2x8x8xf32> -> vector<2x8x8xf32>
    "tpu.trace_stop"() : () -> ()
    %cst_61 = arith.constant 0.176776692 : f32
    %123 = vector.broadcast %cst_61 : f32 to vector<2x8x8xf32>
    %124 = arith.mulf %122, %123 : vector<2x8x8xf32>
    %cst_62 = arith.constant dense<0xFF800000> : vector<2x8xf32>
    %125 = vector.multi_reduction <maximumf>, %124, %cst_62 [2] : vector<2x8x8xf32> to vector<2x8xf32>
    %126 = vector.shape_cast %125 : vector<2x8xf32> to vector<2x8x1xf32>
    %127 = vector.broadcast %126 : vector<2x8x1xf32> to vector<2x8x8xf32>
    %128 = arith.subf %124, %127 : vector<2x8x8xf32>
    %129 = math.exp %128 : vector<2x8x8xf32>
    %cst_63 = arith.constant dense<0.000000e+00> : vector<2x8xf32>
    %130 = vector.multi_reduction <add>, %129, %cst_63 [2] : vector<2x8x8xf32> to vector<2x8xf32>
    %131 = vector.shape_cast %130 : vector<2x8xf32> to vector<2x8x1xf32>
    %132 = tpu.reciprocal %131 : vector<2x8x1xf32> -> vector<2x8x1xf32>
    %133 = vector.broadcast %132 : vector<2x8x1xf32> to vector<2x8x8xf32>
    %134 = arith.mulf %129, %133 : vector<2x8x8xf32>
    %135 = vector.broadcast %30 : vector<1x1x32xf32> to vector<2x8x32xf32>
    %136 = arith.mulf %99, %135 : vector<2x8x32xf32>
    "tpu.trace_start"() <{level = 10 : i32, message = "bqk,bke->bqe"}> : () -> ()
    %cst_64 = arith.constant dense<0.000000e+00> : vector<2x8x32xf32>
    %137 = tpu.matmul %134, %136, %cst_64 {dimension_numbers = #tpu.dot_dimension_numbers<[2], [1], [1], [2], [0, 0, 0, 1, 1, 2], [0], [0]>} : vector<2x8x8xf32>, vector<2x8x32xf32>, vector<2x8x32xf32> -> vector<2x8x32xf32>
    "tpu.trace_stop"() : () -> ()
    %138 = arith.addf %119, %137 : vector<2x8x32xf32>
    %139 = vector.broadcast %37 : vector<1x1x32xf32> to vector<2x8x32xf32>
    %140 = arith.mulf %95, %139 : vector<2x8x32xf32>
    "tpu.trace_start"() <{level = 10 : i32, message = "bqe,bke->bqk"}> : () -> ()
    %cst_65 = arith.constant dense<0.000000e+00> : vector<2x8x8xf32>
    %141 = tpu.matmul %140, %97, %cst_65 {dimension_numbers = #tpu.dot_dimension_numbers<[2], [2], [1], [1], [0, 0, 0, 1, 1, 1], [0], [0]>} : vector<2x8x32xf32>, vector<2x8x32xf32>, vector<2x8x8xf32> -> vector<2x8x8xf32>
    "tpu.trace_stop"() : () -> ()
    %cst_66 = arith.constant 0.176776692 : f32
    %142 = vector.broadcast %cst_66 : f32 to vector<2x8x8xf32>
    %143 = arith.mulf %141, %142 : vector<2x8x8xf32>
    %cst_67 = arith.constant dense<0xFF800000> : vector<2x8xf32>
    %144 = vector.multi_reduction <maximumf>, %143, %cst_67 [2] : vector<2x8x8xf32> to vector<2x8xf32>
    %145 = vector.shape_cast %144 : vector<2x8xf32> to vector<2x8x1xf32>
    %146 = vector.broadcast %145 : vector<2x8x1xf32> to vector<2x8x8xf32>
    %147 = arith.subf %143, %146 : vector<2x8x8xf32>
    %148 = math.exp %147 : vector<2x8x8xf32>
    %cst_68 = arith.constant dense<0.000000e+00> : vector<2x8xf32>
    %149 = vector.multi_reduction <add>, %148, %cst_68 [2] : vector<2x8x8xf32> to vector<2x8xf32>
    %150 = vector.shape_cast %149 : vector<2x8xf32> to vector<2x8x1xf32>
    %151 = tpu.reciprocal %150 : vector<2x8x1xf32> -> vector<2x8x1xf32>
    %152 = vector.broadcast %151 : vector<2x8x1xf32> to vector<2x8x8xf32>
    %153 = arith.mulf %148, %152 : vector<2x8x8xf32>
    %154 = vector.broadcast %37 : vector<1x1x32xf32> to vector<2x8x32xf32>
    %155 = arith.mulf %99, %154 : vector<2x8x32xf32>
    "tpu.trace_start"() <{level = 10 : i32, message = "bqk,bke->bqe"}> : () -> ()
    %cst_69 = arith.constant dense<0.000000e+00> : vector<2x8x32xf32>
    %156 = tpu.matmul %153, %155, %cst_69 {dimension_numbers = #tpu.dot_dimension_numbers<[2], [1], [1], [2], [0, 0, 0, 1, 1, 2], [0], [0]>} : vector<2x8x8xf32>, vector<2x8x32xf32>, vector<2x8x32xf32> -> vector<2x8x32xf32>
    "tpu.trace_stop"() : () -> ()
    %157 = arith.addf %138, %156 : vector<2x8x32xf32>
    %158 = vector.broadcast %44 : vector<1x1x32xf32> to vector<2x8x32xf32>
    %159 = arith.mulf %95, %158 : vector<2x8x32xf32>
    "tpu.trace_start"() <{level = 10 : i32, message = "bqe,bke->bqk"}> : () -> ()
    %cst_70 = arith.constant dense<0.000000e+00> : vector<2x8x8xf32>
    %160 = tpu.matmul %159, %97, %cst_70 {dimension_numbers = #tpu.dot_dimension_numbers<[2], [2], [1], [1], [0, 0, 0, 1, 1, 1], [0], [0]>} : vector<2x8x32xf32>, vector<2x8x32xf32>, vector<2x8x8xf32> -> vector<2x8x8xf32>
    "tpu.trace_stop"() : () -> ()
    %cst_71 = arith.constant 0.176776692 : f32
    %161 = vector.broadcast %cst_71 : f32 to vector<2x8x8xf32>
    %162 = arith.mulf %160, %161 : vector<2x8x8xf32>
    %cst_72 = arith.constant dense<0xFF800000> : vector<2x8xf32>
    %163 = vector.multi_reduction <maximumf>, %162, %cst_72 [2] : vector<2x8x8xf32> to vector<2x8xf32>
    %164 = vector.shape_cast %163 : vector<2x8xf32> to vector<2x8x1xf32>
    %165 = vector.broadcast %164 : vector<2x8x1xf32> to vector<2x8x8xf32>
    %166 = arith.subf %162, %165 : vector<2x8x8xf32>
    %167 = math.exp %166 : vector<2x8x8xf32>
    %cst_73 = arith.constant dense<0.000000e+00> : vector<2x8xf32>
    %168 = vector.multi_reduction <add>, %167, %cst_73 [2] : vector<2x8x8xf32> to vector<2x8xf32>
    %169 = vector.shape_cast %168 : vector<2x8xf32> to vector<2x8x1xf32>
    %170 = tpu.reciprocal %169 : vector<2x8x1xf32> -> vector<2x8x1xf32>
    %171 = vector.broadcast %170 : vector<2x8x1xf32> to vector<2x8x8xf32>
    %172 = arith.mulf %167, %171 : vector<2x8x8xf32>
    %173 = vector.broadcast %44 : vector<1x1x32xf32> to vector<2x8x32xf32>
    %174 = arith.mulf %99, %173 : vector<2x8x32xf32>
    "tpu.trace_start"() <{level = 10 : i32, message = "bqk,bke->bqe"}> : () -> ()
    %cst_74 = arith.constant dense<0.000000e+00> : vector<2x8x32xf32>
    %175 = tpu.matmul %172, %174, %cst_74 {dimension_numbers = #tpu.dot_dimension_numbers<[2], [1], [1], [2], [0, 0, 0, 1, 1, 2], [0], [0]>} : vector<2x8x8xf32>, vector<2x8x32xf32>, vector<2x8x32xf32> -> vector<2x8x32xf32>
    "tpu.trace_stop"() : () -> ()
    %176 = arith.addf %157, %175 : vector<2x8x32xf32>
    %177 = vector.shape_cast %176 : vector<2x8x32xf32> to vector<16x32xf32>
    %cst_75 = arith.constant dense<0.000000e+00> : vector<16x32xf32>
    %178 = tpu.matmul %177, %54, %cst_75 {dimension_numbers = #tpu.dot_dimension_numbers<[1], [0], [0], [1], [0, 0, 1, 1], [], []>} : vector<16x32xf32>, vector<32x32xf32>, vector<16x32xf32> -> vector<16x32xf32>
    %179 = vector.broadcast %68 : vector<1x32xf32> to vector<16x32xf32>
    %180 = arith.addf %178, %179 : vector<16x32xf32>
    %181 = arith.addf %14, %180 : vector<16x32xf32>
    %cst_76 = arith.constant dense<0.000000e+00> : vector<16xf32>
    %182 = vector.multi_reduction <add>, %181, %cst_76 [1] : vector<16x32xf32> to vector<16xf32>
    %183 = vector.shape_cast %182 : vector<16xf32> to vector<16x1xf32>
    %cst_77 = arith.constant 3.200000e+01 : f32
    %184 = vector.broadcast %cst_77 : f32 to vector<16x1xf32>
    %185 = arith.divf %183, %184 : vector<16x1xf32>
    %186 = vector.broadcast %185 : vector<16x1xf32> to vector<16x32xf32>
    %187 = arith.subf %181, %186 : vector<16x32xf32>
    %188 = arith.mulf %187, %187 : vector<16x32xf32>
    %cst_78 = arith.constant dense<0.000000e+00> : vector<16xf32>
    %189 = vector.multi_reduction <add>, %188, %cst_78 [1] : vector<16x32xf32> to vector<16xf32>
    %190 = vector.shape_cast %189 : vector<16xf32> to vector<16x1xf32>
    %cst_79 = arith.constant 3.200000e+01 : f32
    %191 = vector.broadcast %cst_79 : f32 to vector<16x1xf32>
    %192 = arith.divf %190, %191 : vector<16x1xf32>
    %193 = vector.broadcast %185 : vector<16x1xf32> to vector<16x32xf32>
    %194 = arith.subf %181, %193 : vector<16x32xf32>
    %cst_80 = arith.constant 9.99999974E-6 : f32
    %195 = vector.broadcast %cst_80 : f32 to vector<16x1xf32>
    %196 = arith.addf %192, %195 : vector<16x1xf32>
    %197 = math.rsqrt %196 : vector<16x1xf32>
    %198 = vector.broadcast %197 : vector<16x1xf32> to vector<16x32xf32>
    %199 = arith.mulf %194, %198 : vector<16x32xf32>
    %200 = vector.broadcast %80 : vector<1x32xf32> to vector<16x32xf32>
    %201 = arith.mulf %199, %200 : vector<16x32xf32>
    %202 = vector.broadcast %82 : vector<1x32xf32> to vector<16x32xf32>
    %203 = arith.addf %201, %202 : vector<16x32xf32>
    %cst_81 = arith.constant dense<0.000000e+00> : vector<16x32xf32>
    %204 = tpu.matmul %203, %56, %cst_81 {dimension_numbers = #tpu.dot_dimension_numbers<[1], [0], [0], [1], [0, 0, 1, 1], [], []>} : vector<16x32xf32>, vector<32x32xf32>, vector<16x32xf32> -> vector<16x32xf32>
    %205 = vector.broadcast %70 : vector<1x32xf32> to vector<16x32xf32>
    %206 = arith.addf %204, %205 : vector<16x32xf32>
    %207 = vector.shape_cast %206 : vector<16x32xf32> to vector<2x8x32xf32>
    %cst_82 = arith.constant dense<0.000000e+00> : vector<32x64xf32>
    %208 = tpu.matmul %15, %58, %cst_82 {dimension_numbers = #tpu.dot_dimension_numbers<[1], [0], [0], [1], [0, 0, 1, 1], [], []>} : vector<32x32xf32>, vector<32x64xf32>, vector<32x64xf32> -> vector<32x64xf32>
    %209 = vector.broadcast %72 : vector<1x64xf32> to vector<32x64xf32>
    %210 = arith.addf %208, %209 : vector<32x64xf32>
    %211 = vector.extract_strided_slice %210 {offsets = [0, 0], sizes = [32, 32], strides = [1, 1]} : vector<32x64xf32> to vector<32x32xf32>
    %212 = vector.shape_cast %211 : vector<32x32xf32> to vector<2x16x32xf32>
    %213 = vector.extract_strided_slice %210 {offsets = [0, 32], sizes = [32, 32], strides = [1, 1]} : vector<32x64xf32> to vector<32x32xf32>
    %214 = vector.shape_cast %213 : vector<32x32xf32> to vector<2x16x32xf32>
    %cst_83 = arith.constant 0.000000e+00 : f32
    %215 = vector.broadcast %cst_83 : f32 to vector<2x8x32xf32>
    %216 = vector.broadcast %23 : vector<1x1x32xf32> to vector<2x8x32xf32>
    %217 = arith.mulf %207, %216 : vector<2x8x32xf32>
    "tpu.trace_start"() <{level = 10 : i32, message = "bqe,bke->bqk"}> : () -> ()
    %cst_84 = arith.constant dense<0.000000e+00> : vector<2x8x16xf32>
    %218 = tpu.matmul %217, %212, %cst_84 {dimension_numbers = #tpu.dot_dimension_numbers<[2], [2], [1], [1], [0, 0, 0, 1, 1, 1], [0], [0]>} : vector<2x8x32xf32>, vector<2x16x32xf32>, vector<2x8x16xf32> -> vector<2x8x16xf32>
    "tpu.trace_stop"() : () -> ()
    %cst_85 = arith.constant 0.176776692 : f32
    %219 = vector.broadcast %cst_85 : f32 to vector<2x8x16xf32>
    %220 = arith.mulf %218, %219 : vector<2x8x16xf32>
    %221 = vector.broadcast %50 : vector<1x1x16xf32> to vector<2x8x16xf32>
    %222 = arith.addf %220, %221 : vector<2x8x16xf32>
    %cst_86 = arith.constant dense<0xFF800000> : vector<2x8xf32>
    %223 = vector.multi_reduction <maximumf>, %222, %cst_86 [2] : vector<2x8x16xf32> to vector<2x8xf32>
    %224 = vector.shape_cast %223 : vector<2x8xf32> to vector<2x8x1xf32>
    %225 = vector.broadcast %224 : vector<2x8x1xf32> to vector<2x8x16xf32>
    %226 = arith.subf %222, %225 : vector<2x8x16xf32>
    %227 = math.exp %226 : vector<2x8x16xf32>
    %cst_87 = arith.constant dense<0.000000e+00> : vector<2x8xf32>
    %228 = vector.multi_reduction <add>, %227, %cst_87 [2] : vector<2x8x16xf32> to vector<2x8xf32>
    %229 = vector.shape_cast %228 : vector<2x8xf32> to vector<2x8x1xf32>
    %230 = tpu.reciprocal %229 : vector<2x8x1xf32> -> vector<2x8x1xf32>
    %231 = vector.broadcast %230 : vector<2x8x1xf32> to vector<2x8x16xf32>
    %232 = arith.mulf %227, %231 : vector<2x8x16xf32>
    %233 = vector.broadcast %23 : vector<1x1x32xf32> to vector<2x16x32xf32>
    %234 = arith.mulf %214, %233 : vector<2x16x32xf32>
    "tpu.trace_start"() <{level = 10 : i32, message = "bqk,bke->bqe"}> : () -> ()
    %cst_88 = arith.constant dense<0.000000e+00> : vector<2x8x32xf32>
    %235 = tpu.matmul %232, %234, %cst_88 {dimension_numbers = #tpu.dot_dimension_numbers<[2], [1], [1], [2], [0, 0, 0, 1, 1, 2], [0], [0]>} : vector<2x8x16xf32>, vector<2x16x32xf32>, vector<2x8x32xf32> -> vector<2x8x32xf32>
    "tpu.trace_stop"() : () -> ()
    %236 = arith.addf %215, %235 : vector<2x8x32xf32>
    %237 = vector.broadcast %30 : vector<1x1x32xf32> to vector<2x8x32xf32>
    %238 = arith.mulf %207, %237 : vector<2x8x32xf32>
    "tpu.trace_start"() <{level = 10 : i32, message = "bqe,bke->bqk"}> : () -> ()
    %cst_89 = arith.constant dense<0.000000e+00> : vector<2x8x16xf32>
    %239 = tpu.matmul %238, %212, %cst_89 {dimension_numbers = #tpu.dot_dimension_numbers<[2], [2], [1], [1], [0, 0, 0, 1, 1, 1], [0], [0]>} : vector<2x8x32xf32>, vector<2x16x32xf32>, vector<2x8x16xf32> -> vector<2x8x16xf32>
    "tpu.trace_stop"() : () -> ()
    %cst_90 = arith.constant 0.176776692 : f32
    %240 = vector.broadcast %cst_90 : f32 to vector<2x8x16xf32>
    %241 = arith.mulf %239, %240 : vector<2x8x16xf32>
    %242 = vector.broadcast %50 : vector<1x1x16xf32> to vector<2x8x16xf32>
    %243 = arith.addf %241, %242 : vector<2x8x16xf32>
    %cst_91 = arith.constant dense<0xFF800000> : vector<2x8xf32>
    %244 = vector.multi_reduction <maximumf>, %243, %cst_91 [2] : vector<2x8x16xf32> to vector<2x8xf32>
    %245 = vector.shape_cast %244 : vector<2x8xf32> to vector<2x8x1xf32>
    %246 = vector.broadcast %245 : vector<2x8x1xf32> to vector<2x8x16xf32>
    %247 = arith.subf %243, %246 : vector<2x8x16xf32>
    %248 = math.exp %247 : vector<2x8x16xf32>
    %cst_92 = arith.constant dense<0.000000e+00> : vector<2x8xf32>
    %249 = vector.multi_reduction <add>, %248, %cst_92 [2] : vector<2x8x16xf32> to vector<2x8xf32>
    %250 = vector.shape_cast %249 : vector<2x8xf32> to vector<2x8x1xf32>
    %251 = tpu.reciprocal %250 : vector<2x8x1xf32> -> vector<2x8x1xf32>
    %252 = vector.broadcast %251 : vector<2x8x1xf32> to vector<2x8x16xf32>
    %253 = arith.mulf %248, %252 : vector<2x8x16xf32>
    %254 = vector.broadcast %30 : vector<1x1x32xf32> to vector<2x16x32xf32>
    %255 = arith.mulf %214, %254 : vector<2x16x32xf32>
    "tpu.trace_start"() <{level = 10 : i32, message = "bqk,bke->bqe"}> : () -> ()
    %cst_93 = arith.constant dense<0.000000e+00> : vector<2x8x32xf32>
    %256 = tpu.matmul %253, %255, %cst_93 {dimension_numbers = #tpu.dot_dimension_numbers<[2], [1], [1], [2], [0, 0, 0, 1, 1, 2], [0], [0]>} : vector<2x8x16xf32>, vector<2x16x32xf32>, vector<2x8x32xf32> -> vector<2x8x32xf32>
    "tpu.trace_stop"() : () -> ()
    %257 = arith.addf %236, %256 : vector<2x8x32xf32>
    %258 = vector.broadcast %37 : vector<1x1x32xf32> to vector<2x8x32xf32>
    %259 = arith.mulf %207, %258 : vector<2x8x32xf32>
    "tpu.trace_start"() <{level = 10 : i32, message = "bqe,bke->bqk"}> : () -> ()
    %cst_94 = arith.constant dense<0.000000e+00> : vector<2x8x16xf32>
    %260 = tpu.matmul %259, %212, %cst_94 {dimension_numbers = #tpu.dot_dimension_numbers<[2], [2], [1], [1], [0, 0, 0, 1, 1, 1], [0], [0]>} : vector<2x8x32xf32>, vector<2x16x32xf32>, vector<2x8x16xf32> -> vector<2x8x16xf32>
    "tpu.trace_stop"() : () -> ()
    %cst_95 = arith.constant 0.176776692 : f32
    %261 = vector.broadcast %cst_95 : f32 to vector<2x8x16xf32>
    %262 = arith.mulf %260, %261 : vector<2x8x16xf32>
    %263 = vector.broadcast %50 : vector<1x1x16xf32> to vector<2x8x16xf32>
    %264 = arith.addf %262, %263 : vector<2x8x16xf32>
    %cst_96 = arith.constant dense<0xFF800000> : vector<2x8xf32>
    %265 = vector.multi_reduction <maximumf>, %264, %cst_96 [2] : vector<2x8x16xf32> to vector<2x8xf32>
    %266 = vector.shape_cast %265 : vector<2x8xf32> to vector<2x8x1xf32>
    %267 = vector.broadcast %266 : vector<2x8x1xf32> to vector<2x8x16xf32>
    %268 = arith.subf %264, %267 : vector<2x8x16xf32>
    %269 = math.exp %268 : vector<2x8x16xf32>
    %cst_97 = arith.constant dense<0.000000e+00> : vector<2x8xf32>
    %270 = vector.multi_reduction <add>, %269, %cst_97 [2] : vector<2x8x16xf32> to vector<2x8xf32>
    %271 = vector.shape_cast %270 : vector<2x8xf32> to vector<2x8x1xf32>
    %272 = tpu.reciprocal %271 : vector<2x8x1xf32> -> vector<2x8x1xf32>
    %273 = vector.broadcast %272 : vector<2x8x1xf32> to vector<2x8x16xf32>
    %274 = arith.mulf %269, %273 : vector<2x8x16xf32>
    %275 = vector.broadcast %37 : vector<1x1x32xf32> to vector<2x16x32xf32>
    %276 = arith.mulf %214, %275 : vector<2x16x32xf32>
    "tpu.trace_start"() <{level = 10 : i32, message = "bqk,bke->bqe"}> : () -> ()
    %cst_98 = arith.constant dense<0.000000e+00> : vector<2x8x32xf32>
    %277 = tpu.matmul %274, %276, %cst_98 {dimension_numbers = #tpu.dot_dimension_numbers<[2], [1], [1], [2], [0, 0, 0, 1, 1, 2], [0], [0]>} : vector<2x8x16xf32>, vector<2x16x32xf32>, vector<2x8x32xf32> -> vector<2x8x32xf32>
    "tpu.trace_stop"() : () -> ()
    %278 = arith.addf %257, %277 : vector<2x8x32xf32>
    %279 = vector.broadcast %44 : vector<1x1x32xf32> to vector<2x8x32xf32>
    %280 = arith.mulf %207, %279 : vector<2x8x32xf32>
    "tpu.trace_start"() <{level = 10 : i32, message = "bqe,bke->bqk"}> : () -> ()
    %cst_99 = arith.constant dense<0.000000e+00> : vector<2x8x16xf32>
    %281 = tpu.matmul %280, %212, %cst_99 {dimension_numbers = #tpu.dot_dimension_numbers<[2], [2], [1], [1], [0, 0, 0, 1, 1, 1], [0], [0]>} : vector<2x8x32xf32>, vector<2x16x32xf32>, vector<2x8x16xf32> -> vector<2x8x16xf32>
    "tpu.trace_stop"() : () -> ()
    %cst_100 = arith.constant 0.176776692 : f32
    %282 = vector.broadcast %cst_100 : f32 to vector<2x8x16xf32>
    %283 = arith.mulf %281, %282 : vector<2x8x16xf32>
    %284 = vector.broadcast %50 : vector<1x1x16xf32> to vector<2x8x16xf32>
    %285 = arith.addf %283, %284 : vector<2x8x16xf32>
    %cst_101 = arith.constant dense<0xFF800000> : vector<2x8xf32>
    %286 = vector.multi_reduction <maximumf>, %285, %cst_101 [2] : vector<2x8x16xf32> to vector<2x8xf32>
    %287 = vector.shape_cast %286 : vector<2x8xf32> to vector<2x8x1xf32>
    %288 = vector.broadcast %287 : vector<2x8x1xf32> to vector<2x8x16xf32>
    %289 = arith.subf %285, %288 : vector<2x8x16xf32>
    %290 = math.exp %289 : vector<2x8x16xf32>
    %cst_102 = arith.constant dense<0.000000e+00> : vector<2x8xf32>
    %291 = vector.multi_reduction <add>, %290, %cst_102 [2] : vector<2x8x16xf32> to vector<2x8xf32>
    %292 = vector.shape_cast %291 : vector<2x8xf32> to vector<2x8x1xf32>
    %293 = tpu.reciprocal %292 : vector<2x8x1xf32> -> vector<2x8x1xf32>
    %294 = vector.broadcast %293 : vector<2x8x1xf32> to vector<2x8x16xf32>
    %295 = arith.mulf %290, %294 : vector<2x8x16xf32>
    %296 = vector.broadcast %44 : vector<1x1x32xf32> to vector<2x16x32xf32>
    %297 = arith.mulf %214, %296 : vector<2x16x32xf32>
    "tpu.trace_start"() <{level = 10 : i32, message = "bqk,bke->bqe"}> : () -> ()
    %cst_103 = arith.constant dense<0.000000e+00> : vector<2x8x32xf32>
    %298 = tpu.matmul %295, %297, %cst_103 {dimension_numbers = #tpu.dot_dimension_numbers<[2], [1], [1], [2], [0, 0, 0, 1, 1, 2], [0], [0]>} : vector<2x8x16xf32>, vector<2x16x32xf32>, vector<2x8x32xf32> -> vector<2x8x32xf32>
    "tpu.trace_stop"() : () -> ()
    %299 = arith.addf %278, %298 : vector<2x8x32xf32>
    %300 = vector.shape_cast %299 : vector<2x8x32xf32> to vector<16x32xf32>
    %cst_104 = arith.constant dense<0.000000e+00> : vector<16x32xf32>
    %301 = tpu.matmul %300, %60, %cst_104 {dimension_numbers = #tpu.dot_dimension_numbers<[1], [0], [0], [1], [0, 0, 1, 1], [], []>} : vector<16x32xf32>, vector<32x32xf32>, vector<16x32xf32> -> vector<16x32xf32>
    %302 = vector.broadcast %74 : vector<1x32xf32> to vector<16x32xf32>
    %303 = arith.addf %301, %302 : vector<16x32xf32>
    %304 = arith.addf %203, %303 : vector<16x32xf32>
    %cst_105 = arith.constant dense<0.000000e+00> : vector<16xf32>
    %305 = vector.multi_reduction <add>, %304, %cst_105 [1] : vector<16x32xf32> to vector<16xf32>
    %306 = vector.shape_cast %305 : vector<16xf32> to vector<16x1xf32>
    %cst_106 = arith.constant 3.200000e+01 : f32
    %307 = vector.broadcast %cst_106 : f32 to vector<16x1xf32>
    %308 = arith.divf %306, %307 : vector<16x1xf32>
    %309 = vector.broadcast %308 : vector<16x1xf32> to vector<16x32xf32>
    %310 = arith.subf %304, %309 : vector<16x32xf32>
    %311 = arith.mulf %310, %310 : vector<16x32xf32>
    %cst_107 = arith.constant dense<0.000000e+00> : vector<16xf32>
    %312 = vector.multi_reduction <add>, %311, %cst_107 [1] : vector<16x32xf32> to vector<16xf32>
    %313 = vector.shape_cast %312 : vector<16xf32> to vector<16x1xf32>
    %cst_108 = arith.constant 3.200000e+01 : f32
    %314 = vector.broadcast %cst_108 : f32 to vector<16x1xf32>
    %315 = arith.divf %313, %314 : vector<16x1xf32>
    %316 = vector.broadcast %308 : vector<16x1xf32> to vector<16x32xf32>
    %317 = arith.subf %304, %316 : vector<16x32xf32>
    %cst_109 = arith.constant 9.99999974E-6 : f32
    %318 = vector.broadcast %cst_109 : f32 to vector<16x1xf32>
    %319 = arith.addf %315, %318 : vector<16x1xf32>
    %320 = math.rsqrt %319 : vector<16x1xf32>
    %321 = vector.broadcast %320 : vector<16x1xf32> to vector<16x32xf32>
    %322 = arith.mulf %317, %321 : vector<16x32xf32>
    %323 = vector.broadcast %84 : vector<1x32xf32> to vector<16x32xf32>
    %324 = arith.mulf %322, %323 : vector<16x32xf32>
    %325 = vector.broadcast %86 : vector<1x32xf32> to vector<16x32xf32>
    %326 = arith.addf %324, %325 : vector<16x32xf32>
    %cst_110 = arith.constant dense<0.000000e+00> : vector<16x64xf32>
    %327 = tpu.matmul %326, %62, %cst_110 {dimension_numbers = #tpu.dot_dimension_numbers<[1], [0], [0], [1], [0, 0, 1, 1], [], []>} : vector<16x32xf32>, vector<32x64xf32>, vector<16x64xf32> -> vector<16x64xf32>
    %328 = vector.broadcast %76 : vector<1x64xf32> to vector<16x64xf32>
    %329 = arith.addf %327, %328 : vector<16x64xf32>
    %cst_111 = arith.constant 0.000000e+00 : f32
    %330 = vector.broadcast %cst_111 : f32 to vector<16x64xf32>
    %331 = arith.maximumf %329, %330 : vector<16x64xf32>
    %cst_112 = arith.constant dense<0.000000e+00> : vector<16x32xf32>
    %332 = tpu.matmul %331, %64, %cst_112 {dimension_numbers = #tpu.dot_dimension_numbers<[1], [0], [0], [1], [0, 0, 1, 1], [], []>} : vector<16x64xf32>, vector<64x32xf32>, vector<16x32xf32> -> vector<16x32xf32>
    %333 = vector.broadcast %78 : vector<1x32xf32> to vector<16x32xf32>
    %334 = arith.addf %332, %333 : vector<16x32xf32>
    %cst_113 = arith.constant dense<0.000000e+00> : vector<16xf32>
    %335 = vector.multi_reduction <add>, %334, %cst_113 [1] : vector<16x32xf32> to vector<16xf32>
    %336 = vector.shape_cast %335 : vector<16xf32> to vector<16x1xf32>
    %cst_114 = arith.constant 3.200000e+01 : f32
    %337 = vector.broadcast %cst_114 : f32 to vector<16x1xf32>
    %338 = arith.divf %336, %337 : vector<16x1xf32>
    %339 = vector.broadcast %338 : vector<16x1xf32> to vector<16x32xf32>
    %340 = arith.subf %334, %339 : vector<16x32xf32>
    %341 = arith.mulf %340, %340 : vector<16x32xf32>
    %cst_115 = arith.constant dense<0.000000e+00> : vector<16xf32>
    %342 = vector.multi_reduction <add>, %341, %cst_115 [1] : vector<16x32xf32> to vector<16xf32>
    %343 = vector.shape_cast %342 : vector<16xf32> to vector<16x1xf32>
    %cst_116 = arith.constant 3.200000e+01 : f32
    %344 = vector.broadcast %cst_116 : f32 to vector<16x1xf32>
    %345 = arith.divf %343, %344 : vector<16x1xf32>
    %346 = vector.broadcast %338 : vector<16x1xf32> to vector<16x32xf32>
    %347 = arith.subf %334, %346 : vector<16x32xf32>
    %cst_117 = arith.constant 9.99999974E-6 : f32
    %348 = vector.broadcast %cst_117 : f32 to vector<16x1xf32>
    %349 = arith.addf %345, %348 : vector<16x1xf32>
    %350 = math.rsqrt %349 : vector<16x1xf32>
    %351 = vector.broadcast %350 : vector<16x1xf32> to vector<16x32xf32>
    %352 = arith.mulf %347, %351 : vector<16x32xf32>
    %353 = vector.broadcast %88 : vector<1x32xf32> to vector<16x32xf32>
    %354 = arith.mulf %352, %353 : vector<16x32xf32>
    %355 = vector.broadcast %90 : vector<1x32xf32> to vector<16x32xf32>
    %356 = arith.addf %354, %355 : vector<16x32xf32>
    %357 = vector.shape_cast %356 : vector<16x32xf32> to vector<2x8x32xf32>
    %c0_118 = arith.constant 0 : index
    %c0_119 = arith.constant 0 : index
    %c0_120 = arith.constant 0 : index
    %358 = vector.load %arg5[%c0_118, %c0_119, %c0_120] : memref<2x8x32xf32, #tpu.memory_space<vmem>>, vector<2x8x32xf32>
    tpu.vector_store %arg5[%c0_118, %c0_119, %c0_120], %357 {strides = array<i32>} : memref<2x8x32xf32, #tpu.memory_space<vmem>>, vector<2x8x32xf32>,
    return
  }
}

</mosaic_0001>

<llo_original>
// kernel: tpu_custom_call.1
$region0: #{tpu_custom_call.1}
  #allocation0 [shape = 'u32[]', space=smem, size = 0x4, offset = 0x4, fixed_abs, tag = 'smem constant byte address 0x4 - core index']
  #allocation1 [shape = 'u32[144,128]{1,0:T(1,128)}', space=vmem, size = 0x12000, scoped, tag = 'internal scratch']
  %s0 = inlined_call_operand.vmem [shape: s32[16,1], index: 0, kind: input, shape index: {}]
  %s1 = inlined_call_operand.hbm [shape: f32[32,32], index: 1, kind: input, shape index: {}]
  %s2 = inlined_call_operand.hbm [shape: f32[32,32], index: 2, kind: input, shape index: {}]
  %s3 = inlined_call_operand.hbm [shape: f32[1,256,128], index: 3, kind: input, shape index: {}]
  %s4 = inlined_call_operand.vmem [shape: f32[1,16,128], index: 4, kind: input, shape index: {}]
  %s5 = inlined_call_operand.hbm [shape: f32[2,8,32], index: 5, kind: output, shape index: {}]
  %s6 = sld [smem:[#allocation0]]
  $region42: #{tpu_custom_call.1} parent=0
    _
  %s8 = ssub.s32 1, %s6
  %s9 = scalar_select 0, %s8, %s6
  $region1: #{tpu_custom_call.1} parent=0
    #allocation2 [shape = 'u8[16384]{0}', space=vmem, size = 0x4000, scoped, tag = 'input window, operand 1, single buffered']
    #allocation3 [shape = 's32[1]{0}', space=sflag, size = 0x4, scoped, tag = 'scoped memory for tpu_custom_call.1']
    #allocation4 [shape = 's32[1]{0}', space=sflag, size = 0x4, scoped, tag = 'scoped memory for tpu_custom_call.1']
    #allocation5 [shape = 'u8[16384]{0}', space=vmem, size = 0x4000, scoped, tag = 'input window, operand 2, single buffered']
    #allocation6 [shape = 's32[1]{0}', space=sflag, size = 0x4, scoped, tag = 'scoped memory for tpu_custom_call.1']
    #allocation7 [shape = 'u8[131072]{0}', space=vmem, size = 0x20000, scoped, tag = 'input window, operand 3, single buffered']
    #allocation8 [shape = 'u8[8192]{0}', space=vmem, size = 0x2000, scoped, tag = 'output window, operand 0, single buffered']
    %10 = vsyncpa [#allocation3], 0
    %11 = vsyncpa [#allocation6], 0
    %12 = vsyncpa [#allocation4], 0
    // Predicated region
    $region2: #{tpu_custom_call.1} parent=1 // pred_check
      _
    $region3: #{tpu_custom_call.1} parent=1 // pred_check_branch
      %14 = sbr.rel (0) target = $region5
    $region4: #{tpu_custom_call.1} parent=1 // pred_region
      _
    $region5: #{tpu_custom_call.1} parent=1 // pred_fallthru
      _
    // Predicated region
    $region6: #{tpu_custom_call.1} parent=1 // pred_check
      _
    $region7: #{tpu_custom_call.1} parent=1 // pred_check_branch
      %16 = sbr.rel (0) target = $region9
    $region8: #{tpu_custom_call.1} parent=1 // pred_region
      %s18 = ssub.s32 512, 512
      %19 = vsyncadd [#allocation3], %s18
      %s20 = sshll.u32 [#allocation2], 4
      %s21 = int_to_ptr.vmem [resolvable:$true] %s20
      %26 = dma.hbm_to_vmem [thread:$0]  %s1, 512, %s21, [#allocation3], 128, 128, 8
    $region9: #{tpu_custom_call.1} parent=1 // pred_fallthru
      _
    // Predicated region
    $region10: #{tpu_custom_call.1} parent=1 // pred_check
      _
    $region11: #{tpu_custom_call.1} parent=1 // pred_check_branch
      %28 = sbr.rel (0) target = $region13
    $region12: #{tpu_custom_call.1} parent=1 // pred_region
      %s30 = ssub.s32 512, 512
      %31 = vsyncadd [#allocation6], %s30
      %s32 = sshll.u32 [#allocation5], 4
      %s33 = int_to_ptr.vmem [resolvable:$true] %s32
      %38 = dma.hbm_to_vmem [thread:$0]  %s2, 512, %s33, [#allocation6], 128, 128, 8
    $region13: #{tpu_custom_call.1} parent=1 // pred_fallthru
      _
    // Predicated region
    $region14: #{tpu_custom_call.1} parent=1 // pred_check
      _
    $region15: #{tpu_custom_call.1} parent=1 // pred_check_branch
      %40 = sbr.rel (0) target = $region17
    $region16: #{tpu_custom_call.1} parent=1 // pred_region
      %s42 = ssub.s32 4096, 4096
      %43 = vsyncadd [#allocation6], %s42
      %s44 = sshll.u32 [#allocation7], 4
      %s45 = int_to_ptr.vmem [resolvable:$true] %s44
      %50 = dma.hbm_to_vmem [thread:$0]  %s3, 4096, %s45, [#allocation6], 128, 128, 8
    $region17: #{tpu_custom_call.1} parent=1 // pred_fallthru
      _
    // Predicated region
    $region18: #{tpu_custom_call.1} parent=1 // pred_check
      _
    $region19: #{tpu_custom_call.1} parent=1 // pred_check_branch
      %52 = sbr.rel (0) target = $region21
    $region20: #{tpu_custom_call.1} parent=1 // pred_region
      _
    $region21: #{tpu_custom_call.1} parent=1 // pred_fallthru
      _
    // Predicated region
    $region22: #{tpu_custom_call.1} parent=1 // pred_check
      _
    $region23: #{tpu_custom_call.1} parent=1 // pred_check_branch
      %54 = sbr.rel (0) target = $region25
    $region24: #{tpu_custom_call.1} parent=1 // pred_region
      %55 = dma.done [#allocation3], 512
    $region25: #{tpu_custom_call.1} parent=1 // pred_fallthru
      _
    // Predicated region
    $region26: #{tpu_custom_call.1} parent=1 // pred_check
      _
    $region27: #{tpu_custom_call.1} parent=1 // pred_check_branch
      %57 = sbr.rel (0) target = $region29
    $region28: #{tpu_custom_call.1} parent=1 // pred_region
      %58 = dma.done [#allocation6], 512
    $region29: #{tpu_custom_call.1} parent=1 // pred_fallthru
      _
    // Predicated region
    $region30: #{tpu_custom_call.1} parent=1 // pred_check
      _
    $region31: #{tpu_custom_call.1} parent=1 // pred_check_branch
      %60 = sbr.rel (0) target = $region33
    $region32: #{tpu_custom_call.1} parent=1 // pred_region
      %61 = dma.done [#allocation6], 4096
    $region33: #{tpu_custom_call.1} parent=1 // pred_fallthru
      _
    %v62 = vld [vmem:[%s0] sm:$0xff]
    %v63 = vld [vmem:[%s0 + $0x8] sm:$0xff]
    %v64 = vlaneseq
    %v65 = vand.u32 %v64, 127
    %66 = vset.pattern.permute.xlu0 0
    %67 = vperm.xlu0 %66, %v62
    %v68 = vpop.permute.xlu0 %67
    %69 = vset.pattern.permute.xlu0 0
    %70 = vperm.xlu0 %69, %v63
    %v71 = vpop.permute.xlu0 %70
    %vm72 = vcmp.eq.s32.totalorder %v65, %v68
    %vm73 = vcmp.eq.s32.totalorder %v65, %v71
    %v74 = vsel %vm72, 1, 0
    %v75 = vsel %vm73, 1, 0
    %v76 = vcvt.s32.f32 %v74
    %v77 = vcvt.s32.f32 %v75
    %v78 = vld [vmem:[#allocation5] sm:$0xff]
    %v79 = vld [vmem:[#allocation5 + $0x8] sm:$0xff]
    %v80 = vld [vmem:[#allocation5 + $0x10] sm:$0xff]
    %v81 = vld [vmem:[#allocation5 + $0x18] sm:$0xff]
    %vm82 = vcmask 261120
    %v84 = vsel %vm82, %v76, 0
    %v87 = vsel %vm82, %v77, 0
    %89 = vmatprep.subr.mxu0 0.0
    %90 = vmatpush1.msra.mxu0 0.0
    %91 = vmatprep.subr.mxu0 0.0
    %92 = vmatpush1.msra.mxu0 0.0
    %93 = vmatprep.subr.mxu0 0.0
    %94 = vmatpush1.msra.mxu0 0.0
    %95 = vmatprep.subr.mxu0 0.0
    %96 = vmatpush1.msra.mxu0 0.0
    %97 = vmatprep.subr.mxu0 0.0
    %98 = vmatpush1.msra.mxu0 0.0
    %99 = vmatprep.subr.mxu0 0.0
    %100 = vmatpush1.msra.mxu0 0.0
    %101 = vmatprep.subr.mxu0 0.0
    %102 = vmatpush1.msra.mxu0 0.0
    %103 = vmatprep.subr.mxu0 0.0
    %104 = vmatpush1.msra.mxu0 0.0
    %105 = vmatprep.subr.mxu0 0.0
    %106 = vmatpush1.msra.mxu0 0.0
    %107 = vmatprep.subr.mxu0 0.0
    %108 = vmatpush1.msra.mxu0 0.0
    %109 = vmatprep.subr.mxu0 0.0
    %110 = vmatpush1.msra.mxu0 0.0
    %111 = vmatprep.subr.mxu0 0.0
    %112 = vmatpush1.msra.mxu0 0.0
    %113 = vmatprep.subr.mxu0 0.0
    %114 = vmatpush1.msra.mxu0 %v81
    %115 = vmatprep.subr.mxu0 0.0
    %116 = vmatpush1.msra.mxu0 %v80
    %117 = vmatprep.subr.mxu0 0.0
    %118 = vmatpush1.msra.mxu0 %v79
    %119 = vmatprep.subr.mxu0 0.0
    %120 = vmatpush1.msra.mxu0 %v78
    %121 = vmatprep.subr.mxu0 0.0
    %122 = vmatpush2.msra.mxu0 0.0
    %123 = vmatprep.subr.mxu0 0.0
    %124 = vmatpush2.msra.mxu0 0.0
    %125 = vmatprep.subr.mxu0 0.0
    %126 = vmatpush2.msra.mxu0 0.0
    %127 = vmatprep.subr.mxu0 0.0
    %128 = vmatpush2.msra.mxu0 0.0
    %129 = vmatprep.subr.mxu0 0.0
    %130 = vmatpush2.msra.mxu0 0.0
    %131 = vmatprep.subr.mxu0 0.0
    %132 = vmatpush2.msra.mxu0 0.0
    %133 = vmatprep.subr.mxu0 0.0
    %134 = vmatpush2.msra.mxu0 0.0
    %135 = vmatprep.subr.mxu0 0.0
    %136 = vmatpush2.msra.mxu0 0.0
    %137 = vmatprep.subr.mxu0 0.0
    %138 = vmatpush2.msra.mxu0 0.0
    %139 = vmatprep.subr.mxu0 0.0
    %140 = vmatpush2.msra.mxu0 0.0
    %141 = vmatprep.subr.mxu0 0.0
    %142 = vmatpush2.msra.mxu0 0.0
    %143 = vmatprep.subr.mxu0 0.0
    %144 = vmatpush2.msra.mxu0 0.0
    %145 = vmatprep.subr.mxu0 0.0
    %146 = vmatpush2.msra.mxu0 0.0
    %147 = vmatprep.subr.mxu0 0.0
    %148 = vmatpush2.msra.mxu0 0.0
    %149 = vmatprep.subr.mxu0 0.0
    %150 = vmatpush2.msra.mxu0 0.0
    %151 = vmatprep.subr.mxu0 0.0
    %152 = vmatpush2.msra.mxu0 0.0
    %153 = vmatprep.mubr.f32.mxu0 0.0
    %154 = vmatmul.mubr.f32.gmra.mxu0 %v84
    %v155 = vpop.f32.mrf.mxu0
    %v156 = vadd.f32 0.0, %v155
    %v157 = vpop.f32.mrf.mxu0
    %158 = vmatprep.mubr.f32.mxu0 0.0
    %159 = vmatmul.mubr.f32.gmra.mxu0 %v87
    %v160 = vpop.f32.mrf.mxu0
    %v161 = vadd.f32 0.0, %v160
    %v162 = vpop.f32.mrf.mxu0
    %163 = vdwg.mxu0
    %v164 = vmul.f32 %v156, 5.656854
    %v165 = vmul.f32 %v161, 5.656854
    %v166 = vlaneseq
    %v167 = vshrl.u32 %v166, 7
    %v168 = vcvt.s32.f32 %v167
    %v169 = vadd.f32 %v164, %v168
    %v170 = vadd.f32 %v165, %v168
    %v171 = vld [vmem:[#allocation2] sm:$0xff]
    %v172 = vld [vmem:[#allocation2 + $0x8] sm:$0xff]
    %v173 = vld [vmem:[#allocation2 + $0x10] sm:$0xff]
    %v174 = vld [vmem:[#allocation2 + $0x18] sm:$0xff]
    %vm175 = vcmp.ge.s32.totalorder %v65, 0
    %vm176 = vcmp.lt.s32.totalorder %v65, 8
    %vm177 = vmand %vm175, %vm176
    %v178 = vsel %vm177, 1, 0
    %v179 = vcvt.s32.f32 %v178
    %vm180 = vcmp.ge.s32.totalorder %v65, 8
    %vm181 = vcmp.lt.s32.totalorder %v65, 16
    %vm182 = vmand %vm180, %vm181
    %v183 = vsel %vm182, 1, 0
    %v184 = vcvt.s32.f32 %v183
    %vm185 = vcmp.ge.s32.totalorder %v65, 16
    %vm186 = vcmp.lt.s32.totalorder %v65, 24
    %vm187 = vmand %vm185, %vm186
    %v188 = vsel %vm187, 1, 0
    %v189 = vcvt.s32.f32 %v188
    %vm190 = vcmp.ge.s32.totalorder %v65, 24
    %vm191 = vcmp.lt.s32.totalorder %v65, 32
    %vm192 = vmand %vm190, %vm191
    %v193 = vsel %vm192, 1, 0
    %v194 = vcvt.s32.f32 %v193
    %vm195 = vcmp.lt.s32.totalorder %v65, 10
    %v196 = vsel %vm195, 0.0, -1e+30
    %v197 = vld [vmem:[#allocation7] sm:$0xff]
    %v198 = vld [vmem:[#allocation7 + $0x8] sm:$0xff]
    %v199 = vld [vmem:[#allocation7 + $0x10] sm:$0xff]
    %v200 = vld [vmem:[#allocation7 + $0x18] sm:$0xff]
    %v201 = vld [vmem:[#allocation7 + $0x20] sm:$0xff]
    %v202 = vld [vmem:[#allocation7 + $0x28] sm:$0xff]
    %v203 = vld [vmem:[#allocation7 + $0x30] sm:$0xff]
    %v204 = vld [vmem:[#allocation7 + $0x38] sm:$0xff]
    %v205 = vld [vmem:[#allocation7 + $0x40] sm:$0xff]
    %v206 = vld [vmem:[#allocation7 + $0x48] sm:$0xff]
    %v207 = vld [vmem:[#allocation7 + $0x50] sm:$0xff]
    %v208 = vld [vmem:[#allocation7 + $0x58] sm:$0xff]
    %v209 = vld [vmem:[#allocation7 + $0x60] sm:$0xff]
    %v210 = vld [vmem:[#allocation7 + $0x68] sm:$0xff]
    %v211 = vld [vmem:[#allocation7 + $0x70] sm:$0xff]
    %v212 = vld [vmem:[#allocation7 + $0x78] sm:$0xff]
    %v213 = vld [vmem:[#allocation7 + $0x80] sm:$0xff]
    %v214 = vld [vmem:[#allocation7 + $0x88] sm:$0xff]
    %v215 = vld [vmem:[#allocation7 + $0x90] sm:$0xff]
    %v216 = vld [vmem:[#allocation7 + $0x98] sm:$0xff]
    %v217 = vld [vmem:[#allocation7 + $0xa0] sm:$0xff]
    %v218 = vld [vmem:[#allocation7 + $0xa8] sm:$0xff]
    %v219 = vld [vmem:[#allocation7 + $0xb0] sm:$0xff]
    %v220 = vld [vmem:[#allocation7 + $0xb8] sm:$0xff]
    %v221 = vld [vmem:[#allocation7 + $0xc0] sm:$0xff]
    %v222 = vld [vmem:[#allocation7 + $0xc8] sm:$0xff]
    %v223 = vld [vmem:[#allocation7 + $0xd0] sm:$0xff]
    %v224 = vld [vmem:[#allocation7 + $0xd8] sm:$0xff]
    %v225 = vld [vmem:[#allocation7 + $0xe0] sm:$0xff]
    %v226 = vld [vmem:[#allocation7 + $0xe8] sm:$0xff]
    %v227 = vld [vmem:[#allocation7 + $0xf0] sm:$0xff]
    %v228 = vld [vmem:[#allocation7 + $0xf8] sm:$0xff]
    %v229 = vld [vmem:[%s4] sm:$0x1]
    %v230 = vld [vmem:[%s4 + $0x1] sm:$0x1]
    %v231 = vld [vmem:[%s4 + $0x2] sm:$0x1]
    %v232 = vld [vmem:[%s4 + $0x3] sm:$0x1]
    %v233 = vld [vmem:[%s4 + $0x4] sm:$0x1]
    %v234 = vld [vmem:[%s4 + $0x5] sm:$0x1]
    %v235 = vld [vmem:[%s4 + $0x6] sm:$0x1]
    %v236 = vld [vmem:[%s4 + $0x7] sm:$0x1]
    %v237 = vld [vmem:[%s4 + $0x8] sm:$0x1]
    %v238 = vld [vmem:[%s4 + $0x9] sm:$0x1]
    %v239 = vld [vmem:[%s4 + $0xa] sm:$0x1]
    %v240 = vld [vmem:[%s4 + $0xb] sm:$0x1]
    %v241 = vld [vmem:[%s4 + $0xc] sm:$0x1]
    %v242 = vlaneseq
    %v243 = vshrl.u32 %v242, 7
    %v244 = vsub.s32 0, %v243
    %v245 = vrot.slane %v229, %v244
    %v247 = vsel %vm82, %v169, 0
    %v250 = vsel %vm82, %v170, 0
    %252 = vmatprep.subr.mxu0 0.0
    %253 = vmatpush1.msra.mxu0 0.0
    %254 = vmatprep.subr.mxu0 0.0
    %255 = vmatpush1.msra.mxu0 0.0
    %256 = vmatprep.subr.mxu0 0.0
    %257 = vmatpush1.msra.mxu0 0.0
    %258 = vmatprep.subr.mxu0 0.0
    %259 = vmatpush1.msra.mxu0 0.0
    %260 = vmatprep.subr.mxu0 0.0
    %261 = vmatpush1.msra.mxu0 0.0
    %262 = vmatprep.subr.mxu0 0.0
    %263 = vmatpush1.msra.mxu0 0.0
    %264 = vmatprep.subr.mxu0 0.0
    %265 = vmatpush1.msra.mxu0 0.0
    %266 = vmatprep.subr.mxu0 0.0
    %267 = vmatpush1.msra.mxu0 0.0
    %268 = vmatprep.subr.mxu0 0.0
    %269 = vmatpush1.msra.mxu0 0.0
    %270 = vmatprep.subr.mxu0 0.0
    %271 = vmatpush1.msra.mxu0 0.0
    %272 = vmatprep.subr.mxu0 0.0
    %273 = vmatpush1.msra.mxu0 0.0
    %274 = vmatprep.subr.mxu0 0.0
    %275 = vmatpush1.msra.mxu0 0.0
    %276 = vmatprep.subr.mxu0 0.0
    %277 = vmatpush1.msra.mxu0 %v200
    %278 = vmatprep.subr.mxu0 0.0
    %279 = vmatpush1.msra.mxu0 %v199
    %280 = vmatprep.subr.mxu0 0.0
    %281 = vmatpush1.msra.mxu0 %v198
    %282 = vmatprep.subr.mxu0 0.0
    %283 = vmatpush1.msra.mxu0 %v197
    %284 = vmatprep.subr.mxu0 0.0
    %285 = vmatpush2.msra.mxu0 0.0
    %286 = vmatprep.subr.mxu0 0.0
    %287 = vmatpush2.msra.mxu0 0.0
    %288 = vmatprep.subr.mxu0 0.0
    %289 = vmatpush2.msra.mxu0 0.0
    %290 = vmatprep.subr.mxu0 0.0
    %291 = vmatpush2.msra.mxu0 0.0
    %292 = vmatprep.subr.mxu0 0.0
    %293 = vmatpush2.msra.mxu0 0.0
    %294 = vmatprep.subr.mxu0 0.0
    %295 = vmatpush2.msra.mxu0 0.0
    %296 = vmatprep.subr.mxu0 0.0
    %297 = vmatpush2.msra.mxu0 0.0
    %298 = vmatprep.subr.mxu0 0.0
    %299 = vmatpush2.msra.mxu0 0.0
    %300 = vmatprep.subr.mxu0 0.0
    %301 = vmatpush2.msra.mxu0 0.0
    %302 = vmatprep.subr.mxu0 0.0
    %303 = vmatpush2.msra.mxu0 0.0
    %304 = vmatprep.subr.mxu0 0.0
    %305 = vmatpush2.msra.mxu0 0.0
    %306 = vmatprep.subr.mxu0 0.0
    %307 = vmatpush2.msra.mxu0 0.0
    %308 = vmatprep.subr.mxu0 0.0
    %309 = vmatpush2.msra.mxu0 0.0
    %310 = vmatprep.subr.mxu0 0.0
    %311 = vmatpush2.msra.mxu0 0.0
    %312 = vmatprep.subr.mxu0 0.0
    %313 = vmatpush2.msra.mxu0 0.0
    %314 = vmatprep.subr.mxu0 0.0
    %315 = vmatpush2.msra.mxu0 0.0
    %316 = vmatprep.mubr.f32.mxu0 0.0
    %317 = vmatmul.mubr.f32.gmra.mxu0 %v247
    %v318 = vpop.f32.mrf.mxu0
    %v319 = vadd.f32 %v245, %v318
    %v320 = vpop.f32.mrf.mxu0
    %321 = vmatprep.mubr.f32.mxu0 0.0
    %322 = vmatmul.mubr.f32.gmra.mxu0 %v250
    %v323 = vpop.f32.mrf.mxu0
    %v324 = vadd.f32 %v245, %v323
    %v325 = vpop.f32.mrf.mxu0
    %326 = vdwg.mxu0
    %v327 = vmul.f32 %v319, %v179
    %v328 = vmul.f32 %v324, %v179
    %330 = vrot.lane.b32.xlu0 %v319, 96
    %v331 = vpop.permute.xlu0 %330
    %v333 = vsel %vm82, %v327, 0
    %v335 = vsel %vm82, %v331, 0
    %337 = vmatprep.subr.mxu0 0.0
    %338 = vmatpush1.xpose.msra.mxu0 0.0
    %339 = vmatprep.subr.mxu0 0.0
    %340 = vmatpush1.xpose.msra.mxu0 0.0
    %341 = vmatprep.subr.mxu0 0.0
    %342 = vmatpush1.xpose.msra.mxu0 0.0
    %343 = vmatprep.subr.mxu0 0.0
    %344 = vmatpush1.xpose.msra.mxu0 0.0
    %345 = vmatprep.subr.mxu0 0.0
    %346 = vmatpush1.xpose.msra.mxu0 0.0
    %347 = vmatprep.subr.mxu0 0.0
    %348 = vmatpush1.xpose.msra.mxu0 0.0
    %349 = vmatprep.subr.mxu0 0.0
    %350 = vmatpush1.xpose.msra.mxu0 0.0
    %351 = vmatprep.subr.mxu0 0.0
    %352 = vmatpush1.xpose.msra.mxu0 0.0
    %353 = vmatprep.subr.mxu0 0.0
    %354 = vmatpush1.xpose.msra.mxu0 0.0
    %355 = vmatprep.subr.mxu0 0.0
    %356 = vmatpush1.xpose.msra.mxu0 0.0
    %357 = vmatprep.subr.mxu0 0.0
    %358 = vmatpush1.xpose.msra.mxu0 0.0
    %359 = vmatprep.subr.mxu0 0.0
    %360 = vmatpush1.xpose.msra.mxu0 0.0
    %361 = vmatprep.subr.mxu0 0.0
    %362 = vmatpush1.xpose.msra.mxu0 0.0
    %363 = vmatprep.subr.mxu0 0.0
    %364 = vmatpush1.xpose.msra.mxu0 0.0
    %365 = vmatprep.subr.mxu0 0.0
    %366 = vmatpush1.xpose.msra.mxu0 0.0
    %367 = vmatprep.subr.mxu0 0.0
    %368 = vmatpush1.xpose.msra.mxu0 %v335
    %369 = vmatprep.subr.mxu0 0.0
    %370 = vmatpush2.xpose.msra.mxu0 0.0
    %371 = vmatprep.subr.mxu0 0.0
    %372 = vmatpush2.xpose.msra.mxu0 0.0
    %373 = vmatprep.subr.mxu0 0.0
    %374 = vmatpush2.xpose.msra.mxu0 0.0
    %375 = vmatprep.subr.mxu0 0.0
    %376 = vmatpush2.xpose.msra.mxu0 0.0
    %377 = vmatprep.subr.mxu0 0.0
    %378 = vmatpush2.xpose.msra.mxu0 0.0
    %379 = vmatprep.subr.mxu0 0.0
    %380 = vmatpush2.xpose.msra.mxu0 0.0
    %381 = vmatprep.subr.mxu0 0.0
    %382 = vmatpush2.xpose.msra.mxu0 0.0
    %383 = vmatprep.subr.mxu0 0.0
    %384 = vmatpush2.xpose.msra.mxu0 0.0
    %385 = vmatprep.subr.mxu0 0.0
    %386 = vmatpush2.xpose.msra.mxu0 0.0
    %387 = vmatprep.subr.mxu0 0.0
    %388 = vmatpush2.xpose.msra.mxu0 0.0
    %389 = vmatprep.subr.mxu0 0.0
    %390 = vmatpush2.xpose.msra.mxu0 0.0
    %391 = vmatprep.subr.mxu0 0.0
    %392 = vmatpush2.xpose.msra.mxu0 0.0
    %393 = vmatprep.subr.mxu0 0.0
    %394 = vmatpush2.xpose.msra.mxu0 0.0
    %395 = vmatprep.subr.mxu0 0.0
    %396 = vmatpush2.xpose.msra.mxu0 0.0
    %397 = vmatprep.subr.mxu0 0.0
    %398 = vmatpush2.xpose.msra.mxu0 0.0
    %399 = vmatprep.subr.mxu0 0.0
    %400 = vmatpush2.xpose.msra.mxu0 0.0
    %401 = vmatprep.mubr.f32.mxu0 0.0
    %402 = vmatmul.mubr.f32.gmra.mxu0 %v333
    %v403 = vpop.f32.mrf.mxu0
    %v404 = vadd.f32 0.0, %v403
    %v405 = vpop.f32.mrf.mxu0
    %406 = vdwg.mxu0
    %408 = vrot.lane.b32.xlu0 %v324, 96
    %v409 = vpop.permute.xlu0 %408
    %v411 = vsel %vm82, %v328, 0
    %v413 = vsel %vm82, %v409, 0
    %415 = vmatprep.subr.mxu0 0.0
    %416 = vmatpush1.xpose.msra.mxu0 0.0
    %417 = vmatprep.subr.mxu0 0.0
    %418 = vmatpush1.xpose.msra.mxu0 0.0
    %419 = vmatprep.subr.mxu0 0.0
    %420 = vmatpush1.xpose.msra.mxu0 0.0
    %421 = vmatprep.subr.mxu0 0.0
    %422 = vmatpush1.xpose.msra.mxu0 0.0
    %423 = vmatprep.subr.mxu0 0.0
    %424 = vmatpush1.xpose.msra.mxu0 0.0
    %425 = vmatprep.subr.mxu0 0.0
    %426 = vmatpush1.xpose.msra.mxu0 0.0
    %427 = vmatprep.subr.mxu0 0.0
    %428 = vmatpush1.xpose.msra.mxu0 0.0
    %429 = vmatprep.subr.mxu0 0.0
    %430 = vmatpush1.xpose.msra.mxu0 0.0
    %431 = vmatprep.subr.mxu0 0.0
    %432 = vmatpush1.xpose.msra.mxu0 0.0
    %433 = vmatprep.subr.mxu0 0.0
    %434 = vmatpush1.xpose.msra.mxu0 0.0
    %435 = vmatprep.subr.mxu0 0.0
    %436 = vmatpush1.xpose.msra.mxu0 0.0
    %437 = vmatprep.subr.mxu0 0.0
    %438 = vmatpush1.xpose.msra.mxu0 0.0
    %439 = vmatprep.subr.mxu0 0.0
    %440 = vmatpush1.xpose.msra.mxu0 0.0
    %441 = vmatprep.subr.mxu0 0.0
    %442 = vmatpush1.xpose.msra.mxu0 0.0
    %443 = vmatprep.subr.mxu0 0.0
    %444 = vmatpush1.xpose.msra.mxu0 0.0
    %445 = vmatprep.subr.mxu0 0.0
    %446 = vmatpush1.xpose.msra.mxu0 %v413
    %447 = vmatprep.subr.mxu0 0.0
    %448 = vmatpush2.xpose.msra.mxu0 0.0
    %449 = vmatprep.subr.mxu0 0.0
    %450 = vmatpush2.xpose.msra.mxu0 0.0
    %451 = vmatprep.subr.mxu0 0.0
    %452 = vmatpush2.xpose.msra.mxu0 0.0
    %453 = vmatprep.subr.mxu0 0.0
    %454 = vmatpush2.xpose.msra.mxu0 0.0
    %455 = vmatprep.subr.mxu0 0.0
    %456 = vmatpush2.xpose.msra.mxu0 0.0
    %457 = vmatprep.subr.mxu0 0.0
    %458 = vmatpush2.xpose.msra.mxu0 0.0
    %459 = vmatprep.subr.mxu0 0.0
    %460 = vmatpush2.xpose.msra.mxu0 0.0
    %461 = vmatprep.subr.mxu0 0.0
    %462 = vmatpush2.xpose.msra.mxu0 0.0
    %463 = vmatprep.subr.mxu0 0.0
    %464 = vmatpush2.xpose.msra.mxu0 0.0
    %465 = vmatprep.subr.mxu0 0.0
    %466 = vmatpush2.xpose.msra.mxu0 0.0
    %467 = vmatprep.subr.mxu0 0.0
    %468 = vmatpush2.xpose.msra.mxu0 0.0
    %469 = vmatprep.subr.mxu0 0.0
    %470 = vmatpush2.xpose.msra.mxu0 0.0
    %471 = vmatprep.subr.mxu0 0.0
    %472 = vmatpush2.xpose.msra.mxu0 0.0
    %473 = vmatprep.subr.mxu0 0.0
    %474 = vmatpush2.xpose.msra.mxu0 0.0
    %475 = vmatprep.subr.mxu0 0.0
    %476 = vmatpush2.xpose.msra.mxu0 0.0
    %477 = vmatprep.subr.mxu0 0.0
    %478 = vmatpush2.xpose.msra.mxu0 0.0
    %479 = vmatprep.mubr.f32.mxu0 0.0
    %480 = vmatmul.mubr.f32.gmra.mxu0 %v411
    %v481 = vpop.f32.mrf.mxu0
    %v482 = vadd.f32 0.0, %v481
    %v483 = vpop.f32.mrf.mxu0
    %484 = vdwg.mxu0
    %v485 = vmul.f32 %v404, 0.17677669
    %v486 = vmul.f32 %v482, 0.17677669
    %vm487 = vcmask 64512
    %v488 = vsel %vm487, %v485, -inf
    %489 = vmax.xlane.f32.xlu0 %v488
    %v490 = vpop.xlane.xlu0 %489
    %v491 = vsel %vm487, %v486, -inf
    %492 = vmax.xlane.f32.xlu0 %v491
    %v493 = vpop.xlane.xlu0 %492
    %v494 = vsub.f32 %v485, %v490
    %v495 = vsub.f32 %v486, %v493
    %v496 = vmul.f32 %v494, 1.442695
    %v497 = vpow.pop %v496
    %v498 = vmul.f32 %v495, 1.442695
    %v499 = vpow.pop %v498
    %v500 = vsel %vm487, %v497, 0.0
    %501 = vadd.xlane.f32.xlu0 %v500
    %v502 = vpop.xlane.xlu0 %501
    %v503 = vsel %vm487, %v499, 0.0
    %504 = vadd.xlane.f32.xlu0 %v503
    %v505 = vpop.xlane.xlu0 %504
    %v506 = vrcp.pop %v502
    %v507 = vrcp.pop %v505
    %v508 = vmul.f32 %v497, %v506
    %v509 = vmul.f32 %v499, %v507
    %511 = vrot.lane.b32.xlu0 %v179, 64
    %v512 = vpop.permute.xlu0 %511
    %v514 = vmul.f32 %v319, %v512
    %v515 = vmul.f32 %v324, %v512
    %v516 = vmul.f32 %v319, %v184
    %v517 = vmul.f32 %v324, %v184
    %v519 = vsel %vm82, %v516, 0
    %521 = vmatprep.subr.mxu0 0.0
    %522 = vmatpush1.xpose.msra.mxu0 0.0
    %523 = vmatprep.subr.mxu0 0.0
    %524 = vmatpush1.xpose.msra.mxu0 0.0
    %525 = vmatprep.subr.mxu0 0.0
    %526 = vmatpush1.xpose.msra.mxu0 0.0
    %527 = vmatprep.subr.mxu0 0.0
    %528 = vmatpush1.xpose.msra.mxu0 0.0
    %529 = vmatprep.subr.mxu0 0.0
    %530 = vmatpush1.xpose.msra.mxu0 0.0
    %531 = vmatprep.subr.mxu0 0.0
    %532 = vmatpush1.xpose.msra.mxu0 0.0
    %533 = vmatprep.subr.mxu0 0.0
    %534 = vmatpush1.xpose.msra.mxu0 0.0
    %535 = vmatprep.subr.mxu0 0.0
    %536 = vmatpush1.xpose.msra.mxu0 0.0
    %537 = vmatprep.subr.mxu0 0.0
    %538 = vmatpush1.xpose.msra.mxu0 0.0
    %539 = vmatprep.subr.mxu0 0.0
    %540 = vmatpush1.xpose.msra.mxu0 0.0
    %541 = vmatprep.subr.mxu0 0.0
    %542 = vmatpush1.xpose.msra.mxu0 0.0
    %543 = vmatprep.subr.mxu0 0.0
    %544 = vmatpush1.xpose.msra.mxu0 0.0
    %545 = vmatprep.subr.mxu0 0.0
    %546 = vmatpush1.xpose.msra.mxu0 0.0
    %547 = vmatprep.subr.mxu0 0.0
    %548 = vmatpush1.xpose.msra.mxu0 0.0
    %549 = vmatprep.subr.mxu0 0.0
    %550 = vmatpush1.xpose.msra.mxu0 0.0
    %551 = vmatprep.subr.mxu0 0.0
    %552 = vmatpush1.xpose.msra.mxu0 %v335
    %553 = vmatprep.subr.mxu0 0.0
    %554 = vmatpush2.xpose.msra.mxu0 0.0
    %555 = vmatprep.subr.mxu0 0.0
    %556 = vmatpush2.xpose.msra.mxu0 0.0
    %557 = vmatprep.subr.mxu0 0.0
    %558 = vmatpush2.xpose.msra.mxu0 0.0
    %559 = vmatprep.subr.mxu0 0.0
    %560 = vmatpush2.xpose.msra.mxu0 0.0
    %561 = vmatprep.subr.mxu0 0.0
    %562 = vmatpush2.xpose.msra.mxu0 0.0
    %563 = vmatprep.subr.mxu0 0.0
    %564 = vmatpush2.xpose.msra.mxu0 0.0
    %565 = vmatprep.subr.mxu0 0.0
    %566 = vmatpush2.xpose.msra.mxu0 0.0
    %567 = vmatprep.subr.mxu0 0.0
    %568 = vmatpush2.xpose.msra.mxu0 0.0
    %569 = vmatprep.subr.mxu0 0.0
    %570 = vmatpush2.xpose.msra.mxu0 0.0
    %571 = vmatprep.subr.mxu0 0.0
    %572 = vmatpush2.xpose.msra.mxu0 0.0
    %573 = vmatprep.subr.mxu0 0.0
    %574 = vmatpush2.xpose.msra.mxu0 0.0
    %575 = vmatprep.subr.mxu0 0.0
    %576 = vmatpush2.xpose.msra.mxu0 0.0
    %577 = vmatprep.subr.mxu0 0.0
    %578 = vmatpush2.xpose.msra.mxu0 0.0
    %579 = vmatprep.subr.mxu0 0.0
    %580 = vmatpush2.xpose.msra.mxu0 0.0
    %581 = vmatprep.subr.mxu0 0.0
    %582 = vmatpush2.xpose.msra.mxu0 0.0
    %583 = vmatprep.subr.mxu0 0.0
    %584 = vmatpush2.xpose.msra.mxu0 0.0
    %585 = vmatprep.mubr.f32.mxu0 0.0
    %586 = vmatmul.mubr.f32.gmra.mxu0 %v519
    %v587 = vpop.f32.mrf.mxu0
    %v588 = vadd.f32 0.0, %v587
    %v589 = vpop.f32.mrf.mxu0
    %590 = vdwg.mxu0
    %v592 = vsel %vm82, %v517, 0
    %594 = vmatprep.subr.mxu0 0.0
    %595 = vmatpush1.xpose.msra.mxu0 0.0
    %596 = vmatprep.subr.mxu0 0.0
    %597 = vmatpush1.xpose.msra.mxu0 0.0
    %598 = vmatprep.subr.mxu0 0.0
    %599 = vmatpush1.xpose.msra.mxu0 0.0
    %600 = vmatprep.subr.mxu0 0.0
    %601 = vmatpush1.xpose.msra.mxu0 0.0
    %602 = vmatprep.subr.mxu0 0.0
    %603 = vmatpush1.xpose.msra.mxu0 0.0
    %604 = vmatprep.subr.mxu0 0.0
    %605 = vmatpush1.xpose.msra.mxu0 0.0
    %606 = vmatprep.subr.mxu0 0.0
    %607 = vmatpush1.xpose.msra.mxu0 0.0
    %608 = vmatprep.subr.mxu0 0.0
    %609 = vmatpush1.xpose.msra.mxu0 0.0
    %610 = vmatprep.subr.mxu0 0.0
    %611 = vmatpush1.xpose.msra.mxu0 0.0
    %612 = vmatprep.subr.mxu0 0.0
    %613 = vmatpush1.xpose.msra.mxu0 0.0
    %614 = vmatprep.subr.mxu0 0.0
    %615 = vmatpush1.xpose.msra.mxu0 0.0
    %616 = vmatprep.subr.mxu0 0.0
    %617 = vmatpush1.xpose.msra.mxu0 0.0
    %618 = vmatprep.subr.mxu0 0.0
    %619 = vmatpush1.xpose.msra.mxu0 0.0
    %620 = vmatprep.subr.mxu0 0.0
    %621 = vmatpush1.xpose.msra.mxu0 0.0
    %622 = vmatprep.subr.mxu0 0.0
    %623 = vmatpush1.xpose.msra.mxu0 0.0
    %624 = vmatprep.subr.mxu0 0.0
    %625 = vmatpush1.xpose.msra.mxu0 %v413
    %626 = vmatprep.subr.mxu0 0.0
    %627 = vmatpush2.xpose.msra.mxu0 0.0
    %628 = vmatprep.subr.mxu0 0.0
    %629 = vmatpush2.xpose.msra.mxu0 0.0
    %630 = vmatprep.subr.mxu0 0.0
    %631 = vmatpush2.xpose.msra.mxu0 0.0
    %632 = vmatprep.subr.mxu0 0.0
    %633 = vmatpush2.xpose.msra.mxu0 0.0
    %634 = vmatprep.subr.mxu0 0.0
    %635 = vmatpush2.xpose.msra.mxu0 0.0
    %636 = vmatprep.subr.mxu0 0.0
    %637 = vmatpush2.xpose.msra.mxu0 0.0
    %638 = vmatprep.subr.mxu0 0.0
    %639 = vmatpush2.xpose.msra.mxu0 0.0
    %640 = vmatprep.subr.mxu0 0.0
    %641 = vmatpush2.xpose.msra.mxu0 0.0
    %642 = vmatprep.subr.mxu0 0.0
    %643 = vmatpush2.xpose.msra.mxu0 0.0
    %644 = vmatprep.subr.mxu0 0.0
    %645 = vmatpush2.xpose.msra.mxu0 0.0
    %646 = vmatprep.subr.mxu0 0.0
    %647 = vmatpush2.xpose.msra.mxu0 0.0
    %648 = vmatprep.subr.mxu0 0.0
    %649 = vmatpush2.xpose.msra.mxu0 0.0
    %650 = vmatprep.subr.mxu0 0.0
    %651 = vmatpush2.xpose.msra.mxu0 0.0
    %652 = vmatprep.subr.mxu0 0.0
    %653 = vmatpush2.xpose.msra.mxu0 0.0
    %654 = vmatprep.subr.mxu0 0.0
    %655 = vmatpush2.xpose.msra.mxu0 0.0
    %656 = vmatprep.subr.mxu0 0.0
    %657 = vmatpush2.xpose.msra.mxu0 0.0
    %658 = vmatprep.mubr.f32.mxu0 0.0
    %659 = vmatmul.mubr.f32.gmra.mxu0 %v592
    %v660 = vpop.f32.mrf.mxu0
    %v661 = vadd.f32 0.0, %v660
    %v662 = vpop.f32.mrf.mxu0
    %663 = vdwg.mxu0
    %v664 = vmul.f32 %v588, 0.17677669
    %v665 = vmul.f32 %v661, 0.17677669
    %v666 = vsel %vm487, %v664, -inf
    %667 = vmax.xlane.f32.xlu0 %v666
    %v668 = vpop.xlane.xlu0 %667
    %v669 = vsel %vm487, %v665, -inf
    %670 = vmax.xlane.f32.xlu0 %v669
    %v671 = vpop.xlane.xlu0 %670
    %v672 = vsub.f32 %v664, %v668
    %v673 = vsub.f32 %v665, %v671
    %v674 = vmul.f32 %v672, 1.442695
    %v675 = vpow.pop %v674
    %v676 = vmul.f32 %v673, 1.442695
    %v677 = vpow.pop %v676
    %v678 = vsel %vm487, %v675, 0.0
    %679 = vadd.xlane.f32.xlu0 %v678
    %v680 = vpop.xlane.xlu0 %679
    %v681 = vsel %vm487, %v677, 0.0
    %682 = vadd.xlane.f32.xlu0 %v681
    %v683 = vpop.xlane.xlu0 %682
    %v684 = vrcp.pop %v680
    %v685 = vrcp.pop %v683
    %v686 = vmul.f32 %v675, %v684
    %v687 = vmul.f32 %v677, %v685
    %689 = vrot.lane.b32.xlu0 %v184, 64
    %v690 = vpop.permute.xlu0 %689
    %v692 = vmul.f32 %v319, %v690
    %v693 = vmul.f32 %v324, %v690
    %695 = vrot.lane.b32.xlu0 %v692, 64
    %v696 = vpop.permute.xlu0 %695
    %v699 = vsel %vm487, %v686, 0
    %701 = vmatprep.subr.mxu0 0.0
    %702 = vmatpush1.msra.mxu0 0.0
    %703 = vmatprep.subr.mxu0 0.0
    %704 = vmatpush1.msra.mxu0 0.0
    %705 = vmatprep.subr.mxu0 0.0
    %706 = vmatpush1.msra.mxu0 0.0
    %707 = vmatprep.subr.mxu0 0.0
    %708 = vmatpush1.msra.mxu0 0.0
    %709 = vmatprep.subr.mxu0 0.0
    %710 = vmatpush1.msra.mxu0 0.0
    %711 = vmatprep.subr.mxu0 0.0
    %712 = vmatpush1.msra.mxu0 0.0
    %713 = vmatprep.subr.mxu0 0.0
    %714 = vmatpush1.msra.mxu0 0.0
    %715 = vmatprep.subr.mxu0 0.0
    %716 = vmatpush1.msra.mxu0 0.0
    %717 = vmatprep.subr.mxu0 0.0
    %718 = vmatpush1.msra.mxu0 0.0
    %719 = vmatprep.subr.mxu0 0.0
    %720 = vmatpush1.msra.mxu0 0.0
    %721 = vmatprep.subr.mxu0 0.0
    %722 = vmatpush1.msra.mxu0 0.0
    %723 = vmatprep.subr.mxu0 0.0
    %724 = vmatpush1.msra.mxu0 0.0
    %725 = vmatprep.subr.mxu0 0.0
    %726 = vmatpush1.msra.mxu0 0.0
    %727 = vmatprep.subr.mxu0 0.0
    %728 = vmatpush1.msra.mxu0 0.0
    %729 = vmatprep.subr.mxu0 0.0
    %730 = vmatpush1.msra.mxu0 0.0
    %731 = vmatprep.subr.mxu0 0.0
    %732 = vmatpush1.msra.mxu0 %v696
    %733 = vmatprep.subr.mxu0 0.0
    %734 = vmatpush2.msra.mxu0 0.0
    %735 = vmatprep.subr.mxu0 0.0
    %736 = vmatpush2.msra.mxu0 0.0
    %737 = vmatprep.subr.mxu0 0.0
    %738 = vmatpush2.msra.mxu0 0.0
    %739 = vmatprep.subr.mxu0 0.0
    %740 = vmatpush2.msra.mxu0 0.0
    %741 = vmatprep.subr.mxu0 0.0
    %742 = vmatpush2.msra.mxu0 0.0
    %743 = vmatprep.subr.mxu0 0.0
    %744 = vmatpush2.msra.mxu0 0.0
    %745 = vmatprep.subr.mxu0 0.0
    %746 = vmatpush2.msra.mxu0 0.0
    %747 = vmatprep.subr.mxu0 0.0
    %748 = vmatpush2.msra.mxu0 0.0
    %749 = vmatprep.subr.mxu0 0.0
    %750 = vmatpush2.msra.mxu0 0.0
    %751 = vmatprep.subr.mxu0 0.0
    %752 = vmatpush2.msra.mxu0 0.0
    %753 = vmatprep.subr.mxu0 0.0
    %754 = vmatpush2.msra.mxu0 0.0
    %755 = vmatprep.subr.mxu0 0.0
    %756 = vmatpush2.msra.mxu0 0.0
    %757 = vmatprep.subr.mxu0 0.0
    %758 = vmatpush2.msra.mxu0 0.0
    %759 = vmatprep.subr.mxu0 0.0
    %760 = vmatpush2.msra.mxu0 0.0
    %761 = vmatprep.subr.mxu0 0.0
    %762 = vmatpush2.msra.mxu0 0.0
    %763 = vmatprep.subr.mxu0 0.0
    %764 = vmatpush2.msra.mxu0 0.0
    %765 = vmatprep.mubr.f32.mxu0 0.0
    %766 = vmatmul.mubr.f32.gmra.mxu0 %v699
    %v767 = vpop.f32.mrf.mxu0
    %v768 = vadd.f32 0.0, %v767
    %v769 = vpop.f32.mrf.mxu0
    %770 = vdwg.mxu0
    %772 = vrot.lane.b32.xlu0 %v693, 64
    %v773 = vpop.permute.xlu0 %772
    %v776 = vsel %vm487, %v687, 0
    %778 = vmatprep.subr.mxu0 0.0
    %779 = vmatpush1.msra.mxu0 0.0
    %780 = vmatprep.subr.mxu0 0.0
    %781 = vmatpush1.msra.mxu0 0.0
    %782 = vmatprep.subr.mxu0 0.0
    %783 = vmatpush1.msra.mxu0 0.0
    %784 = vmatprep.subr.mxu0 0.0
    %785 = vmatpush1.msra.mxu0 0.0
    %786 = vmatprep.subr.mxu0 0.0
    %787 = vmatpush1.msra.mxu0 0.0
    %788 = vmatprep.subr.mxu0 0.0
    %789 = vmatpush1.msra.mxu0 0.0
    %790 = vmatprep.subr.mxu0 0.0
    %791 = vmatpush1.msra.mxu0 0.0
    %792 = vmatprep.subr.mxu0 0.0
    %793 = vmatpush1.msra.mxu0 0.0
    %794 = vmatprep.subr.mxu0 0.0
    %795 = vmatpush1.msra.mxu0 0.0
    %796 = vmatprep.subr.mxu0 0.0
    %797 = vmatpush1.msra.mxu0 0.0
    %798 = vmatprep.subr.mxu0 0.0
    %799 = vmatpush1.msra.mxu0 0.0
    %800 = vmatprep.subr.mxu0 0.0
    %801 = vmatpush1.msra.mxu0 0.0
    %802 = vmatprep.subr.mxu0 0.0
    %803 = vmatpush1.msra.mxu0 0.0
    %804 = vmatprep.subr.mxu0 0.0
    %805 = vmatpush1.msra.mxu0 0.0
    %806 = vmatprep.subr.mxu0 0.0
    %807 = vmatpush1.msra.mxu0 0.0
    %808 = vmatprep.subr.mxu0 0.0
    %809 = vmatpush1.msra.mxu0 %v773
    %810 = vmatprep.subr.mxu0 0.0
    %811 = vmatpush2.msra.mxu0 0.0
    %812 = vmatprep.subr.mxu0 0.0
    %813 = vmatpush2.msra.mxu0 0.0
    %814 = vmatprep.subr.mxu0 0.0
    %815 = vmatpush2.msra.mxu0 0.0
    %816 = vmatprep.subr.mxu0 0.0
    %817 = vmatpush2.msra.mxu0 0.0
    %818 = vmatprep.subr.mxu0 0.0
    %819 = vmatpush2.msra.mxu0 0.0
    %820 = vmatprep.subr.mxu0 0.0
    %821 = vmatpush2.msra.mxu0 0.0
    %822 = vmatprep.subr.mxu0 0.0
    %823 = vmatpush2.msra.mxu0 0.0
    %824 = vmatprep.subr.mxu0 0.0
    %825 = vmatpush2.msra.mxu0 0.0
    %826 = vmatprep.subr.mxu0 0.0
    %827 = vmatpush2.msra.mxu0 0.0
    %828 = vmatprep.subr.mxu0 0.0
    %829 = vmatpush2.msra.mxu0 0.0
    %830 = vmatprep.subr.mxu0 0.0
    %831 = vmatpush2.msra.mxu0 0.0
    %832 = vmatprep.subr.mxu0 0.0
    %833 = vmatpush2.msra.mxu0 0.0
    %834 = vmatprep.subr.mxu0 0.0
    %835 = vmatpush2.msra.mxu0 0.0
    %836 = vmatprep.subr.mxu0 0.0
    %837 = vmatpush2.msra.mxu0 0.0
    %838 = vmatprep.subr.mxu0 0.0
    %839 = vmatpush2.msra.mxu0 0.0
    %840 = vmatprep.subr.mxu0 0.0
    %841 = vmatpush2.msra.mxu0 0.0
    %842 = vmatprep.mubr.f32.mxu0 0.0
    %843 = vmatmul.mubr.f32.gmra.mxu0 %v776
    %v844 = vpop.f32.mrf.mxu0
    %v845 = vadd.f32 0.0, %v844
    %v846 = vpop.f32.mrf.mxu0
    %847 = vdwg.mxu0
    %849 = vrot.lane.b32.xlu0 %v514, 64
    %v850 = vpop.permute.xlu0 %849
    %v853 = vsel %vm487, %v508, 0
    %855 = vmatprep.subr.mxu0 0.0
    %856 = vmatpush1.msra.mxu0 0.0
    %857 = vmatprep.subr.mxu0 0.0
    %858 = vmatpush1.msra.mxu0 0.0
    %859 = vmatprep.subr.mxu0 0.0
    %860 = vmatpush1.msra.mxu0 0.0
    %861 = vmatprep.subr.mxu0 0.0
    %862 = vmatpush1.msra.mxu0 0.0
    %863 = vmatprep.subr.mxu0 0.0
    %864 = vmatpush1.msra.mxu0 0.0
    %865 = vmatprep.subr.mxu0 0.0
    %866 = vmatpush1.msra.mxu0 0.0
    %867 = vmatprep.subr.mxu0 0.0
    %868 = vmatpush1.msra.mxu0 0.0
    %869 = vmatprep.subr.mxu0 0.0
    %870 = vmatpush1.msra.mxu0 0.0
    %871 = vmatprep.subr.mxu0 0.0
    %872 = vmatpush1.msra.mxu0 0.0
    %873 = vmatprep.subr.mxu0 0.0
    %874 = vmatpush1.msra.mxu0 0.0
    %875 = vmatprep.subr.mxu0 0.0
    %876 = vmatpush1.msra.mxu0 0.0
    %877 = vmatprep.subr.mxu0 0.0
    %878 = vmatpush1.msra.mxu0 0.0
    %879 = vmatprep.subr.mxu0 0.0
    %880 = vmatpush1.msra.mxu0 0.0
    %881 = vmatprep.subr.mxu0 0.0
    %882 = vmatpush1.msra.mxu0 0.0
    %883 = vmatprep.subr.mxu0 0.0
    %884 = vmatpush1.msra.mxu0 0.0
    %885 = vmatprep.subr.mxu0 0.0
    %886 = vmatpush1.msra.mxu0 %v850
    %887 = vmatprep.subr.mxu0 0.0
    %888 = vmatpush2.msra.mxu0 0.0
    %889 = vmatprep.subr.mxu0 0.0
    %890 = vmatpush2.msra.mxu0 0.0
    %891 = vmatprep.subr.mxu0 0.0
    %892 = vmatpush2.msra.mxu0 0.0
    %893 = vmatprep.subr.mxu0 0.0
    %894 = vmatpush2.msra.mxu0 0.0
    %895 = vmatprep.subr.mxu0 0.0
    %896 = vmatpush2.msra.mxu0 0.0
    %897 = vmatprep.subr.mxu0 0.0
    %898 = vmatpush2.msra.mxu0 0.0
    %899 = vmatprep.subr.mxu0 0.0
    %900 = vmatpush2.msra.mxu0 0.0
    %901 = vmatprep.subr.mxu0 0.0
    %902 = vmatpush2.msra.mxu0 0.0
    %903 = vmatprep.subr.mxu0 0.0
    %904 = vmatpush2.msra.mxu0 0.0
    %905 = vmatprep.subr.mxu0 0.0
    %906 = vmatpush2.msra.mxu0 0.0
    %907 = vmatprep.subr.mxu0 0.0
    %908 = vmatpush2.msra.mxu0 0.0
    %909 = vmatprep.subr.mxu0 0.0
    %910 = vmatpush2.msra.mxu0 0.0
    %911 = vmatprep.subr.mxu0 0.0
    %912 = vmatpush2.msra.mxu0 0.0
    %913 = vmatprep.subr.mxu0 0.0
    %914 = vmatpush2.msra.mxu0 0.0
    %915 = vmatprep.subr.mxu0 0.0
    %916 = vmatpush2.msra.mxu0 0.0
    %917 = vmatprep.subr.mxu0 0.0
    %918 = vmatpush2.msra.mxu0 0.0
    %919 = vmatprep.mubr.f32.mxu0 0.0
    %920 = vmatmul.mubr.f32.gmra.mxu0 %v853
    %v921 = vpop.f32.mrf.mxu0
    %v922 = vadd.f32 %v768, %v921
    %v923 = vpop.f32.mrf.mxu0
    %924 = vdwg.mxu0
    %926 = vrot.lane.b32.xlu0 %v515, 64
    %v927 = vpop.permute.xlu0 %926
    %v930 = vsel %vm487, %v509, 0
    %932 = vmatprep.subr.mxu0 0.0
    %933 = vmatpush1.msra.mxu0 0.0
    %934 = vmatprep.subr.mxu0 0.0
    %935 = vmatpush1.msra.mxu0 0.0
    %936 = vmatprep.subr.mxu0 0.0
    %937 = vmatpush1.msra.mxu0 0.0
    %938 = vmatprep.subr.mxu0 0.0
    %939 = vmatpush1.msra.mxu0 0.0
    %940 = vmatprep.subr.mxu0 0.0
    %941 = vmatpush1.msra.mxu0 0.0
    %942 = vmatprep.subr.mxu0 0.0
    %943 = vmatpush1.msra.mxu0 0.0
    %944 = vmatprep.subr.mxu0 0.0
    %945 = vmatpush1.msra.mxu0 0.0
    %946 = vmatprep.subr.mxu0 0.0
    %947 = vmatpush1.msra.mxu0 0.0
    %948 = vmatprep.subr.mxu0 0.0
    %949 = vmatpush1.msra.mxu0 0.0
    %950 = vmatprep.subr.mxu0 0.0
    %951 = vmatpush1.msra.mxu0 0.0
    %952 = vmatprep.subr.mxu0 0.0
    %953 = vmatpush1.msra.mxu0 0.0
    %954 = vmatprep.subr.mxu0 0.0
    %955 = vmatpush1.msra.mxu0 0.0
    %956 = vmatprep.subr.mxu0 0.0
    %957 = vmatpush1.msra.mxu0 0.0
    %958 = vmatprep.subr.mxu0 0.0
    %959 = vmatpush1.msra.mxu0 0.0
    %960 = vmatprep.subr.mxu0 0.0
    %961 = vmatpush1.msra.mxu0 0.0
    %962 = vmatprep.subr.mxu0 0.0
    %963 = vmatpush1.msra.mxu0 %v927
    %964 = vmatprep.subr.mxu0 0.0
    %965 = vmatpush2.msra.mxu0 0.0
    %966 = vmatprep.subr.mxu0 0.0
    %967 = vmatpush2.msra.mxu0 0.0
    %968 = vmatprep.subr.mxu0 0.0
    %969 = vmatpush2.msra.mxu0 0.0
    %970 = vmatprep.subr.mxu0 0.0
    %971 = vmatpush2.msra.mxu0 0.0
    %972 = vmatprep.subr.mxu0 0.0
    %973 = vmatpush2.msra.mxu0 0.0
    %974 = vmatprep.subr.mxu0 0.0
    %975 = vmatpush2.msra.mxu0 0.0
    %976 = vmatprep.subr.mxu0 0.0
    %977 = vmatpush2.msra.mxu0 0.0
    %978 = vmatprep.subr.mxu0 0.0
    %979 = vmatpush2.msra.mxu0 0.0
    %980 = vmatprep.subr.mxu0 0.0
    %981 = vmatpush2.msra.mxu0 0.0
    %982 = vmatprep.subr.mxu0 0.0
    %983 = vmatpush2.msra.mxu0 0.0
    %984 = vmatprep.subr.mxu0 0.0
    %985 = vmatpush2.msra.mxu0 0.0
    %986 = vmatprep.subr.mxu0 0.0
    %987 = vmatpush2.msra.mxu0 0.0
    %988 = vmatprep.subr.mxu0 0.0
    %989 = vmatpush2.msra.mxu0 0.0
    %990 = vmatprep.subr.mxu0 0.0
    %991 = vmatpush2.msra.mxu0 0.0
    %992 = vmatprep.subr.mxu0 0.0
    %993 = vmatpush2.msra.mxu0 0.0
    %994 = vmatprep.subr.mxu0 0.0
    %995 = vmatpush2.msra.mxu0 0.0
    %996 = vmatprep.mubr.f32.mxu0 0.0
    %997 = vmatmul.mubr.f32.gmra.mxu0 %v930
    %v998 = vpop.f32.mrf.mxu0
    %v999 = vadd.f32 %v845, %v998
    %v1000 = vpop.f32.mrf.mxu0
    %1001 = vdwg.mxu0
    %v1002 = vmul.f32 %v319, %v189
    %v1003 = vmul.f32 %v324, %v189
    %v1005 = vsel %vm82, %v1002, 0
    %1007 = vmatprep.subr.mxu0 0.0
    %1008 = vmatpush1.xpose.msra.mxu0 0.0
    %1009 = vmatprep.subr.mxu0 0.0
    %1010 = vmatpush1.xpose.msra.mxu0 0.0
    %1011 = vmatprep.subr.mxu0 0.0
    %1012 = vmatpush1.xpose.msra.mxu0 0.0
    %1013 = vmatprep.subr.mxu0 0.0
    %1014 = vmatpush1.xpose.msra.mxu0 0.0
    %1015 = vmatprep.subr.mxu0 0.0
    %1016 = vmatpush1.xpose.msra.mxu0 0.0
    %1017 = vmatprep.subr.mxu0 0.0
    %1018 = vmatpush1.xpose.msra.mxu0 0.0
    %1019 = vmatprep.subr.mxu0 0.0
    %1020 = vmatpush1.xpose.msra.mxu0 0.0
    %1021 = vmatprep.subr.mxu0 0.0
    %1022 = vmatpush1.xpose.msra.mxu0 0.0
    %1023 = vmatprep.subr.mxu0 0.0
    %1024 = vmatpush1.xpose.msra.mxu0 0.0
    %1025 = vmatprep.subr.mxu0 0.0
    %1026 = vmatpush1.xpose.msra.mxu0 0.0
    %1027 = vmatprep.subr.mxu0 0.0
    %1028 = vmatpush1.xpose.msra.mxu0 0.0
    %1029 = vmatprep.subr.mxu0 0.0
    %1030 = vmatpush1.xpose.msra.mxu0 0.0
    %1031 = vmatprep.subr.mxu0 0.0
    %1032 = vmatpush1.xpose.msra.mxu0 0.0
    %1033 = vmatprep.subr.mxu0 0.0
    %1034 = vmatpush1.xpose.msra.mxu0 0.0
    %1035 = vmatprep.subr.mxu0 0.0
    %1036 = vmatpush1.xpose.msra.mxu0 0.0
    %1037 = vmatprep.subr.mxu0 0.0
    %1038 = vmatpush1.xpose.msra.mxu0 %v335
    %1039 = vmatprep.subr.mxu0 0.0
    %1040 = vmatpush2.xpose.msra.mxu0 0.0
    %1041 = vmatprep.subr.mxu0 0.0
    %1042 = vmatpush2.xpose.msra.mxu0 0.0
    %1043 = vmatprep.subr.mxu0 0.0
    %1044 = vmatpush2.xpose.msra.mxu0 0.0
    %1045 = vmatprep.subr.mxu0 0.0
    %1046 = vmatpush2.xpose.msra.mxu0 0.0
    %1047 = vmatprep.subr.mxu0 0.0
    %1048 = vmatpush2.xpose.msra.mxu0 0.0
    %1049 = vmatprep.subr.mxu0 0.0
    %1050 = vmatpush2.xpose.msra.mxu0 0.0
    %1051 = vmatprep.subr.mxu0 0.0
    %1052 = vmatpush2.xpose.msra.mxu0 0.0
    %1053 = vmatprep.subr.mxu0 0.0
    %1054 = vmatpush2.xpose.msra.mxu0 0.0
    %1055 = vmatprep.subr.mxu0 0.0
    %1056 = vmatpush2.xpose.msra.mxu0 0.0
    %1057 = vmatprep.subr.mxu0 0.0
    %1058 = vmatpush2.xpose.msra.mxu0 0.0
    %1059 = vmatprep.subr.mxu0 0.0
    %1060 = vmatpush2.xpose.msra.mxu0 0.0
    %1061 = vmatprep.subr.mxu0 0.0
    %1062 = vmatpush2.xpose.msra.mxu0 0.0
    %1063 = vmatprep.subr.mxu0 0.0
    %1064 = vmatpush2.xpose.msra.mxu0 0.0
    %1065 = vmatprep.subr.mxu0 0.0
    %1066 = vmatpush2.xpose.msra.mxu0 0.0
    %1067 = vmatprep.subr.mxu0 0.0
    %1068 = vmatpush2.xpose.msra.mxu0 0.0
    %1069 = vmatprep.subr.mxu0 0.0
    %1070 = vmatpush2.xpose.msra.mxu0 0.0
    %1071 = vmatprep.mubr.f32.mxu0 0.0
    %1072 = vmatmul.mubr.f32.gmra.mxu0 %v1005
    %v1073 = vpop.f32.mrf.mxu0
    %v1074 = vadd.f32 0.0, %v1073
    %v1075 = vpop.f32.mrf.mxu0
    %1076 = vdwg.mxu0
    %v1078 = vsel %vm82, %v1003, 0
    %1080 = vmatprep.subr.mxu0 0.0
    %1081 = vmatpush1.xpose.msra.mxu0 0.0
    %1082 = vmatprep.subr.mxu0 0.0
    %1083 = vmatpush1.xpose.msra.mxu0 0.0
    %1084 = vmatprep.subr.mxu0 0.0
    %1085 = vmatpush1.xpose.msra.mxu0 0.0
    %1086 = vmatprep.subr.mxu0 0.0
    %1087 = vmatpush1.xpose.msra.mxu0 0.0
    %1088 = vmatprep.subr.mxu0 0.0
    %1089 = vmatpush1.xpose.msra.mxu0 0.0
    %1090 = vmatprep.subr.mxu0 0.0
    %1091 = vmatpush1.xpose.msra.mxu0 0.0
    %1092 = vmatprep.subr.mxu0 0.0
    %1093 = vmatpush1.xpose.msra.mxu0 0.0
    %1094 = vmatprep.subr.mxu0 0.0
    %1095 = vmatpush1.xpose.msra.mxu0 0.0
    %1096 = vmatprep.subr.mxu0 0.0
    %1097 = vmatpush1.xpose.msra.mxu0 0.0
    %1098 = vmatprep.subr.mxu0 0.0
    %1099 = vmatpush1.xpose.msra.mxu0 0.0
    %1100 = vmatprep.subr.mxu0 0.0
    %1101 = vmatpush1.xpose.msra.mxu0 0.0
    %1102 = vmatprep.subr.mxu0 0.0
    %1103 = vmatpush1.xpose.msra.mxu0 0.0
    %1104 = vmatprep.subr.mxu0 0.0
    %1105 = vmatpush1.xpose.msra.mxu0 0.0
    %1106 = vmatprep.subr.mxu0 0.0
    %1107 = vmatpush1.xpose.msra.mxu0 0.0
    %1108 = vmatprep.subr.mxu0 0.0
    %1109 = vmatpush1.xpose.msra.mxu0 0.0
    %1110 = vmatprep.subr.mxu0 0.0
    %1111 = vmatpush1.xpose.msra.mxu0 %v413
    %1112 = vmatprep.subr.mxu0 0.0
    %1113 = vmatpush2.xpose.msra.mxu0 0.0
    %1114 = vmatprep.subr.mxu0 0.0
    %1115 = vmatpush2.xpose.msra.mxu0 0.0
    %1116 = vmatprep.subr.mxu0 0.0
    %1117 = vmatpush2.xpose.msra.mxu0 0.0
    %1118 = vmatprep.subr.mxu0 0.0
    %1119 = vmatpush2.xpose.msra.mxu0 0.0
    %1120 = vmatprep.subr.mxu0 0.0
    %1121 = vmatpush2.xpose.msra.mxu0 0.0
    %1122 = vmatprep.subr.mxu0 0.0
    %1123 = vmatpush2.xpose.msra.mxu0 0.0
    %1124 = vmatprep.subr.mxu0 0.0
    %1125 = vmatpush2.xpose.msra.mxu0 0.0
    %1126 = vmatprep.subr.mxu0 0.0
    %1127 = vmatpush2.xpose.msra.mxu0 0.0
    %1128 = vmatprep.subr.mxu0 0.0
    %1129 = vmatpush2.xpose.msra.mxu0 0.0
    %1130 = vmatprep.subr.mxu0 0.0
    %1131 = vmatpush2.xpose.msra.mxu0 0.0
    %1132 = vmatprep.subr.mxu0 0.0
    %1133 = vmatpush2.xpose.msra.mxu0 0.0
    %1134 = vmatprep.subr.mxu0 0.0
    %1135 = vmatpush2.xpose.msra.mxu0 0.0
    %1136 = vmatprep.subr.mxu0 0.0
    %1137 = vmatpush2.xpose.msra.mxu0 0.0
    %1138 = vmatprep.subr.mxu0 0.0
    %1139 = vmatpush2.xpose.msra.mxu0 0.0
    %1140 = vmatprep.subr.mxu0 0.0
    %1141 = vmatpush2.xpose.msra.mxu0 0.0
    %1142 = vmatprep.subr.mxu0 0.0
    %1143 = vmatpush2.xpose.msra.mxu0 0.0
    %1144 = vmatprep.mubr.f32.mxu0 0.0
    %1145 = vmatmul.mubr.f32.gmra.mxu0 %v1078
    %v1146 = vpop.f32.mrf.mxu0
    %v1147 = vadd.f32 0.0, %v1146
    %v1148 = vpop.f32.mrf.mxu0
    %1149 = vdwg.mxu0
    %v1150 = vmul.f32 %v1074, 0.17677669
    %v1151 = vmul.f32 %v1147, 0.17677669
    %v1152 = vsel %vm487, %v1150, -inf
    %1153 = vmax.xlane.f32.xlu0 %v1152
    %v1154 = vpop.xlane.xlu0 %1153
    %v1155 = vsel %vm487, %v1151, -inf
    %1156 = vmax.xlane.f32.xlu0 %v1155
    %v1157 = vpop.xlane.xlu0 %1156
    %v1158 = vsub.f32 %v1150, %v1154
    %v1159 = vsub.f32 %v1151, %v1157
    %v1160 = vmul.f32 %v1158, 1.442695
    %v1161 = vpow.pop %v1160
    %v1162 = vmul.f32 %v1159, 1.442695
    %v1163 = vpow.pop %v1162
    %v1164 = vsel %vm487, %v1161, 0.0
    %1165 = vadd.xlane.f32.xlu0 %v1164
    %v1166 = vpop.xlane.xlu0 %1165
    %v1167 = vsel %vm487, %v1163, 0.0
    %1168 = vadd.xlane.f32.xlu0 %v1167
    %v1169 = vpop.xlane.xlu0 %1168
    %v1170 = vrcp.pop %v1166
    %v1171 = vrcp.pop %v1169
    %v1172 = vmul.f32 %v1161, %v1170
    %v1173 = vmul.f32 %v1163, %v1171
    %1175 = vrot.lane.b32.xlu0 %v189, 64
    %v1176 = vpop.permute.xlu0 %1175
    %v1178 = vmul.f32 %v319, %v1176
    %v1179 = vmul.f32 %v324, %v1176
    %1181 = vrot.lane.b32.xlu0 %v1178, 64
    %v1182 = vpop.permute.xlu0 %1181
    %v1185 = vsel %vm487, %v1172, 0
    %1187 = vmatprep.subr.mxu0 0.0
    %1188 = vmatpush1.msra.mxu0 0.0
    %1189 = vmatprep.subr.mxu0 0.0
    %1190 = vmatpush1.msra.mxu0 0.0
    %1191 = vmatprep.subr.mxu0 0.0
    %1192 = vmatpush1.msra.mxu0 0.0
    %1193 = vmatprep.subr.mxu0 0.0
    %1194 = vmatpush1.msra.mxu0 0.0
    %1195 = vmatprep.subr.mxu0 0.0
    %1196 = vmatpush1.msra.mxu0 0.0
    %1197 = vmatprep.subr.mxu0 0.0
    %1198 = vmatpush1.msra.mxu0 0.0
    %1199 = vmatprep.subr.mxu0 0.0
    %1200 = vmatpush1.msra.mxu0 0.0
    %1201 = vmatprep.subr.mxu0 0.0
    %1202 = vmatpush1.msra.mxu0 0.0
    %1203 = vmatprep.subr.mxu0 0.0
    %1204 = vmatpush1.msra.mxu0 0.0
    %1205 = vmatprep.subr.mxu0 0.0
    %1206 = vmatpush1.msra.mxu0 0.0
    %1207 = vmatprep.subr.mxu0 0.0
    %1208 = vmatpush1.msra.mxu0 0.0
    %1209 = vmatprep.subr.mxu0 0.0
    %1210 = vmatpush1.msra.mxu0 0.0
    %1211 = vmatprep.subr.mxu0 0.0
    %1212 = vmatpush1.msra.mxu0 0.0
    %1213 = vmatprep.subr.mxu0 0.0
    %1214 = vmatpush1.msra.mxu0 0.0
    %1215 = vmatprep.subr.mxu0 0.0
    %1216 = vmatpush1.msra.mxu0 0.0
    %1217 = vmatprep.subr.mxu0 0.0
    %1218 = vmatpush1.msra.mxu0 %v1182
    %1219 = vmatprep.subr.mxu0 0.0
    %1220 = vmatpush2.msra.mxu0 0.0
    %1221 = vmatprep.subr.mxu0 0.0
    %1222 = vmatpush2.msra.mxu0 0.0
    %1223 = vmatprep.subr.mxu0 0.0
    %1224 = vmatpush2.msra.mxu0 0.0
    %1225 = vmatprep.subr.mxu0 0.0
    %1226 = vmatpush2.msra.mxu0 0.0
    %1227 = vmatprep.subr.mxu0 0.0
    %1228 = vmatpush2.msra.mxu0 0.0
    %1229 = vmatprep.subr.mxu0 0.0
    %1230 = vmatpush2.msra.mxu0 0.0
    %1231 = vmatprep.subr.mxu0 0.0
    %1232 = vmatpush2.msra.mxu0 0.0
    %1233 = vmatprep.subr.mxu0 0.0
    %1234 = vmatpush2.msra.mxu0 0.0
    %1235 = vmatprep.subr.mxu0 0.0
    %1236 = vmatpush2.msra.mxu0 0.0
    %1237 = vmatprep.subr.mxu0 0.0
    %1238 = vmatpush2.msra.mxu0 0.0
    %1239 = vmatprep.subr.mxu0 0.0
    %1240 = vmatpush2.msra.mxu0 0.0
    %1241 = vmatprep.subr.mxu0 0.0
    %1242 = vmatpush2.msra.mxu0 0.0
    %1243 = vmatprep.subr.mxu0 0.0
    %1244 = vmatpush2.msra.mxu0 0.0
    %1245 = vmatprep.subr.mxu0 0.0
    %1246 = vmatpush2.msra.mxu0 0.0
    %1247 = vmatprep.subr.mxu0 0.0
    %1248 = vmatpush2.msra.mxu0 0.0
    %1249 = vmatprep.subr.mxu0 0.0
    %1250 = vmatpush2.msra.mxu0 0.0
    %1251 = vmatprep.mubr.f32.mxu0 0.0
    %1252 = vmatmul.mubr.f32.gmra.mxu0 %v1185
    %v1253 = vpop.f32.mrf.mxu0
    %v1254 = vadd.f32 0.0, %v1253
    %v1255 = vpop.f32.mrf.mxu0
    %1256 = vdwg.mxu0
    %1258 = vrot.lane.b32.xlu0 %v1179, 64
    %v1259 = vpop.permute.xlu0 %1258
    %v1262 = vsel %vm487, %v1173, 0
    %1264 = vmatprep.subr.mxu0 0.0
    %1265 = vmatpush1.msra.mxu0 0.0
    %1266 = vmatprep.subr.mxu0 0.0
    %1267 = vmatpush1.msra.mxu0 0.0
    %1268 = vmatprep.subr.mxu0 0.0
    %1269 = vmatpush1.msra.mxu0 0.0
    %1270 = vmatprep.subr.mxu0 0.0
    %1271 = vmatpush1.msra.mxu0 0.0
    %1272 = vmatprep.subr.mxu0 0.0
    %1273 = vmatpush1.msra.mxu0 0.0
    %1274 = vmatprep.subr.mxu0 0.0
    %1275 = vmatpush1.msra.mxu0 0.0
    %1276 = vmatprep.subr.mxu0 0.0
    %1277 = vmatpush1.msra.mxu0 0.0
    %1278 = vmatprep.subr.mxu0 0.0
    %1279 = vmatpush1.msra.mxu0 0.0
    %1280 = vmatprep.subr.mxu0 0.0
    %1281 = vmatpush1.msra.mxu0 0.0
    %1282 = vmatprep.subr.mxu0 0.0
    %1283 = vmatpush1.msra.mxu0 0.0
    %1284 = vmatprep.subr.mxu0 0.0
    %1285 = vmatpush1.msra.mxu0 0.0
    %1286 = vmatprep.subr.mxu0 0.0
    %1287 = vmatpush1.msra.mxu0 0.0
    %1288 = vmatprep.subr.mxu0 0.0
    %1289 = vmatpush1.msra.mxu0 0.0
    %1290 = vmatprep.subr.mxu0 0.0
    %1291 = vmatpush1.msra.mxu0 0.0
    %1292 = vmatprep.subr.mxu0 0.0
    %1293 = vmatpush1.msra.mxu0 0.0
    %1294 = vmatprep.subr.mxu0 0.0
    %1295 = vmatpush1.msra.mxu0 %v1259
    %1296 = vmatprep.subr.mxu0 0.0
    %1297 = vmatpush2.msra.mxu0 0.0
    %1298 = vmatprep.subr.mxu0 0.0
    %1299 = vmatpush2.msra.mxu0 0.0
    %1300 = vmatprep.subr.mxu0 0.0
    %1301 = vmatpush2.msra.mxu0 0.0
    %1302 = vmatprep.subr.mxu0 0.0
    %1303 = vmatpush2.msra.mxu0 0.0
    %1304 = vmatprep.subr.mxu0 0.0
    %1305 = vmatpush2.msra.mxu0 0.0
    %1306 = vmatprep.subr.mxu0 0.0
    %1307 = vmatpush2.msra.mxu0 0.0
    %1308 = vmatprep.subr.mxu0 0.0
    %1309 = vmatpush2.msra.mxu0 0.0
    %1310 = vmatprep.subr.mxu0 0.0
    %1311 = vmatpush2.msra.mxu0 0.0
    %1312 = vmatprep.subr.mxu0 0.0
    %1313 = vmatpush2.msra.mxu0 0.0
    %1314 = vmatprep.subr.mxu0 0.0
    %1315 = vmatpush2.msra.mxu0 0.0
    %1316 = vmatprep.subr.mxu0 0.0
    %1317 = vmatpush2.msra.mxu0 0.0
    %1318 = vmatprep.subr.mxu0 0.0
    %1319 = vmatpush2.msra.mxu0 0.0
    %1320 = vmatprep.subr.mxu0 0.0
    %1321 = vmatpush2.msra.mxu0 0.0
    %1322 = vmatprep.subr.mxu0 0.0
    %1323 = vmatpush2.msra.mxu0 0.0
    %1324 = vmatprep.subr.mxu0 0.0
    %1325 = vmatpush2.msra.mxu0 0.0
    %1326 = vmatprep.subr.mxu0 0.0
    %1327 = vmatpush2.msra.mxu0 0.0
    %1328 = vmatprep.mubr.f32.mxu0 0.0
    %1329 = vmatmul.mubr.f32.gmra.mxu0 %v1262
    %v1330 = vpop.f32.mrf.mxu0
    %v1331 = vadd.f32 0.0, %v1330
    %v1332 = vpop.f32.mrf.mxu0
    %1333 = vdwg.mxu0
    %v1334 = vadd.f32 %v922, %v1254
    %v1335 = vadd.f32 %v999, %v1331
    %v1336 = vmul.f32 %v319, %v194
    %v1337 = vmul.f32 %v324, %v194
    %v1339 = vsel %vm82, %v1336, 0
    %1341 = vmatprep.subr.mxu0 0.0
    %1342 = vmatpush1.xpose.msra.mxu0 0.0
    %1343 = vmatprep.subr.mxu0 0.0
    %1344 = vmatpush1.xpose.msra.mxu0 0.0
    %1345 = vmatprep.subr.mxu0 0.0
    %1346 = vmatpush1.xpose.msra.mxu0 0.0
    %1347 = vmatprep.subr.mxu0 0.0
    %1348 = vmatpush1.xpose.msra.mxu0 0.0
    %1349 = vmatprep.subr.mxu0 0.0
    %1350 = vmatpush1.xpose.msra.mxu0 0.0
    %1351 = vmatprep.subr.mxu0 0.0
    %1352 = vmatpush1.xpose.msra.mxu0 0.0
    %1353 = vmatprep.subr.mxu0 0.0
    %1354 = vmatpush1.xpose.msra.mxu0 0.0
    %1355 = vmatprep.subr.mxu0 0.0
    %1356 = vmatpush1.xpose.msra.mxu0 0.0
    %1357 = vmatprep.subr.mxu0 0.0
    %1358 = vmatpush1.xpose.msra.mxu0 0.0
    %1359 = vmatprep.subr.mxu0 0.0
    %1360 = vmatpush1.xpose.msra.mxu0 0.0
    %1361 = vmatprep.subr.mxu0 0.0
    %1362 = vmatpush1.xpose.msra.mxu0 0.0
    %1363 = vmatprep.subr.mxu0 0.0
    %1364 = vmatpush1.xpose.msra.mxu0 0.0
    %1365 = vmatprep.subr.mxu0 0.0
    %1366 = vmatpush1.xpose.msra.mxu0 0.0
    %1367 = vmatprep.subr.mxu0 0.0
    %1368 = vmatpush1.xpose.msra.mxu0 0.0
    %1369 = vmatprep.subr.mxu0 0.0
    %1370 = vmatpush1.xpose.msra.mxu0 0.0
    %1371 = vmatprep.subr.mxu0 0.0
    %1372 = vmatpush1.xpose.msra.mxu0 %v335
    %1373 = vmatprep.subr.mxu0 0.0
    %1374 = vmatpush2.xpose.msra.mxu0 0.0
    %1375 = vmatprep.subr.mxu0 0.0
    %1376 = vmatpush2.xpose.msra.mxu0 0.0
    %1377 = vmatprep.subr.mxu0 0.0
    %1378 = vmatpush2.xpose.msra.mxu0 0.0
    %1379 = vmatprep.subr.mxu0 0.0
    %1380 = vmatpush2.xpose.msra.mxu0 0.0
    %1381 = vmatprep.subr.mxu0 0.0
    %1382 = vmatpush2.xpose.msra.mxu0 0.0
    %1383 = vmatprep.subr.mxu0 0.0
    %1384 = vmatpush2.xpose.msra.mxu0 0.0
    %1385 = vmatprep.subr.mxu0 0.0
    %1386 = vmatpush2.xpose.msra.mxu0 0.0
    %1387 = vmatprep.subr.mxu0 0.0
    %1388 = vmatpush2.xpose.msra.mxu0 0.0
    %1389 = vmatprep.subr.mxu0 0.0
    %1390 = vmatpush2.xpose.msra.mxu0 0.0
    %1391 = vmatprep.subr.mxu0 0.0
    %1392 = vmatpush2.xpose.msra.mxu0 0.0
    %1393 = vmatprep.subr.mxu0 0.0
    %1394 = vmatpush2.xpose.msra.mxu0 0.0
    %1395 = vmatprep.subr.mxu0 0.0
    %1396 = vmatpush2.xpose.msra.mxu0 0.0
    %1397 = vmatprep.subr.mxu0 0.0
    %1398 = vmatpush2.xpose.msra.mxu0 0.0
    %1399 = vmatprep.subr.mxu0 0.0
    %1400 = vmatpush2.xpose.msra.mxu0 0.0
    %1401 = vmatprep.subr.mxu0 0.0
    %1402 = vmatpush2.xpose.msra.mxu0 0.0
    %1403 = vmatprep.subr.mxu0 0.0
    %1404 = vmatpush2.xpose.msra.mxu0 0.0
    %1405 = vmatprep.mubr.f32.mxu0 0.0
    %1406 = vmatmul.mubr.f32.gmra.mxu0 %v1339
    %v1407 = vpop.f32.mrf.mxu0
    %v1408 = vadd.f32 0.0, %v1407
    %v1409 = vpop.f32.mrf.mxu0
    %1410 = vdwg.mxu0
    %v1412 = vsel %vm82, %v1337, 0
    %1414 = vmatprep.subr.mxu0 0.0
    %1415 = vmatpush1.xpose.msra.mxu0 0.0
    %1416 = vmatprep.subr.mxu0 0.0
    %1417 = vmatpush1.xpose.msra.mxu0 0.0
    %1418 = vmatprep.subr.mxu0 0.0
    %1419 = vmatpush1.xpose.msra.mxu0 0.0
    %1420 = vmatprep.subr.mxu0 0.0
    %1421 = vmatpush1.xpose.msra.mxu0 0.0
    %1422 = vmatprep.subr.mxu0 0.0
    %1423 = vmatpush1.xpose.msra.mxu0 0.0
    %1424 = vmatprep.subr.mxu0 0.0
    %1425 = vmatpush1.xpose.msra.mxu0 0.0
    %1426 = vmatprep.subr.mxu0 0.0
    %1427 = vmatpush1.xpose.msra.mxu0 0.0
    %1428 = vmatprep.subr.mxu0 0.0
    %1429 = vmatpush1.xpose.msra.mxu0 0.0
    %1430 = vmatprep.subr.mxu0 0.0
    %1431 = vmatpush1.xpose.msra.mxu0 0.0
    %1432 = vmatprep.subr.mxu0 0.0
    %1433 = vmatpush1.xpose.msra.mxu0 0.0
    %1434 = vmatprep.subr.mxu0 0.0
    %1435 = vmatpush1.xpose.msra.mxu0 0.0
    %1436 = vmatprep.subr.mxu0 0.0
    %1437 = vmatpush1.xpose.msra.mxu0 0.0
    %1438 = vmatprep.subr.mxu0 0.0
    %1439 = vmatpush1.xpose.msra.mxu0 0.0
    %1440 = vmatprep.subr.mxu0 0.0
    %1441 = vmatpush1.xpose.msra.mxu0 0.0
    %1442 = vmatprep.subr.mxu0 0.0
    %1443 = vmatpush1.xpose.msra.mxu0 0.0
    %1444 = vmatprep.subr.mxu0 0.0
    %1445 = vmatpush1.xpose.msra.mxu0 %v413
    %1446 = vmatprep.subr.mxu0 0.0
    %1447 = vmatpush2.xpose.msra.mxu0 0.0
    %1448 = vmatprep.subr.mxu0 0.0
    %1449 = vmatpush2.xpose.msra.mxu0 0.0
    %1450 = vmatprep.subr.mxu0 0.0
    %1451 = vmatpush2.xpose.msra.mxu0 0.0
    %1452 = vmatprep.subr.mxu0 0.0
    %1453 = vmatpush2.xpose.msra.mxu0 0.0
    %1454 = vmatprep.subr.mxu0 0.0
    %1455 = vmatpush2.xpose.msra.mxu0 0.0
    %1456 = vmatprep.subr.mxu0 0.0
    %1457 = vmatpush2.xpose.msra.mxu0 0.0
    %1458 = vmatprep.subr.mxu0 0.0
    %1459 = vmatpush2.xpose.msra.mxu0 0.0
    %1460 = vmatprep.subr.mxu0 0.0
    %1461 = vmatpush2.xpose.msra.mxu0 0.0
    %1462 = vmatprep.subr.mxu0 0.0
    %1463 = vmatpush2.xpose.msra.mxu0 0.0
    %1464 = vmatprep.subr.mxu0 0.0
    %1465 = vmatpush2.xpose.msra.mxu0 0.0
    %1466 = vmatprep.subr.mxu0 0.0
    %1467 = vmatpush2.xpose.msra.mxu0 0.0
    %1468 = vmatprep.subr.mxu0 0.0
    %1469 = vmatpush2.xpose.msra.mxu0 0.0
    %1470 = vmatprep.subr.mxu0 0.0
    %1471 = vmatpush2.xpose.msra.mxu0 0.0
    %1472 = vmatprep.subr.mxu0 0.0
    %1473 = vmatpush2.xpose.msra.mxu0 0.0
    %1474 = vmatprep.subr.mxu0 0.0
    %1475 = vmatpush2.xpose.msra.mxu0 0.0
    %1476 = vmatprep.subr.mxu0 0.0
    %1477 = vmatpush2.xpose.msra.mxu0 0.0
    %1478 = vmatprep.mubr.f32.mxu0 0.0
    %1479 = vmatmul.mubr.f32.gmra.mxu0 %v1412
    %v1480 = vpop.f32.mrf.mxu0
    %v1481 = vadd.f32 0.0, %v1480
    %v1482 = vpop.f32.mrf.mxu0
    %1483 = vdwg.mxu0
    %v1484 = vmul.f32 %v1408, 0.17677669
    %v1485 = vmul.f32 %v1481, 0.17677669
    %v1486 = vsel %vm487, %v1484, -inf
    %1487 = vmax.xlane.f32.xlu0 %v1486
    %v1488 = vpop.xlane.xlu0 %1487
    %v1489 = vsel %vm487, %v1485, -inf
    %1490 = vmax.xlane.f32.xlu0 %v1489
    %v1491 = vpop.xlane.xlu0 %1490
    %v1492 = vsub.f32 %v1484, %v1488
    %v1493 = vsub.f32 %v1485, %v1491
    %v1494 = vmul.f32 %v1492, 1.442695
    %v1495 = vpow.pop %v1494
    %v1496 = vmul.f32 %v1493, 1.442695
    %v1497 = vpow.pop %v1496
    %v1498 = vsel %vm487, %v1495, 0.0
    %1499 = vadd.xlane.f32.xlu0 %v1498
    %v1500 = vpop.xlane.xlu0 %1499
    %v1501 = vsel %vm487, %v1497, 0.0
    %1502 = vadd.xlane.f32.xlu0 %v1501
    %v1503 = vpop.xlane.xlu0 %1502
    %v1504 = vrcp.pop %v1500
    %v1505 = vrcp.pop %v1503
    %v1506 = vmul.f32 %v1495, %v1504
    %v1507 = vmul.f32 %v1497, %v1505
    %1509 = vrot.lane.b32.xlu0 %v194, 64
    %v1510 = vpop.permute.xlu0 %1509
    %v1512 = vmul.f32 %v319, %v1510
    %v1513 = vmul.f32 %v324, %v1510
    %1515 = vrot.lane.b32.xlu0 %v1512, 64
    %v1516 = vpop.permute.xlu0 %1515
    %v1519 = vsel %vm487, %v1506, 0
    %1521 = vmatprep.subr.mxu0 0.0
    %1522 = vmatpush1.msra.mxu0 0.0
    %1523 = vmatprep.subr.mxu0 0.0
    %1524 = vmatpush1.msra.mxu0 0.0
    %1525 = vmatprep.subr.mxu0 0.0
    %1526 = vmatpush1.msra.mxu0 0.0
    %1527 = vmatprep.subr.mxu0 0.0
    %1528 = vmatpush1.msra.mxu0 0.0
    %1529 = vmatprep.subr.mxu0 0.0
    %1530 = vmatpush1.msra.mxu0 0.0
    %1531 = vmatprep.subr.mxu0 0.0
    %1532 = vmatpush1.msra.mxu0 0.0
    %1533 = vmatprep.subr.mxu0 0.0
    %1534 = vmatpush1.msra.mxu0 0.0
    %1535 = vmatprep.subr.mxu0 0.0
    %1536 = vmatpush1.msra.mxu0 0.0
    %1537 = vmatprep.subr.mxu0 0.0
    %1538 = vmatpush1.msra.mxu0 0.0
    %1539 = vmatprep.subr.mxu0 0.0
    %1540 = vmatpush1.msra.mxu0 0.0
    %1541 = vmatprep.subr.mxu0 0.0
    %1542 = vmatpush1.msra.mxu0 0.0
    %1543 = vmatprep.subr.mxu0 0.0
    %1544 = vmatpush1.msra.mxu0 0.0
    %1545 = vmatprep.subr.mxu0 0.0
    %1546 = vmatpush1.msra.mxu0 0.0
    %1547 = vmatprep.subr.mxu0 0.0
    %1548 = vmatpush1.msra.mxu0 0.0
    %1549 = vmatprep.subr.mxu0 0.0
    %1550 = vmatpush1.msra.mxu0 0.0
    %1551 = vmatprep.subr.mxu0 0.0
    %1552 = vmatpush1.msra.mxu0 %v1516
    %1553 = vmatprep.subr.mxu0 0.0
    %1554 = vmatpush2.msra.mxu0 0.0
    %1555 = vmatprep.subr.mxu0 0.0
    %1556 = vmatpush2.msra.mxu0 0.0
    %1557 = vmatprep.subr.mxu0 0.0
    %1558 = vmatpush2.msra.mxu0 0.0
    %1559 = vmatprep.subr.mxu0 0.0
    %1560 = vmatpush2.msra.mxu0 0.0
    %1561 = vmatprep.subr.mxu0 0.0
    %1562 = vmatpush2.msra.mxu0 0.0
    %1563 = vmatprep.subr.mxu0 0.0
    %1564 = vmatpush2.msra.mxu0 0.0
    %1565 = vmatprep.subr.mxu0 0.0
    %1566 = vmatpush2.msra.mxu0 0.0
    %1567 = vmatprep.subr.mxu0 0.0
    %1568 = vmatpush2.msra.mxu0 0.0
    %1569 = vmatprep.subr.mxu0 0.0
    %1570 = vmatpush2.msra.mxu0 0.0
    %1571 = vmatprep.subr.mxu0 0.0
    %1572 = vmatpush2.msra.mxu0 0.0
    %1573 = vmatprep.subr.mxu0 0.0
    %1574 = vmatpush2.msra.mxu0 0.0
    %1575 = vmatprep.subr.mxu0 0.0
    %1576 = vmatpush2.msra.mxu0 0.0
    %1577 = vmatprep.subr.mxu0 0.0
    %1578 = vmatpush2.msra.mxu0 0.0
    %1579 = vmatprep.subr.mxu0 0.0
    %1580 = vmatpush2.msra.mxu0 0.0
    %1581 = vmatprep.subr.mxu0 0.0
    %1582 = vmatpush2.msra.mxu0 0.0
    %1583 = vmatprep.subr.mxu0 0.0
    %1584 = vmatpush2.msra.mxu0 0.0
    %1585 = vmatprep.mubr.f32.mxu0 0.0
    %1586 = vmatmul.mubr.f32.gmra.mxu0 %v1519
    %v1587 = vpop.f32.mrf.mxu0
    %v1588 = vadd.f32 0.0, %v1587
    %v1589 = vpop.f32.mrf.mxu0
    %1590 = vdwg.mxu0
    %1592 = vrot.lane.b32.xlu0 %v1513, 64
    %v1593 = vpop.permute.xlu0 %1592
    %v1596 = vsel %vm487, %v1507, 0
    %1598 = vmatprep.subr.mxu0 0.0
    %1599 = vmatpush1.msra.mxu0 0.0
    %1600 = vmatprep.subr.mxu0 0.0
    %1601 = vmatpush1.msra.mxu0 0.0
    %1602 = vmatprep.subr.mxu0 0.0
    %1603 = vmatpush1.msra.mxu0 0.0
    %1604 = vmatprep.subr.mxu0 0.0
    %1605 = vmatpush1.msra.mxu0 0.0
    %1606 = vmatprep.subr.mxu0 0.0
    %1607 = vmatpush1.msra.mxu0 0.0
    %1608 = vmatprep.subr.mxu0 0.0
    %1609 = vmatpush1.msra.mxu0 0.0
    %1610 = vmatprep.subr.mxu0 0.0
    %1611 = vmatpush1.msra.mxu0 0.0
    %1612 = vmatprep.subr.mxu0 0.0
    %1613 = vmatpush1.msra.mxu0 0.0
    %1614 = vmatprep.subr.mxu0 0.0
    %1615 = vmatpush1.msra.mxu0 0.0
    %1616 = vmatprep.subr.mxu0 0.0
    %1617 = vmatpush1.msra.mxu0 0.0
    %1618 = vmatprep.subr.mxu0 0.0
    %1619 = vmatpush1.msra.mxu0 0.0
    %1620 = vmatprep.subr.mxu0 0.0
    %1621 = vmatpush1.msra.mxu0 0.0
    %1622 = vmatprep.subr.mxu0 0.0
    %1623 = vmatpush1.msra.mxu0 0.0
    %1624 = vmatprep.subr.mxu0 0.0
    %1625 = vmatpush1.msra.mxu0 0.0
    %1626 = vmatprep.subr.mxu0 0.0
    %1627 = vmatpush1.msra.mxu0 0.0
    %1628 = vmatprep.subr.mxu0 0.0
    %1629 = vmatpush1.msra.mxu0 %v1593
    %1630 = vmatprep.subr.mxu0 0.0
    %1631 = vmatpush2.msra.mxu0 0.0
    %1632 = vmatprep.subr.mxu0 0.0
    %1633 = vmatpush2.msra.mxu0 0.0
    %1634 = vmatprep.subr.mxu0 0.0
    %1635 = vmatpush2.msra.mxu0 0.0
    %1636 = vmatprep.subr.mxu0 0.0
    %1637 = vmatpush2.msra.mxu0 0.0
    %1638 = vmatprep.subr.mxu0 0.0
    %1639 = vmatpush2.msra.mxu0 0.0
    %1640 = vmatprep.subr.mxu0 0.0
    %1641 = vmatpush2.msra.mxu0 0.0
    %1642 = vmatprep.subr.mxu0 0.0
    %1643 = vmatpush2.msra.mxu0 0.0
    %1644 = vmatprep.subr.mxu0 0.0
    %1645 = vmatpush2.msra.mxu0 0.0
    %1646 = vmatprep.subr.mxu0 0.0
    %1647 = vmatpush2.msra.mxu0 0.0
    %1648 = vmatprep.subr.mxu0 0.0
    %1649 = vmatpush2.msra.mxu0 0.0
    %1650 = vmatprep.subr.mxu0 0.0
    %1651 = vmatpush2.msra.mxu0 0.0
    %1652 = vmatprep.subr.mxu0 0.0
    %1653 = vmatpush2.msra.mxu0 0.0
    %1654 = vmatprep.subr.mxu0 0.0
    %1655 = vmatpush2.msra.mxu0 0.0
    %1656 = vmatprep.subr.mxu0 0.0
    %1657 = vmatpush2.msra.mxu0 0.0
    %1658 = vmatprep.subr.mxu0 0.0
    %1659 = vmatpush2.msra.mxu0 0.0
    %1660 = vmatprep.subr.mxu0 0.0
    %1661 = vmatpush2.msra.mxu0 0.0
    %1662 = vmatprep.mubr.f32.mxu0 0.0
    %1663 = vmatmul.mubr.f32.gmra.mxu0 %v1596
    %v1664 = vpop.f32.mrf.mxu0
    %v1665 = vadd.f32 0.0, %v1664
    %v1666 = vpop.f32.mrf.mxu0
    %1667 = vdwg.mxu0
    %v1668 = vadd.f32 %v1334, %v1588
    %v1669 = vadd.f32 %v1335, %v1665
    %v1670 = vlaneseq
    %v1671 = vshrl.u32 %v1670, 7
    %v1672 = vsub.s32 0, %v1671
    %v1673 = vrot.slane %v230, %v1672
    %v1675 = vsel %vm82, %v1668, 0
    %v1678 = vsel %vm82, %v1669, 0
    %1680 = vmatprep.subr.mxu0 0.0
    %1681 = vmatpush1.msra.mxu0 0.0
    %1682 = vmatprep.subr.mxu0 0.0
    %1683 = vmatpush1.msra.mxu0 0.0
    %1684 = vmatprep.subr.mxu0 0.0
    %1685 = vmatpush1.msra.mxu0 0.0
    %1686 = vmatprep.subr.mxu0 0.0
    %1687 = vmatpush1.msra.mxu0 0.0
    %1688 = vmatprep.subr.mxu0 0.0
    %1689 = vmatpush1.msra.mxu0 0.0
    %1690 = vmatprep.subr.mxu0 0.0
    %1691 = vmatpush1.msra.mxu0 0.0
    %1692 = vmatprep.subr.mxu0 0.0
    %1693 = vmatpush1.msra.mxu0 0.0
    %1694 = vmatprep.subr.mxu0 0.0
    %1695 = vmatpush1.msra.mxu0 0.0
    %1696 = vmatprep.subr.mxu0 0.0
    %1697 = vmatpush1.msra.mxu0 0.0
    %1698 = vmatprep.subr.mxu0 0.0
    %1699 = vmatpush1.msra.mxu0 0.0
    %1700 = vmatprep.subr.mxu0 0.0
    %1701 = vmatpush1.msra.mxu0 0.0
    %1702 = vmatprep.subr.mxu0 0.0
    %1703 = vmatpush1.msra.mxu0 0.0
    %1704 = vmatprep.subr.mxu0 0.0
    %1705 = vmatpush1.msra.mxu0 %v204
    %1706 = vmatprep.subr.mxu0 0.0
    %1707 = vmatpush1.msra.mxu0 %v203
    %1708 = vmatprep.subr.mxu0 0.0
    %1709 = vmatpush1.msra.mxu0 %v202
    %1710 = vmatprep.subr.mxu0 0.0
    %1711 = vmatpush1.msra.mxu0 %v201
    %1712 = vmatprep.subr.mxu0 0.0
    %1713 = vmatpush2.msra.mxu0 0.0
    %1714 = vmatprep.subr.mxu0 0.0
    %1715 = vmatpush2.msra.mxu0 0.0
    %1716 = vmatprep.subr.mxu0 0.0
    %1717 = vmatpush2.msra.mxu0 0.0
    %1718 = vmatprep.subr.mxu0 0.0
    %1719 = vmatpush2.msra.mxu0 0.0
    %1720 = vmatprep.subr.mxu0 0.0
    %1721 = vmatpush2.msra.mxu0 0.0
    %1722 = vmatprep.subr.mxu0 0.0
    %1723 = vmatpush2.msra.mxu0 0.0
    %1724 = vmatprep.subr.mxu0 0.0
    %1725 = vmatpush2.msra.mxu0 0.0
    %1726 = vmatprep.subr.mxu0 0.0
    %1727 = vmatpush2.msra.mxu0 0.0
    %1728 = vmatprep.subr.mxu0 0.0
    %1729 = vmatpush2.msra.mxu0 0.0
    %1730 = vmatprep.subr.mxu0 0.0
    %1731 = vmatpush2.msra.mxu0 0.0
    %1732 = vmatprep.subr.mxu0 0.0
    %1733 = vmatpush2.msra.mxu0 0.0
    %1734 = vmatprep.subr.mxu0 0.0
    %1735 = vmatpush2.msra.mxu0 0.0
    %1736 = vmatprep.subr.mxu0 0.0
    %1737 = vmatpush2.msra.mxu0 0.0
    %1738 = vmatprep.subr.mxu0 0.0
    %1739 = vmatpush2.msra.mxu0 0.0
    %1740 = vmatprep.subr.mxu0 0.0
    %1741 = vmatpush2.msra.mxu0 0.0
    %1742 = vmatprep.subr.mxu0 0.0
    %1743 = vmatpush2.msra.mxu0 0.0
    %1744 = vmatprep.mubr.f32.mxu0 0.0
    %1745 = vmatmul.mubr.f32.gmra.mxu0 %v1675
    %v1746 = vpop.f32.mrf.mxu0
    %v1747 = vadd.f32 %v1673, %v1746
    %v1748 = vpop.f32.mrf.mxu0
    %1749 = vmatprep.mubr.f32.mxu0 0.0
    %1750 = vmatmul.mubr.f32.gmra.mxu0 %v1678
    %v1751 = vpop.f32.mrf.mxu0
    %v1752 = vadd.f32 %v1673, %v1751
    %v1753 = vpop.f32.mrf.mxu0
    %1754 = vdwg.mxu0
    %v1755 = vadd.f32 %v169, %v1747
    %v1756 = vadd.f32 %v170, %v1752
    %v1757 = vsel %vm82, %v1755, 0.0
    %1758 = vadd.xlane.f32.xlu0 %v1757
    %v1759 = vpop.xlane.xlu0 %1758
    %v1760 = vsel %vm82, %v1756, 0.0
    %1761 = vadd.xlane.f32.xlu0 %v1760
    %v1762 = vpop.xlane.xlu0 %1761
    %v1763 = vrcp.pop 32.0
    %v1764 = vmul.f32 %v1759, %v1763
    %v1765 = vmul.f32 %v1762, %v1763
    %v1766 = vsub.f32 %v1755, %v1764
    %v1767 = vsub.f32 %v1756, %v1765
    %v1768 = vmul.f32 %v1766, %v1766
    %v1769 = vmul.f32 %v1767, %v1767
    %v1770 = vsel %vm82, %v1768, 0.0
    %1771 = vadd.xlane.f32.xlu0 %v1770
    %v1772 = vpop.xlane.xlu0 %1771
    %v1773 = vsel %vm82, %v1769, 0.0
    %1774 = vadd.xlane.f32.xlu0 %v1773
    %v1775 = vpop.xlane.xlu0 %1774
    %v1776 = vmul.f32 %v1772, %v1763
    %v1777 = vmul.f32 %v1775, %v1763
    %v1778 = vadd.f32 %v1776, 1e-05
    %v1779 = vadd.f32 %v1777, 1e-05
    %v1780 = vrsqrt.pop %v1778
    %v1781 = vrsqrt.pop %v1779
    %v1782 = vmul.f32 %v1766, %v1780
    %v1783 = vmul.f32 %v1767, %v1781
    %v1784 = vlaneseq
    %v1785 = vshrl.u32 %v1784, 7
    %v1786 = vsub.s32 0, %v1785
    %v1787 = vrot.slane %v236, %v1786
    %v1788 = vmul.f32 %v1782, %v1787
    %v1789 = vmul.f32 %v1783, %v1787
    %v1790 = vlaneseq
    %v1791 = vshrl.u32 %v1790, 7
    %v1792 = vsub.s32 0, %v1791
    %v1793 = vrot.slane %v237, %v1792
    %v1794 = vadd.f32 %v1788, %v1793
    %v1795 = vadd.f32 %v1789, %v1793
    %v1796 = vlaneseq
    %v1797 = vshrl.u32 %v1796, 7
    %v1798 = vsub.s32 0, %v1797
    %v1799 = vrot.slane %v231, %v1798
    %v1801 = vsel %vm82, %v1794, 0
    %v1804 = vsel %vm82, %v1795, 0
    %1806 = vmatprep.subr.mxu0 0.0
    %1807 = vmatpush1.msra.mxu0 0.0
    %1808 = vmatprep.subr.mxu0 0.0
    %1809 = vmatpush1.msra.mxu0 0.0
    %1810 = vmatprep.subr.mxu0 0.0
    %1811 = vmatpush1.msra.mxu0 0.0
    %1812 = vmatprep.subr.mxu0 0.0
    %1813 = vmatpush1.msra.mxu0 0.0
    %1814 = vmatprep.subr.mxu0 0.0
    %1815 = vmatpush1.msra.mxu0 0.0
    %1816 = vmatprep.subr.mxu0 0.0
    %1817 = vmatpush1.msra.mxu0 0.0
    %1818 = vmatprep.subr.mxu0 0.0
    %1819 = vmatpush1.msra.mxu0 0.0
    %1820 = vmatprep.subr.mxu0 0.0
    %1821 = vmatpush1.msra.mxu0 0.0
    %1822 = vmatprep.subr.mxu0 0.0
    %1823 = vmatpush1.msra.mxu0 0.0
    %1824 = vmatprep.subr.mxu0 0.0
    %1825 = vmatpush1.msra.mxu0 0.0
    %1826 = vmatprep.subr.mxu0 0.0
    %1827 = vmatpush1.msra.mxu0 0.0
    %1828 = vmatprep.subr.mxu0 0.0
    %1829 = vmatpush1.msra.mxu0 0.0
    %1830 = vmatprep.subr.mxu0 0.0
    %1831 = vmatpush1.msra.mxu0 %v208
    %1832 = vmatprep.subr.mxu0 0.0
    %1833 = vmatpush1.msra.mxu0 %v207
    %1834 = vmatprep.subr.mxu0 0.0
    %1835 = vmatpush1.msra.mxu0 %v206
    %1836 = vmatprep.subr.mxu0 0.0
    %1837 = vmatpush1.msra.mxu0 %v205
    %1838 = vmatprep.subr.mxu0 0.0
    %1839 = vmatpush2.msra.mxu0 0.0
    %1840 = vmatprep.subr.mxu0 0.0
    %1841 = vmatpush2.msra.mxu0 0.0
    %1842 = vmatprep.subr.mxu0 0.0
    %1843 = vmatpush2.msra.mxu0 0.0
    %1844 = vmatprep.subr.mxu0 0.0
    %1845 = vmatpush2.msra.mxu0 0.0
    %1846 = vmatprep.subr.mxu0 0.0
    %1847 = vmatpush2.msra.mxu0 0.0
    %1848 = vmatprep.subr.mxu0 0.0
    %1849 = vmatpush2.msra.mxu0 0.0
    %1850 = vmatprep.subr.mxu0 0.0
    %1851 = vmatpush2.msra.mxu0 0.0
    %1852 = vmatprep.subr.mxu0 0.0
    %1853 = vmatpush2.msra.mxu0 0.0
    %1854 = vmatprep.subr.mxu0 0.0
    %1855 = vmatpush2.msra.mxu0 0.0
    %1856 = vmatprep.subr.mxu0 0.0
    %1857 = vmatpush2.msra.mxu0 0.0
    %1858 = vmatprep.subr.mxu0 0.0
    %1859 = vmatpush2.msra.mxu0 0.0
    %1860 = vmatprep.subr.mxu0 0.0
    %1861 = vmatpush2.msra.mxu0 0.0
    %1862 = vmatprep.subr.mxu0 0.0
    %1863 = vmatpush2.msra.mxu0 0.0
    %1864 = vmatprep.subr.mxu0 0.0
    %1865 = vmatpush2.msra.mxu0 0.0
    %1866 = vmatprep.subr.mxu0 0.0
    %1867 = vmatpush2.msra.mxu0 0.0
    %1868 = vmatprep.subr.mxu0 0.0
    %1869 = vmatpush2.msra.mxu0 0.0
    %1870 = vmatprep.mubr.f32.mxu0 0.0
    %1871 = vmatmul.mubr.f32.gmra.mxu0 %v1801
    %v1872 = vpop.f32.mrf.mxu0
    %v1873 = vadd.f32 %v1799, %v1872
    %v1874 = vpop.f32.mrf.mxu0
    %1875 = vmatprep.mubr.f32.mxu0 0.0
    %1876 = vmatmul.mubr.f32.gmra.mxu0 %v1804
    %v1877 = vpop.f32.mrf.mxu0
    %v1878 = vadd.f32 %v1799, %v1877
    %v1879 = vpop.f32.mrf.mxu0
    %1880 = vdwg.mxu0
    %v1881 = vlaneseq
    %v1882 = vshrl.u32 %v1881, 7
    %v1883 = vsub.s32 0, %v1882
    %v1884 = vrot.slane %v232, %v1883
    %v1886 = vsel %vm82, %v171, 0
    %v1889 = vsel %vm82, %v172, 0
    %v1892 = vsel %vm82, %v173, 0
    %v1895 = vsel %vm82, %v174, 0
    %1897 = vmatprep.subr.mxu0 0.0
    %1898 = vmatpush1.msra.mxu0 0.0
    %1899 = vmatprep.subr.mxu0 0.0
    %1900 = vmatpush1.msra.mxu0 0.0
    %1901 = vmatprep.subr.mxu0 0.0
    %1902 = vmatpush1.msra.mxu0 0.0
    %1903 = vmatprep.subr.mxu0 0.0
    %1904 = vmatpush1.msra.mxu0 0.0
    %1905 = vmatprep.subr.mxu0 0.0
    %1906 = vmatpush1.msra.mxu0 0.0
    %1907 = vmatprep.subr.mxu0 0.0
    %1908 = vmatpush1.msra.mxu0 0.0
    %1909 = vmatprep.subr.mxu0 0.0
    %1910 = vmatpush1.msra.mxu0 0.0
    %1911 = vmatprep.subr.mxu0 0.0
    %1912 = vmatpush1.msra.mxu0 0.0
    %1913 = vmatprep.subr.mxu0 0.0
    %1914 = vmatpush1.msra.mxu0 0.0
    %1915 = vmatprep.subr.mxu0 0.0
    %1916 = vmatpush1.msra.mxu0 0.0
    %1917 = vmatprep.subr.mxu0 0.0
    %1918 = vmatpush1.msra.mxu0 0.0
    %1919 = vmatprep.subr.mxu0 0.0
    %1920 = vmatpush1.msra.mxu0 0.0
    %1921 = vmatprep.subr.mxu0 0.0
    %1922 = vmatpush1.msra.mxu0 %v212
    %1923 = vmatprep.subr.mxu0 0.0
    %1924 = vmatpush1.msra.mxu0 %v211
    %1925 = vmatprep.subr.mxu0 0.0
    %1926 = vmatpush1.msra.mxu0 %v210
    %1927 = vmatprep.subr.mxu0 0.0
    %1928 = vmatpush1.msra.mxu0 %v209
    %1929 = vmatprep.subr.mxu0 0.0
    %1930 = vmatpush2.msra.mxu0 0.0
    %1931 = vmatprep.subr.mxu0 0.0
    %1932 = vmatpush2.msra.mxu0 0.0
    %1933 = vmatprep.subr.mxu0 0.0
    %1934 = vmatpush2.msra.mxu0 0.0
    %1935 = vmatprep.subr.mxu0 0.0
    %1936 = vmatpush2.msra.mxu0 0.0
    %1937 = vmatprep.subr.mxu0 0.0
    %1938 = vmatpush2.msra.mxu0 0.0
    %1939 = vmatprep.subr.mxu0 0.0
    %1940 = vmatpush2.msra.mxu0 0.0
    %1941 = vmatprep.subr.mxu0 0.0
    %1942 = vmatpush2.msra.mxu0 0.0
    %1943 = vmatprep.subr.mxu0 0.0
    %1944 = vmatpush2.msra.mxu0 0.0
    %1945 = vmatprep.subr.mxu0 0.0
    %1946 = vmatpush2.msra.mxu0 0.0
    %1947 = vmatprep.subr.mxu0 0.0
    %1948 = vmatpush2.msra.mxu0 0.0
    %1949 = vmatprep.subr.mxu0 0.0
    %1950 = vmatpush2.msra.mxu0 0.0
    %1951 = vmatprep.subr.mxu0 0.0
    %1952 = vmatpush2.msra.mxu0 0.0
    %1953 = vmatprep.subr.mxu0 0.0
    %1954 = vmatpush2.msra.mxu0 0.0
    %1955 = vmatprep.subr.mxu0 0.0
    %1956 = vmatpush2.msra.mxu0 0.0
    %1957 = vmatprep.subr.mxu0 0.0
    %1958 = vmatpush2.msra.mxu0 0.0
    %1959 = vmatprep.subr.mxu0 0.0
    %1960 = vmatpush2.msra.mxu0 0.0
    %1961 = vmatprep.mubr.f32.mxu0 0.0
    %1962 = vmatmul.mubr.f32.gmra.mxu0 %v1886
    %v1963 = vpop.f32.mrf.mxu0
    %v1964 = vadd.f32 %v1884, %v1963
    %v1965 = vpop.f32.mrf.mxu0
    %1966 = vmatprep.mubr.f32.mxu0 0.0
    %1967 = vmatmul.mubr.f32.gmra.mxu0 %v1889
    %v1968 = vpop.f32.mrf.mxu0
    %v1969 = vadd.f32 %v1884, %v1968
    %v1970 = vpop.f32.mrf.mxu0
    %1971 = vmatprep.mubr.f32.mxu0 0.0
    %1972 = vmatmul.mubr.f32.gmra.mxu0 %v1892
    %v1973 = vpop.f32.mrf.mxu0
    %v1974 = vadd.f32 %v1884, %v1973
    %v1975 = vpop.f32.mrf.mxu0
    %1976 = vmatprep.mubr.f32.mxu0 0.0
    %1977 = vmatmul.mubr.f32.gmra.mxu0 %v1895
    %v1978 = vpop.f32.mrf.mxu0
    %v1979 = vadd.f32 %v1884, %v1978
    %v1980 = vpop.f32.mrf.mxu0
    %1981 = vdwg.mxu0
    %v1982 = vmul.f32 %v1873, %v179
    %v1983 = vmul.f32 %v1878, %v179
    %v1985 = vsel %vm82, %v1982, 0
    %v1988 = vsel %vm82, %v1964, 0
    %v1991 = vsel %vm82, %v1969, 0
    %1993 = vmatprep.subr.mxu0 0.0
    %1994 = vmatpush1.xpose.msra.mxu0 0.0
    %1995 = vmatprep.subr.mxu0 0.0
    %1996 = vmatpush1.xpose.msra.mxu0 0.0
    %1997 = vmatprep.subr.mxu0 0.0
    %1998 = vmatpush1.xpose.msra.mxu0 0.0
    %1999 = vmatprep.subr.mxu0 0.0
    %2000 = vmatpush1.xpose.msra.mxu0 0.0
    %2001 = vmatprep.subr.mxu0 0.0
    %2002 = vmatpush1.xpose.msra.mxu0 0.0
    %2003 = vmatprep.subr.mxu0 0.0
    %2004 = vmatpush1.xpose.msra.mxu0 0.0
    %2005 = vmatprep.subr.mxu0 0.0
    %2006 = vmatpush1.xpose.msra.mxu0 0.0
    %2007 = vmatprep.subr.mxu0 0.0
    %2008 = vmatpush1.xpose.msra.mxu0 0.0
    %2009 = vmatprep.subr.mxu0 0.0
    %2010 = vmatpush1.xpose.msra.mxu0 0.0
    %2011 = vmatprep.subr.mxu0 0.0
    %2012 = vmatpush1.xpose.msra.mxu0 0.0
    %2013 = vmatprep.subr.mxu0 0.0
    %2014 = vmatpush1.xpose.msra.mxu0 0.0
    %2015 = vmatprep.subr.mxu0 0.0
    %2016 = vmatpush1.xpose.msra.mxu0 0.0
    %2017 = vmatprep.subr.mxu0 0.0
    %2018 = vmatpush1.xpose.msra.mxu0 0.0
    %2019 = vmatprep.subr.mxu0 0.0
    %2020 = vmatpush1.xpose.msra.mxu0 0.0
    %2021 = vmatprep.subr.mxu0 0.0
    %2022 = vmatpush1.xpose.msra.mxu0 %v1991
    %2023 = vmatprep.subr.mxu0 0.0
    %2024 = vmatpush1.xpose.msra.mxu0 %v1988
    %2025 = vmatprep.subr.mxu0 0.0
    %2026 = vmatpush2.xpose.msra.mxu0 0.0
    %2027 = vmatprep.subr.mxu0 0.0
    %2028 = vmatpush2.xpose.msra.mxu0 0.0
    %2029 = vmatprep.subr.mxu0 0.0
    %2030 = vmatpush2.xpose.msra.mxu0 0.0
    %2031 = vmatprep.subr.mxu0 0.0
    %2032 = vmatpush2.xpose.msra.mxu0 0.0
    %2033 = vmatprep.subr.mxu0 0.0
    %2034 = vmatpush2.xpose.msra.mxu0 0.0
    %2035 = vmatprep.subr.mxu0 0.0
    %2036 = vmatpush2.xpose.msra.mxu0 0.0
    %2037 = vmatprep.subr.mxu0 0.0
    %2038 = vmatpush2.xpose.msra.mxu0 0.0
    %2039 = vmatprep.subr.mxu0 0.0
    %2040 = vmatpush2.xpose.msra.mxu0 0.0
    %2041 = vmatprep.subr.mxu0 0.0
    %2042 = vmatpush2.xpose.msra.mxu0 0.0
    %2043 = vmatprep.subr.mxu0 0.0
    %2044 = vmatpush2.xpose.msra.mxu0 0.0
    %2045 = vmatprep.subr.mxu0 0.0
    %2046 = vmatpush2.xpose.msra.mxu0 0.0
    %2047 = vmatprep.subr.mxu0 0.0
    %2048 = vmatpush2.xpose.msra.mxu0 0.0
    %2049 = vmatprep.subr.mxu0 0.0
    %2050 = vmatpush2.xpose.msra.mxu0 0.0
    %2051 = vmatprep.subr.mxu0 0.0
    %2052 = vmatpush2.xpose.msra.mxu0 0.0
    %2053 = vmatprep.subr.mxu0 0.0
    %2054 = vmatpush2.xpose.msra.mxu0 0.0
    %2055 = vmatprep.subr.mxu0 0.0
    %2056 = vmatpush2.xpose.msra.mxu0 0.0
    %2057 = vmatprep.mubr.f32.mxu0 0.0
    %2058 = vmatmul.mubr.f32.gmra.mxu0 %v1985
    %v2059 = vpop.f32.mrf.mxu0
    %v2060 = vadd.f32 0.0, %v2059
    %v2061 = vpop.f32.mrf.mxu0
    %2062 = vdwg.mxu0
    %v2064 = vsel %vm82, %v1983, 0
    %v2067 = vsel %vm82, %v1974, 0
    %v2070 = vsel %vm82, %v1979, 0
    %2072 = vmatprep.subr.mxu0 0.0
    %2073 = vmatpush1.xpose.msra.mxu0 0.0
    %2074 = vmatprep.subr.mxu0 0.0
    %2075 = vmatpush1.xpose.msra.mxu0 0.0
    %2076 = vmatprep.subr.mxu0 0.0
    %2077 = vmatpush1.xpose.msra.mxu0 0.0
    %2078 = vmatprep.subr.mxu0 0.0
    %2079 = vmatpush1.xpose.msra.mxu0 0.0
    %2080 = vmatprep.subr.mxu0 0.0
    %2081 = vmatpush1.xpose.msra.mxu0 0.0
    %2082 = vmatprep.subr.mxu0 0.0
    %2083 = vmatpush1.xpose.msra.mxu0 0.0
    %2084 = vmatprep.subr.mxu0 0.0
    %2085 = vmatpush1.xpose.msra.mxu0 0.0
    %2086 = vmatprep.subr.mxu0 0.0
    %2087 = vmatpush1.xpose.msra.mxu0 0.0
    %2088 = vmatprep.subr.mxu0 0.0
    %2089 = vmatpush1.xpose.msra.mxu0 0.0
    %2090 = vmatprep.subr.mxu0 0.0
    %2091 = vmatpush1.xpose.msra.mxu0 0.0
    %2092 = vmatprep.subr.mxu0 0.0
    %2093 = vmatpush1.xpose.msra.mxu0 0.0
    %2094 = vmatprep.subr.mxu0 0.0
    %2095 = vmatpush1.xpose.msra.mxu0 0.0
    %2096 = vmatprep.subr.mxu0 0.0
    %2097 = vmatpush1.xpose.msra.mxu0 0.0
    %2098 = vmatprep.subr.mxu0 0.0
    %2099 = vmatpush1.xpose.msra.mxu0 0.0
    %2100 = vmatprep.subr.mxu0 0.0
    %2101 = vmatpush1.xpose.msra.mxu0 %v2070
    %2102 = vmatprep.subr.mxu0 0.0
    %2103 = vmatpush1.xpose.msra.mxu0 %v2067
    %2104 = vmatprep.subr.mxu0 0.0
    %2105 = vmatpush2.xpose.msra.mxu0 0.0
    %2106 = vmatprep.subr.mxu0 0.0
    %2107 = vmatpush2.xpose.msra.mxu0 0.0
    %2108 = vmatprep.subr.mxu0 0.0
    %2109 = vmatpush2.xpose.msra.mxu0 0.0
    %2110 = vmatprep.subr.mxu0 0.0
    %2111 = vmatpush2.xpose.msra.mxu0 0.0
    %2112 = vmatprep.subr.mxu0 0.0
    %2113 = vmatpush2.xpose.msra.mxu0 0.0
    %2114 = vmatprep.subr.mxu0 0.0
    %2115 = vmatpush2.xpose.msra.mxu0 0.0
    %2116 = vmatprep.subr.mxu0 0.0
    %2117 = vmatpush2.xpose.msra.mxu0 0.0
    %2118 = vmatprep.subr.mxu0 0.0
    %2119 = vmatpush2.xpose.msra.mxu0 0.0
    %2120 = vmatprep.subr.mxu0 0.0
    %2121 = vmatpush2.xpose.msra.mxu0 0.0
    %2122 = vmatprep.subr.mxu0 0.0
    %2123 = vmatpush2.xpose.msra.mxu0 0.0
    %2124 = vmatprep.subr.mxu0 0.0
    %2125 = vmatpush2.xpose.msra.mxu0 0.0
    %2126 = vmatprep.subr.mxu0 0.0
    %2127 = vmatpush2.xpose.msra.mxu0 0.0
    %2128 = vmatprep.subr.mxu0 0.0
    %2129 = vmatpush2.xpose.msra.mxu0 0.0
    %2130 = vmatprep.subr.mxu0 0.0
    %2131 = vmatpush2.xpose.msra.mxu0 0.0
    %2132 = vmatprep.subr.mxu0 0.0
    %2133 = vmatpush2.xpose.msra.mxu0 0.0
    %2134 = vmatprep.subr.mxu0 0.0
    %2135 = vmatpush2.xpose.msra.mxu0 0.0
    %2136 = vmatprep.mubr.f32.mxu0 0.0
    %2137 = vmatmul.mubr.f32.gmra.mxu0 %v2064
    %v2138 = vpop.f32.mrf.mxu0
    %v2139 = vadd.f32 0.0, %v2138
    %v2140 = vpop.f32.mrf.mxu0
    %2141 = vdwg.mxu0
    %v2142 = vmul.f32 %v2060, 0.17677669
    %v2143 = vmul.f32 %v2139, 0.17677669
    %v2144 = vadd.f32 %v2142, %v196
    %v2145 = vadd.f32 %v2143, %v196
    %vm2146 = vcmask 130048
    %v2147 = vsel %vm2146, %v2144, -inf
    %2148 = vmax.xlane.f32.xlu0 %v2147
    %v2149 = vpop.xlane.xlu0 %2148
    %v2150 = vsel %vm2146, %v2145, -inf
    %2151 = vmax.xlane.f32.xlu0 %v2150
    %v2152 = vpop.xlane.xlu0 %2151
    %v2153 = vsub.f32 %v2144, %v2149
    %v2154 = vsub.f32 %v2145, %v2152
    %v2155 = vmul.f32 %v2153, 1.442695
    %v2156 = vpow.pop %v2155
    %v2157 = vmul.f32 %v2154, 1.442695
    %v2158 = vpow.pop %v2157
    %v2159 = vsel %vm2146, %v2156, 0.0
    %2160 = vadd.xlane.f32.xlu0 %v2159
    %v2161 = vpop.xlane.xlu0 %2160
    %v2162 = vsel %vm2146, %v2158, 0.0
    %2163 = vadd.xlane.f32.xlu0 %v2162
    %v2164 = vpop.xlane.xlu0 %2163
    %v2165 = vrcp.pop %v2161
    %v2166 = vrcp.pop %v2164
    %v2167 = vmul.f32 %v2156, %v2165
    %v2168 = vmul.f32 %v2158, %v2166
    %2169 = vrot.lane.b32.xlu0 %v179, 32
    %v2170 = vpop.permute.xlu0 %2169
    %v2172 = vmul.f32 %v1964, %v2170
    %v2173 = vmul.f32 %v1969, %v2170
    %v2174 = vmul.f32 %v1974, %v2170
    %v2175 = vmul.f32 %v1979, %v2170
    %v2176 = vmul.f32 %v1873, %v184
    %v2177 = vmul.f32 %v1878, %v184
    %v2179 = vsel %vm82, %v2176, 0
    %2181 = vmatprep.subr.mxu0 0.0
    %2182 = vmatpush1.xpose.msra.mxu0 0.0
    %2183 = vmatprep.subr.mxu0 0.0
    %2184 = vmatpush1.xpose.msra.mxu0 0.0
    %2185 = vmatprep.subr.mxu0 0.0
    %2186 = vmatpush1.xpose.msra.mxu0 0.0
    %2187 = vmatprep.subr.mxu0 0.0
    %2188 = vmatpush1.xpose.msra.mxu0 0.0
    %2189 = vmatprep.subr.mxu0 0.0
    %2190 = vmatpush1.xpose.msra.mxu0 0.0
    %2191 = vmatprep.subr.mxu0 0.0
    %2192 = vmatpush1.xpose.msra.mxu0 0.0
    %2193 = vmatprep.subr.mxu0 0.0
    %2194 = vmatpush1.xpose.msra.mxu0 0.0
    %2195 = vmatprep.subr.mxu0 0.0
    %2196 = vmatpush1.xpose.msra.mxu0 0.0
    %2197 = vmatprep.subr.mxu0 0.0
    %2198 = vmatpush1.xpose.msra.mxu0 0.0
    %2199 = vmatprep.subr.mxu0 0.0
    %2200 = vmatpush1.xpose.msra.mxu0 0.0
    %2201 = vmatprep.subr.mxu0 0.0
    %2202 = vmatpush1.xpose.msra.mxu0 0.0
    %2203 = vmatprep.subr.mxu0 0.0
    %2204 = vmatpush1.xpose.msra.mxu0 0.0
    %2205 = vmatprep.subr.mxu0 0.0
    %2206 = vmatpush1.xpose.msra.mxu0 0.0
    %2207 = vmatprep.subr.mxu0 0.0
    %2208 = vmatpush1.xpose.msra.mxu0 0.0
    %2209 = vmatprep.subr.mxu0 0.0
    %2210 = vmatpush1.xpose.msra.mxu0 %v1991
    %2211 = vmatprep.subr.mxu0 0.0
    %2212 = vmatpush1.xpose.msra.mxu0 %v1988
    %2213 = vmatprep.subr.mxu0 0.0
    %2214 = vmatpush2.xpose.msra.mxu0 0.0
    %2215 = vmatprep.subr.mxu0 0.0
    %2216 = vmatpush2.xpose.msra.mxu0 0.0
    %2217 = vmatprep.subr.mxu0 0.0
    %2218 = vmatpush2.xpose.msra.mxu0 0.0
    %2219 = vmatprep.subr.mxu0 0.0
    %2220 = vmatpush2.xpose.msra.mxu0 0.0
    %2221 = vmatprep.subr.mxu0 0.0
    %2222 = vmatpush2.xpose.msra.mxu0 0.0
    %2223 = vmatprep.subr.mxu0 0.0
    %2224 = vmatpush2.xpose.msra.mxu0 0.0
    %2225 = vmatprep.subr.mxu0 0.0
    %2226 = vmatpush2.xpose.msra.mxu0 0.0
    %2227 = vmatprep.subr.mxu0 0.0
    %2228 = vmatpush2.xpose.msra.mxu0 0.0
    %2229 = vmatprep.subr.mxu0 0.0
    %2230 = vmatpush2.xpose.msra.mxu0 0.0
    %2231 = vmatprep.subr.mxu0 0.0
    %2232 = vmatpush2.xpose.msra.mxu0 0.0
    %2233 = vmatprep.subr.mxu0 0.0
    %2234 = vmatpush2.xpose.msra.mxu0 0.0
    %2235 = vmatprep.subr.mxu0 0.0
    %2236 = vmatpush2.xpose.msra.mxu0 0.0
    %2237 = vmatprep.subr.mxu0 0.0
    %2238 = vmatpush2.xpose.msra.mxu0 0.0
    %2239 = vmatprep.subr.mxu0 0.0
    %2240 = vmatpush2.xpose.msra.mxu0 0.0
    %2241 = vmatprep.subr.mxu0 0.0
    %2242 = vmatpush2.xpose.msra.mxu0 0.0
    %2243 = vmatprep.subr.mxu0 0.0
    %2244 = vmatpush2.xpose.msra.mxu0 0.0
    %2245 = vmatprep.mubr.f32.mxu0 0.0
    %2246 = vmatmul.mubr.f32.gmra.mxu0 %v2179
    %v2247 = vpop.f32.mrf.mxu0
    %v2248 = vadd.f32 0.0, %v2247
    %v2249 = vpop.f32.mrf.mxu0
    %2250 = vdwg.mxu0
    %v2252 = vsel %vm82, %v2177, 0
    %2254 = vmatprep.subr.mxu0 0.0
    %2255 = vmatpush1.xpose.msra.mxu0 0.0
    %2256 = vmatprep.subr.mxu0 0.0
    %2257 = vmatpush1.xpose.msra.mxu0 0.0
    %2258 = vmatprep.subr.mxu0 0.0
    %2259 = vmatpush1.xpose.msra.mxu0 0.0
    %2260 = vmatprep.subr.mxu0 0.0
    %2261 = vmatpush1.xpose.msra.mxu0 0.0
    %2262 = vmatprep.subr.mxu0 0.0
    %2263 = vmatpush1.xpose.msra.mxu0 0.0
    %2264 = vmatprep.subr.mxu0 0.0
    %2265 = vmatpush1.xpose.msra.mxu0 0.0
    %2266 = vmatprep.subr.mxu0 0.0
    %2267 = vmatpush1.xpose.msra.mxu0 0.0
    %2268 = vmatprep.subr.mxu0 0.0
    %2269 = vmatpush1.xpose.msra.mxu0 0.0
    %2270 = vmatprep.subr.mxu0 0.0
    %2271 = vmatpush1.xpose.msra.mxu0 0.0
    %2272 = vmatprep.subr.mxu0 0.0
    %2273 = vmatpush1.xpose.msra.mxu0 0.0
    %2274 = vmatprep.subr.mxu0 0.0
    %2275 = vmatpush1.xpose.msra.mxu0 0.0
    %2276 = vmatprep.subr.mxu0 0.0
    %2277 = vmatpush1.xpose.msra.mxu0 0.0
    %2278 = vmatprep.subr.mxu0 0.0
    %2279 = vmatpush1.xpose.msra.mxu0 0.0
    %2280 = vmatprep.subr.mxu0 0.0
    %2281 = vmatpush1.xpose.msra.mxu0 0.0
    %2282 = vmatprep.subr.mxu0 0.0
    %2283 = vmatpush1.xpose.msra.mxu0 %v2070
    %2284 = vmatprep.subr.mxu0 0.0
    %2285 = vmatpush1.xpose.msra.mxu0 %v2067
    %2286 = vmatprep.subr.mxu0 0.0
    %2287 = vmatpush2.xpose.msra.mxu0 0.0
    %2288 = vmatprep.subr.mxu0 0.0
    %2289 = vmatpush2.xpose.msra.mxu0 0.0
    %2290 = vmatprep.subr.mxu0 0.0
    %2291 = vmatpush2.xpose.msra.mxu0 0.0
    %2292 = vmatprep.subr.mxu0 0.0
    %2293 = vmatpush2.xpose.msra.mxu0 0.0
    %2294 = vmatprep.subr.mxu0 0.0
    %2295 = vmatpush2.xpose.msra.mxu0 0.0
    %2296 = vmatprep.subr.mxu0 0.0
    %2297 = vmatpush2.xpose.msra.mxu0 0.0
    %2298 = vmatprep.subr.mxu0 0.0
    %2299 = vmatpush2.xpose.msra.mxu0 0.0
    %2300 = vmatprep.subr.mxu0 0.0
    %2301 = vmatpush2.xpose.msra.mxu0 0.0
    %2302 = vmatprep.subr.mxu0 0.0
    %2303 = vmatpush2.xpose.msra.mxu0 0.0
    %2304 = vmatprep.subr.mxu0 0.0
    %2305 = vmatpush2.xpose.msra.mxu0 0.0
    %2306 = vmatprep.subr.mxu0 0.0
    %2307 = vmatpush2.xpose.msra.mxu0 0.0
    %2308 = vmatprep.subr.mxu0 0.0
    %2309 = vmatpush2.xpose.msra.mxu0 0.0
    %2310 = vmatprep.subr.mxu0 0.0
    %2311 = vmatpush2.xpose.msra.mxu0 0.0
    %2312 = vmatprep.subr.mxu0 0.0
    %2313 = vmatpush2.xpose.msra.mxu0 0.0
    %2314 = vmatprep.subr.mxu0 0.0
    %2315 = vmatpush2.xpose.msra.mxu0 0.0
    %2316 = vmatprep.subr.mxu0 0.0
    %2317 = vmatpush2.xpose.msra.mxu0 0.0
    %2318 = vmatprep.mubr.f32.mxu0 0.0
    %2319 = vmatmul.mubr.f32.gmra.mxu0 %v2252
    %v2320 = vpop.f32.mrf.mxu0
    %v2321 = vadd.f32 0.0, %v2320
    %v2322 = vpop.f32.mrf.mxu0
    %2323 = vdwg.mxu0
    %v2324 = vmul.f32 %v2248, 0.17677669
    %v2325 = vmul.f32 %v2321, 0.17677669
    %v2326 = vadd.f32 %v2324, %v196
    %v2327 = vadd.f32 %v2325, %v196
    %v2328 = vsel %vm2146, %v2326, -inf
    %2329 = vmax.xlane.f32.xlu0 %v2328
    %v2330 = vpop.xlane.xlu0 %2329
    %v2331 = vsel %vm2146, %v2327, -inf
    %2332 = vmax.xlane.f32.xlu0 %v2331
    %v2333 = vpop.xlane.xlu0 %2332
    %v2334 = vsub.f32 %v2326, %v2330
    %v2335 = vsub.f32 %v2327, %v2333
    %v2336 = vmul.f32 %v2334, 1.442695
    %v2337 = vpow.pop %v2336
    %v2338 = vmul.f32 %v2335, 1.442695
    %v2339 = vpow.pop %v2338
    %v2340 = vsel %vm2146, %v2337, 0.0
    %2341 = vadd.xlane.f32.xlu0 %v2340
    %v2342 = vpop.xlane.xlu0 %2341
    %v2343 = vsel %vm2146, %v2339, 0.0
    %2344 = vadd.xlane.f32.xlu0 %v2343
    %v2345 = vpop.xlane.xlu0 %2344
    %v2346 = vrcp.pop %v2342
    %v2347 = vrcp.pop %v2345
    %v2348 = vmul.f32 %v2337, %v2346
    %v2349 = vmul.f32 %v2339, %v2347
    %2350 = vrot.lane.b32.xlu0 %v184, 32
    %v2351 = vpop.permute.xlu0 %2350
    %v2353 = vmul.f32 %v1964, %v2351
    %v2354 = vmul.f32 %v1969, %v2351
    %v2355 = vmul.f32 %v1974, %v2351
    %v2356 = vmul.f32 %v1979, %v2351
    %2359 = vrot.lane.b32.xlu0 %v2353, 96
    %v2360 = vpop.permute.xlu0 %2359
    %2361 = vrot.lane.b32.xlu0 %v2354, 96
    %v2362 = vpop.permute.xlu0 %2361
    %v2366 = vsel %vm2146, %v2348, 0
    %2368 = vmatprep.subr.mxu0 0.0
    %2369 = vmatpush1.msra.mxu0 0.0
    %2370 = vmatprep.subr.mxu0 0.0
    %2371 = vmatpush1.msra.mxu0 0.0
    %2372 = vmatprep.subr.mxu0 0.0
    %2373 = vmatpush1.msra.mxu0 0.0
    %2374 = vmatprep.subr.mxu0 0.0
    %2375 = vmatpush1.msra.mxu0 0.0
    %2376 = vmatprep.subr.mxu0 0.0
    %2377 = vmatpush1.msra.mxu0 0.0
    %2378 = vmatprep.subr.mxu0 0.0
    %2379 = vmatpush1.msra.mxu0 0.0
    %2380 = vmatprep.subr.mxu0 0.0
    %2381 = vmatpush1.msra.mxu0 0.0
    %2382 = vmatprep.subr.mxu0 0.0
    %2383 = vmatpush1.msra.mxu0 0.0
    %2384 = vmatprep.subr.mxu0 0.0
    %2385 = vmatpush1.msra.mxu0 0.0
    %2386 = vmatprep.subr.mxu0 0.0
    %2387 = vmatpush1.msra.mxu0 0.0
    %2388 = vmatprep.subr.mxu0 0.0
    %2389 = vmatpush1.msra.mxu0 0.0
    %2390 = vmatprep.subr.mxu0 0.0
    %2391 = vmatpush1.msra.mxu0 0.0
    %2392 = vmatprep.subr.mxu0 0.0
    %2393 = vmatpush1.msra.mxu0 0.0
    %2394 = vmatprep.subr.mxu0 0.0
    %2395 = vmatpush1.msra.mxu0 0.0
    %2396 = vmatprep.subr.mxu0 0.0
    %2397 = vmatpush1.msra.mxu0 %v2362
    %2398 = vmatprep.subr.mxu0 0.0
    %2399 = vmatpush1.msra.mxu0 %v2360
    %2400 = vmatprep.subr.mxu0 0.0
    %2401 = vmatpush2.msra.mxu0 0.0
    %2402 = vmatprep.subr.mxu0 0.0
    %2403 = vmatpush2.msra.mxu0 0.0
    %2404 = vmatprep.subr.mxu0 0.0
    %2405 = vmatpush2.msra.mxu0 0.0
    %2406 = vmatprep.subr.mxu0 0.0
    %2407 = vmatpush2.msra.mxu0 0.0
    %2408 = vmatprep.subr.mxu0 0.0
    %2409 = vmatpush2.msra.mxu0 0.0
    %2410 = vmatprep.subr.mxu0 0.0
    %2411 = vmatpush2.msra.mxu0 0.0
    %2412 = vmatprep.subr.mxu0 0.0
    %2413 = vmatpush2.msra.mxu0 0.0
    %2414 = vmatprep.subr.mxu0 0.0
    %2415 = vmatpush2.msra.mxu0 0.0
    %2416 = vmatprep.subr.mxu0 0.0
    %2417 = vmatpush2.msra.mxu0 0.0
    %2418 = vmatprep.subr.mxu0 0.0
    %2419 = vmatpush2.msra.mxu0 0.0
    %2420 = vmatprep.subr.mxu0 0.0
    %2421 = vmatpush2.msra.mxu0 0.0
    %2422 = vmatprep.subr.mxu0 0.0
    %2423 = vmatpush2.msra.mxu0 0.0
    %2424 = vmatprep.subr.mxu0 0.0
    %2425 = vmatpush2.msra.mxu0 0.0
    %2426 = vmatprep.subr.mxu0 0.0
    %2427 = vmatpush2.msra.mxu0 0.0
    %2428 = vmatprep.subr.mxu0 0.0
    %2429 = vmatpush2.msra.mxu0 0.0
    %2430 = vmatprep.subr.mxu0 0.0
    %2431 = vmatpush2.msra.mxu0 0.0
    %2432 = vmatprep.mubr.f32.mxu0 0.0
    %2433 = vmatmul.mubr.f32.gmra.mxu0 %v2366
    %v2434 = vpop.f32.mrf.mxu0
    %v2435 = vadd.f32 0.0, %v2434
    %v2436 = vpop.f32.mrf.mxu0
    %2437 = vdwg.mxu0
    %2440 = vrot.lane.b32.xlu0 %v2355, 96
    %v2441 = vpop.permute.xlu0 %2440
    %2442 = vrot.lane.b32.xlu0 %v2356, 96
    %v2443 = vpop.permute.xlu0 %2442
    %v2447 = vsel %vm2146, %v2349, 0
    %2449 = vmatprep.subr.mxu0 0.0
    %2450 = vmatpush1.msra.mxu0 0.0
    %2451 = vmatprep.subr.mxu0 0.0
    %2452 = vmatpush1.msra.mxu0 0.0
    %2453 = vmatprep.subr.mxu0 0.0
    %2454 = vmatpush1.msra.mxu0 0.0
    %2455 = vmatprep.subr.mxu0 0.0
    %2456 = vmatpush1.msra.mxu0 0.0
    %2457 = vmatprep.subr.mxu0 0.0
    %2458 = vmatpush1.msra.mxu0 0.0
    %2459 = vmatprep.subr.mxu0 0.0
    %2460 = vmatpush1.msra.mxu0 0.0
    %2461 = vmatprep.subr.mxu0 0.0
    %2462 = vmatpush1.msra.mxu0 0.0
    %2463 = vmatprep.subr.mxu0 0.0
    %2464 = vmatpush1.msra.mxu0 0.0
    %2465 = vmatprep.subr.mxu0 0.0
    %2466 = vmatpush1.msra.mxu0 0.0
    %2467 = vmatprep.subr.mxu0 0.0
    %2468 = vmatpush1.msra.mxu0 0.0
    %2469 = vmatprep.subr.mxu0 0.0
    %2470 = vmatpush1.msra.mxu0 0.0
    %2471 = vmatprep.subr.mxu0 0.0
    %2472 = vmatpush1.msra.mxu0 0.0
    %2473 = vmatprep.subr.mxu0 0.0
    %2474 = vmatpush1.msra.mxu0 0.0
    %2475 = vmatprep.subr.mxu0 0.0
    %2476 = vmatpush1.msra.mxu0 0.0
    %2477 = vmatprep.subr.mxu0 0.0
    %2478 = vmatpush1.msra.mxu0 %v2443
    %2479 = vmatprep.subr.mxu0 0.0
    %2480 = vmatpush1.msra.mxu0 %v2441
    %2481 = vmatprep.subr.mxu0 0.0
    %2482 = vmatpush2.msra.mxu0 0.0
    %2483 = vmatprep.subr.mxu0 0.0
    %2484 = vmatpush2.msra.mxu0 0.0
    %2485 = vmatprep.subr.mxu0 0.0
    %2486 = vmatpush2.msra.mxu0 0.0
    %2487 = vmatprep.subr.mxu0 0.0
    %2488 = vmatpush2.msra.mxu0 0.0
    %2489 = vmatprep.subr.mxu0 0.0
    %2490 = vmatpush2.msra.mxu0 0.0
    %2491 = vmatprep.subr.mxu0 0.0
    %2492 = vmatpush2.msra.mxu0 0.0
    %2493 = vmatprep.subr.mxu0 0.0
    %2494 = vmatpush2.msra.mxu0 0.0
    %2495 = vmatprep.subr.mxu0 0.0
    %2496 = vmatpush2.msra.mxu0 0.0
    %2497 = vmatprep.subr.mxu0 0.0
    %2498 = vmatpush2.msra.mxu0 0.0
    %2499 = vmatprep.subr.mxu0 0.0
    %2500 = vmatpush2.msra.mxu0 0.0
    %2501 = vmatprep.subr.mxu0 0.0
    %2502 = vmatpush2.msra.mxu0 0.0
    %2503 = vmatprep.subr.mxu0 0.0
    %2504 = vmatpush2.msra.mxu0 0.0
    %2505 = vmatprep.subr.mxu0 0.0
    %2506 = vmatpush2.msra.mxu0 0.0
    %2507 = vmatprep.subr.mxu0 0.0
    %2508 = vmatpush2.msra.mxu0 0.0
    %2509 = vmatprep.subr.mxu0 0.0
    %2510 = vmatpush2.msra.mxu0 0.0
    %2511 = vmatprep.subr.mxu0 0.0
    %2512 = vmatpush2.msra.mxu0 0.0
    %2513 = vmatprep.mubr.f32.mxu0 0.0
    %2514 = vmatmul.mubr.f32.gmra.mxu0 %v2447
    %v2515 = vpop.f32.mrf.mxu0
    %v2516 = vadd.f32 0.0, %v2515
    %v2517 = vpop.f32.mrf.mxu0
    %2518 = vdwg.mxu0
    %2521 = vrot.lane.b32.xlu0 %v2172, 96
    %v2522 = vpop.permute.xlu0 %2521
    %2523 = vrot.lane.b32.xlu0 %v2173, 96
    %v2524 = vpop.permute.xlu0 %2523
    %v2528 = vsel %vm2146, %v2167, 0
    %2530 = vmatprep.subr.mxu0 0.0
    %2531 = vmatpush1.msra.mxu0 0.0
    %2532 = vmatprep.subr.mxu0 0.0
    %2533 = vmatpush1.msra.mxu0 0.0
    %2534 = vmatprep.subr.mxu0 0.0
    %2535 = vmatpush1.msra.mxu0 0.0
    %2536 = vmatprep.subr.mxu0 0.0
    %2537 = vmatpush1.msra.mxu0 0.0
    %2538 = vmatprep.subr.mxu0 0.0
    %2539 = vmatpush1.msra.mxu0 0.0
    %2540 = vmatprep.subr.mxu0 0.0
    %2541 = vmatpush1.msra.mxu0 0.0
    %2542 = vmatprep.subr.mxu0 0.0
    %2543 = vmatpush1.msra.mxu0 0.0
    %2544 = vmatprep.subr.mxu0 0.0
    %2545 = vmatpush1.msra.mxu0 0.0
    %2546 = vmatprep.subr.mxu0 0.0
    %2547 = vmatpush1.msra.mxu0 0.0
    %2548 = vmatprep.subr.mxu0 0.0
    %2549 = vmatpush1.msra.mxu0 0.0
    %2550 = vmatprep.subr.mxu0 0.0
    %2551 = vmatpush1.msra.mxu0 0.0
    %2552 = vmatprep.subr.mxu0 0.0
    %2553 = vmatpush1.msra.mxu0 0.0
    %2554 = vmatprep.subr.mxu0 0.0
    %2555 = vmatpush1.msra.mxu0 0.0
    %2556 = vmatprep.subr.mxu0 0.0
    %2557 = vmatpush1.msra.mxu0 0.0
    %2558 = vmatprep.subr.mxu0 0.0
    %2559 = vmatpush1.msra.mxu0 %v2524
    %2560 = vmatprep.subr.mxu0 0.0
    %2561 = vmatpush1.msra.mxu0 %v2522
    %2562 = vmatprep.subr.mxu0 0.0
    %2563 = vmatpush2.msra.mxu0 0.0
    %2564 = vmatprep.subr.mxu0 0.0
    %2565 = vmatpush2.msra.mxu0 0.0
    %2566 = vmatprep.subr.mxu0 0.0
    %2567 = vmatpush2.msra.mxu0 0.0
    %2568 = vmatprep.subr.mxu0 0.0
    %2569 = vmatpush2.msra.mxu0 0.0
    %2570 = vmatprep.subr.mxu0 0.0
    %2571 = vmatpush2.msra.mxu0 0.0
    %2572 = vmatprep.subr.mxu0 0.0
    %2573 = vmatpush2.msra.mxu0 0.0
    %2574 = vmatprep.subr.mxu0 0.0
    %2575 = vmatpush2.msra.mxu0 0.0
    %2576 = vmatprep.subr.mxu0 0.0
    %2577 = vmatpush2.msra.mxu0 0.0
    %2578 = vmatprep.subr.mxu0 0.0
    %2579 = vmatpush2.msra.mxu0 0.0
    %2580 = vmatprep.subr.mxu0 0.0
    %2581 = vmatpush2.msra.mxu0 0.0
    %2582 = vmatprep.subr.mxu0 0.0
    %2583 = vmatpush2.msra.mxu0 0.0
    %2584 = vmatprep.subr.mxu0 0.0
    %2585 = vmatpush2.msra.mxu0 0.0
    %2586 = vmatprep.subr.mxu0 0.0
    %2587 = vmatpush2.msra.mxu0 0.0
    %2588 = vmatprep.subr.mxu0 0.0
    %2589 = vmatpush2.msra.mxu0 0.0
    %2590 = vmatprep.subr.mxu0 0.0
    %2591 = vmatpush2.msra.mxu0 0.0
    %2592 = vmatprep.subr.mxu0 0.0
    %2593 = vmatpush2.msra.mxu0 0.0
    %2594 = vmatprep.mubr.f32.mxu0 0.0
    %2595 = vmatmul.mubr.f32.gmra.mxu0 %v2528
    %v2596 = vpop.f32.mrf.mxu0
    %v2597 = vadd.f32 %v2435, %v2596
    %v2598 = vpop.f32.mrf.mxu0
    %2599 = vdwg.mxu0
    %2602 = vrot.lane.b32.xlu0 %v2174, 96
    %v2603 = vpop.permute.xlu0 %2602
    %2604 = vrot.lane.b32.xlu0 %v2175, 96
    %v2605 = vpop.permute.xlu0 %2604
    %v2609 = vsel %vm2146, %v2168, 0
    %2611 = vmatprep.subr.mxu0 0.0
    %2612 = vmatpush1.msra.mxu0 0.0
    %2613 = vmatprep.subr.mxu0 0.0
    %2614 = vmatpush1.msra.mxu0 0.0
    %2615 = vmatprep.subr.mxu0 0.0
    %2616 = vmatpush1.msra.mxu0 0.0
    %2617 = vmatprep.subr.mxu0 0.0
    %2618 = vmatpush1.msra.mxu0 0.0
    %2619 = vmatprep.subr.mxu0 0.0
    %2620 = vmatpush1.msra.mxu0 0.0
    %2621 = vmatprep.subr.mxu0 0.0
    %2622 = vmatpush1.msra.mxu0 0.0
    %2623 = vmatprep.subr.mxu0 0.0
    %2624 = vmatpush1.msra.mxu0 0.0
    %2625 = vmatprep.subr.mxu0 0.0
    %2626 = vmatpush1.msra.mxu0 0.0
    %2627 = vmatprep.subr.mxu0 0.0
    %2628 = vmatpush1.msra.mxu0 0.0
    %2629 = vmatprep.subr.mxu0 0.0
    %2630 = vmatpush1.msra.mxu0 0.0
    %2631 = vmatprep.subr.mxu0 0.0
    %2632 = vmatpush1.msra.mxu0 0.0
    %2633 = vmatprep.subr.mxu0 0.0
    %2634 = vmatpush1.msra.mxu0 0.0
    %2635 = vmatprep.subr.mxu0 0.0
    %2636 = vmatpush1.msra.mxu0 0.0
    %2637 = vmatprep.subr.mxu0 0.0
    %2638 = vmatpush1.msra.mxu0 0.0
    %2639 = vmatprep.subr.mxu0 0.0
    %2640 = vmatpush1.msra.mxu0 %v2605
    %2641 = vmatprep.subr.mxu0 0.0
    %2642 = vmatpush1.msra.mxu0 %v2603
    %2643 = vmatprep.subr.mxu0 0.0
    %2644 = vmatpush2.msra.mxu0 0.0
    %2645 = vmatprep.subr.mxu0 0.0
    %2646 = vmatpush2.msra.mxu0 0.0
    %2647 = vmatprep.subr.mxu0 0.0
    %2648 = vmatpush2.msra.mxu0 0.0
    %2649 = vmatprep.subr.mxu0 0.0
    %2650 = vmatpush2.msra.mxu0 0.0
    %2651 = vmatprep.subr.mxu0 0.0
    %2652 = vmatpush2.msra.mxu0 0.0
    %2653 = vmatprep.subr.mxu0 0.0
    %2654 = vmatpush2.msra.mxu0 0.0
    %2655 = vmatprep.subr.mxu0 0.0
    %2656 = vmatpush2.msra.mxu0 0.0
    %2657 = vmatprep.subr.mxu0 0.0
    %2658 = vmatpush2.msra.mxu0 0.0
    %2659 = vmatprep.subr.mxu0 0.0
    %2660 = vmatpush2.msra.mxu0 0.0
    %2661 = vmatprep.subr.mxu0 0.0
    %2662 = vmatpush2.msra.mxu0 0.0
    %2663 = vmatprep.subr.mxu0 0.0
    %2664 = vmatpush2.msra.mxu0 0.0
    %2665 = vmatprep.subr.mxu0 0.0
    %2666 = vmatpush2.msra.mxu0 0.0
    %2667 = vmatprep.subr.mxu0 0.0
    %2668 = vmatpush2.msra.mxu0 0.0
    %2669 = vmatprep.subr.mxu0 0.0
    %2670 = vmatpush2.msra.mxu0 0.0
    %2671 = vmatprep.subr.mxu0 0.0
    %2672 = vmatpush2.msra.mxu0 0.0
    %2673 = vmatprep.subr.mxu0 0.0
    %2674 = vmatpush2.msra.mxu0 0.0
    %2675 = vmatprep.mubr.f32.mxu0 0.0
    %2676 = vmatmul.mubr.f32.gmra.mxu0 %v2609
    %v2677 = vpop.f32.mrf.mxu0
    %v2678 = vadd.f32 %v2516, %v2677
    %v2679 = vpop.f32.mrf.mxu0
    %2680 = vdwg.mxu0
    %v2681 = vmul.f32 %v1873, %v189
    %v2682 = vmul.f32 %v1878, %v189
    %v2684 = vsel %vm82, %v2681, 0
    %2686 = vmatprep.subr.mxu0 0.0
    %2687 = vmatpush1.xpose.msra.mxu0 0.0
    %2688 = vmatprep.subr.mxu0 0.0
    %2689 = vmatpush1.xpose.msra.mxu0 0.0
    %2690 = vmatprep.subr.mxu0 0.0
    %2691 = vmatpush1.xpose.msra.mxu0 0.0
    %2692 = vmatprep.subr.mxu0 0.0
    %2693 = vmatpush1.xpose.msra.mxu0 0.0
    %2694 = vmatprep.subr.mxu0 0.0
    %2695 = vmatpush1.xpose.msra.mxu0 0.0
    %2696 = vmatprep.subr.mxu0 0.0
    %2697 = vmatpush1.xpose.msra.mxu0 0.0
    %2698 = vmatprep.subr.mxu0 0.0
    %2699 = vmatpush1.xpose.msra.mxu0 0.0
    %2700 = vmatprep.subr.mxu0 0.0
    %2701 = vmatpush1.xpose.msra.mxu0 0.0
    %2702 = vmatprep.subr.mxu0 0.0
    %2703 = vmatpush1.xpose.msra.mxu0 0.0
    %2704 = vmatprep.subr.mxu0 0.0
    %2705 = vmatpush1.xpose.msra.mxu0 0.0
    %2706 = vmatprep.subr.mxu0 0.0
    %2707 = vmatpush1.xpose.msra.mxu0 0.0
    %2708 = vmatprep.subr.mxu0 0.0
    %2709 = vmatpush1.xpose.msra.mxu0 0.0
    %2710 = vmatprep.subr.mxu0 0.0
    %2711 = vmatpush1.xpose.msra.mxu0 0.0
    %2712 = vmatprep.subr.mxu0 0.0
    %2713 = vmatpush1.xpose.msra.mxu0 0.0
    %2714 = vmatprep.subr.mxu0 0.0
    %2715 = vmatpush1.xpose.msra.mxu0 %v1991
    %2716 = vmatprep.subr.mxu0 0.0
    %2717 = vmatpush1.xpose.msra.mxu0 %v1988
    %2718 = vmatprep.subr.mxu0 0.0
    %2719 = vmatpush2.xpose.msra.mxu0 0.0
    %2720 = vmatprep.subr.mxu0 0.0
    %2721 = vmatpush2.xpose.msra.mxu0 0.0
    %2722 = vmatprep.subr.mxu0 0.0
    %2723 = vmatpush2.xpose.msra.mxu0 0.0
    %2724 = vmatprep.subr.mxu0 0.0
    %2725 = vmatpush2.xpose.msra.mxu0 0.0
    %2726 = vmatprep.subr.mxu0 0.0
    %2727 = vmatpush2.xpose.msra.mxu0 0.0
    %2728 = vmatprep.subr.mxu0 0.0
    %2729 = vmatpush2.xpose.msra.mxu0 0.0
    %2730 = vmatprep.subr.mxu0 0.0
    %2731 = vmatpush2.xpose.msra.mxu0 0.0
    %2732 = vmatprep.subr.mxu0 0.0
    %2733 = vmatpush2.xpose.msra.mxu0 0.0
    %2734 = vmatprep.subr.mxu0 0.0
    %2735 = vmatpush2.xpose.msra.mxu0 0.0
    %2736 = vmatprep.subr.mxu0 0.0
    %2737 = vmatpush2.xpose.msra.mxu0 0.0
    %2738 = vmatprep.subr.mxu0 0.0
    %2739 = vmatpush2.xpose.msra.mxu0 0.0
    %2740 = vmatprep.subr.mxu0 0.0
    %2741 = vmatpush2.xpose.msra.mxu0 0.0
    %2742 = vmatprep.subr.mxu0 0.0
    %2743 = vmatpush2.xpose.msra.mxu0 0.0
    %2744 = vmatprep.subr.mxu0 0.0
    %2745 = vmatpush2.xpose.msra.mxu0 0.0
    %2746 = vmatprep.subr.mxu0 0.0
    %2747 = vmatpush2.xpose.msra.mxu0 0.0
    %2748 = vmatprep.subr.mxu0 0.0
    %2749 = vmatpush2.xpose.msra.mxu0 0.0
    %2750 = vmatprep.mubr.f32.mxu0 0.0
    %2751 = vmatmul.mubr.f32.gmra.mxu0 %v2684
    %v2752 = vpop.f32.mrf.mxu0
    %v2753 = vadd.f32 0.0, %v2752
    %v2754 = vpop.f32.mrf.mxu0
    %2755 = vdwg.mxu0
    %v2757 = vsel %vm82, %v2682, 0
    %2759 = vmatprep.subr.mxu0 0.0
    %2760 = vmatpush1.xpose.msra.mxu0 0.0
    %2761 = vmatprep.subr.mxu0 0.0
    %2762 = vmatpush1.xpose.msra.mxu0 0.0
    %2763 = vmatprep.subr.mxu0 0.0
    %2764 = vmatpush1.xpose.msra.mxu0 0.0
    %2765 = vmatprep.subr.mxu0 0.0
    %2766 = vmatpush1.xpose.msra.mxu0 0.0
    %2767 = vmatprep.subr.mxu0 0.0
    %2768 = vmatpush1.xpose.msra.mxu0 0.0
    %2769 = vmatprep.subr.mxu0 0.0
    %2770 = vmatpush1.xpose.msra.mxu0 0.0
    %2771 = vmatprep.subr.mxu0 0.0
    %2772 = vmatpush1.xpose.msra.mxu0 0.0
    %2773 = vmatprep.subr.mxu0 0.0
    %2774 = vmatpush1.xpose.msra.mxu0 0.0
    %2775 = vmatprep.subr.mxu0 0.0
    %2776 = vmatpush1.xpose.msra.mxu0 0.0
    %2777 = vmatprep.subr.mxu0 0.0
    %2778 = vmatpush1.xpose.msra.mxu0 0.0
    %2779 = vmatprep.subr.mxu0 0.0
    %2780 = vmatpush1.xpose.msra.mxu0 0.0
    %2781 = vmatprep.subr.mxu0 0.0
    %2782 = vmatpush1.xpose.msra.mxu0 0.0
    %2783 = vmatprep.subr.mxu0 0.0
    %2784 = vmatpush1.xpose.msra.mxu0 0.0
    %2785 = vmatprep.subr.mxu0 0.0
    %2786 = vmatpush1.xpose.msra.mxu0 0.0
    %2787 = vmatprep.subr.mxu0 0.0
    %2788 = vmatpush1.xpose.msra.mxu0 %v2070
    %2789 = vmatprep.subr.mxu0 0.0
    %2790 = vmatpush1.xpose.msra.mxu0 %v2067
    %2791 = vmatprep.subr.mxu0 0.0
    %2792 = vmatpush2.xpose.msra.mxu0 0.0
    %2793 = vmatprep.subr.mxu0 0.0
    %2794 = vmatpush2.xpose.msra.mxu0 0.0
    %2795 = vmatprep.subr.mxu0 0.0
    %2796 = vmatpush2.xpose.msra.mxu0 0.0
    %2797 = vmatprep.subr.mxu0 0.0
    %2798 = vmatpush2.xpose.msra.mxu0 0.0
    %2799 = vmatprep.subr.mxu0 0.0
    %2800 = vmatpush2.xpose.msra.mxu0 0.0
    %2801 = vmatprep.subr.mxu0 0.0
    %2802 = vmatpush2.xpose.msra.mxu0 0.0
    %2803 = vmatprep.subr.mxu0 0.0
    %2804 = vmatpush2.xpose.msra.mxu0 0.0
    %2805 = vmatprep.subr.mxu0 0.0
    %2806 = vmatpush2.xpose.msra.mxu0 0.0
    %2807 = vmatprep.subr.mxu0 0.0
    %2808 = vmatpush2.xpose.msra.mxu0 0.0
    %2809 = vmatprep.subr.mxu0 0.0
    %2810 = vmatpush2.xpose.msra.mxu0 0.0
    %2811 = vmatprep.subr.mxu0 0.0
    %2812 = vmatpush2.xpose.msra.mxu0 0.0
    %2813 = vmatprep.subr.mxu0 0.0
    %2814 = vmatpush2.xpose.msra.mxu0 0.0
    %2815 = vmatprep.subr.mxu0 0.0
    %2816 = vmatpush2.xpose.msra.mxu0 0.0
    %2817 = vmatprep.subr.mxu0 0.0
    %2818 = vmatpush2.xpose.msra.mxu0 0.0
    %2819 = vmatprep.subr.mxu0 0.0
    %2820 = vmatpush2.xpose.msra.mxu0 0.0
    %2821 = vmatprep.subr.mxu0 0.0
    %2822 = vmatpush2.xpose.msra.mxu0 0.0
    %2823 = vmatprep.mubr.f32.mxu0 0.0
    %2824 = vmatmul.mubr.f32.gmra.mxu0 %v2757
    %v2825 = vpop.f32.mrf.mxu0
    %v2826 = vadd.f32 0.0, %v2825
    %v2827 = vpop.f32.mrf.mxu0
    %2828 = vdwg.mxu0
    %v2829 = vmul.f32 %v2753, 0.17677669
    %v2830 = vmul.f32 %v2826, 0.17677669
    %v2831 = vadd.f32 %v2829, %v196
    %v2832 = vadd.f32 %v2830, %v196
    %v2833 = vsel %vm2146, %v2831, -inf
    %2834 = vmax.xlane.f32.xlu0 %v2833
    %v2835 = vpop.xlane.xlu0 %2834
    %v2836 = vsel %vm2146, %v2832, -inf
    %2837 = vmax.xlane.f32.xlu0 %v2836
    %v2838 = vpop.xlane.xlu0 %2837
    %v2839 = vsub.f32 %v2831, %v2835
    %v2840 = vsub.f32 %v2832, %v2838
    %v2841 = vmul.f32 %v2839, 1.442695
    %v2842 = vpow.pop %v2841
    %v2843 = vmul.f32 %v2840, 1.442695
    %v2844 = vpow.pop %v2843
    %v2845 = vsel %vm2146, %v2842, 0.0
    %2846 = vadd.xlane.f32.xlu0 %v2845
    %v2847 = vpop.xlane.xlu0 %2846
    %v2848 = vsel %vm2146, %v2844, 0.0
    %2849 = vadd.xlane.f32.xlu0 %v2848
    %v2850 = vpop.xlane.xlu0 %2849
    %v2851 = vrcp.pop %v2847
    %v2852 = vrcp.pop %v2850
    %v2853 = vmul.f32 %v2842, %v2851
    %v2854 = vmul.f32 %v2844, %v2852
    %2855 = vrot.lane.b32.xlu0 %v189, 32
    %v2856 = vpop.permute.xlu0 %2855
    %v2858 = vmul.f32 %v1964, %v2856
    %v2859 = vmul.f32 %v1969, %v2856
    %v2860 = vmul.f32 %v1974, %v2856
    %v2861 = vmul.f32 %v1979, %v2856
    %2864 = vrot.lane.b32.xlu0 %v2858, 96
    %v2865 = vpop.permute.xlu0 %2864
    %2866 = vrot.lane.b32.xlu0 %v2859, 96
    %v2867 = vpop.permute.xlu0 %2866
    %v2871 = vsel %vm2146, %v2853, 0
    %2873 = vmatprep.subr.mxu0 0.0
    %2874 = vmatpush1.msra.mxu0 0.0
    %2875 = vmatprep.subr.mxu0 0.0
    %2876 = vmatpush1.msra.mxu0 0.0
    %2877 = vmatprep.subr.mxu0 0.0
    %2878 = vmatpush1.msra.mxu0 0.0
    %2879 = vmatprep.subr.mxu0 0.0
    %2880 = vmatpush1.msra.mxu0 0.0
    %2881 = vmatprep.subr.mxu0 0.0
    %2882 = vmatpush1.msra.mxu0 0.0
    %2883 = vmatprep.subr.mxu0 0.0
    %2884 = vmatpush1.msra.mxu0 0.0
    %2885 = vmatprep.subr.mxu0 0.0
    %2886 = vmatpush1.msra.mxu0 0.0
    %2887 = vmatprep.subr.mxu0 0.0
    %2888 = vmatpush1.msra.mxu0 0.0
    %2889 = vmatprep.subr.mxu0 0.0
    %2890 = vmatpush1.msra.mxu0 0.0
    %2891 = vmatprep.subr.mxu0 0.0
    %2892 = vmatpush1.msra.mxu0 0.0
    %2893 = vmatprep.subr.mxu0 0.0
    %2894 = vmatpush1.msra.mxu0 0.0
    %2895 = vmatprep.subr.mxu0 0.0
    %2896 = vmatpush1.msra.mxu0 0.0
    %2897 = vmatprep.subr.mxu0 0.0
    %2898 = vmatpush1.msra.mxu0 0.0
    %2899 = vmatprep.subr.mxu0 0.0
    %2900 = vmatpush1.msra.mxu0 0.0
    %2901 = vmatprep.subr.mxu0 0.0
    %2902 = vmatpush1.msra.mxu0 %v2867
    %2903 = vmatprep.subr.mxu0 0.0
    %2904 = vmatpush1.msra.mxu0 %v2865
    %2905 = vmatprep.subr.mxu0 0.0
    %2906 = vmatpush2.msra.mxu0 0.0
    %2907 = vmatprep.subr.mxu0 0.0
    %2908 = vmatpush2.msra.mxu0 0.0
    %2909 = vmatprep.subr.mxu0 0.0
    %2910 = vmatpush2.msra.mxu0 0.0
    %2911 = vmatprep.subr.mxu0 0.0
    %2912 = vmatpush2.msra.mxu0 0.0
    %2913 = vmatprep.subr.mxu0 0.0
    %2914 = vmatpush2.msra.mxu0 0.0
    %2915 = vmatprep.subr.mxu0 0.0
    %2916 = vmatpush2.msra.mxu0 0.0
    %2917 = vmatprep.subr.mxu0 0.0
    %2918 = vmatpush2.msra.mxu0 0.0
    %2919 = vmatprep.subr.mxu0 0.0
    %2920 = vmatpush2.msra.mxu0 0.0
    %2921 = vmatprep.subr.mxu0 0.0
    %2922 = vmatpush2.msra.mxu0 0.0
    %2923 = vmatprep.subr.mxu0 0.0
    %2924 = vmatpush2.msra.mxu0 0.0
    %2925 = vmatprep.subr.mxu0 0.0
    %2926 = vmatpush2.msra.mxu0 0.0
    %2927 = vmatprep.subr.mxu0 0.0
    %2928 = vmatpush2.msra.mxu0 0.0
    %2929 = vmatprep.subr.mxu0 0.0
    %2930 = vmatpush2.msra.mxu0 0.0
    %2931 = vmatprep.subr.mxu0 0.0
    %2932 = vmatpush2.msra.mxu0 0.0
    %2933 = vmatprep.subr.mxu0 0.0
    %2934 = vmatpush2.msra.mxu0 0.0
    %2935 = vmatprep.subr.mxu0 0.0
    %2936 = vmatpush2.msra.mxu0 0.0
    %2937 = vmatprep.mubr.f32.mxu0 0.0
    %2938 = vmatmul.mubr.f32.gmra.mxu0 %v2871
    %v2939 = vpop.f32.mrf.mxu0
    %v2940 = vadd.f32 0.0, %v2939
    %v2941 = vpop.f32.mrf.mxu0
    %2942 = vdwg.mxu0
    %2945 = vrot.lane.b32.xlu0 %v2860, 96
    %v2946 = vpop.permute.xlu0 %2945
    %2947 = vrot.lane.b32.xlu0 %v2861, 96
    %v2948 = vpop.permute.xlu0 %2947
    %v2952 = vsel %vm2146, %v2854, 0
    %2954 = vmatprep.subr.mxu0 0.0
    %2955 = vmatpush1.msra.mxu0 0.0
    %2956 = vmatprep.subr.mxu0 0.0
    %2957 = vmatpush1.msra.mxu0 0.0
    %2958 = vmatprep.subr.mxu0 0.0
    %2959 = vmatpush1.msra.mxu0 0.0
    %2960 = vmatprep.subr.mxu0 0.0
    %2961 = vmatpush1.msra.mxu0 0.0
    %2962 = vmatprep.subr.mxu0 0.0
    %2963 = vmatpush1.msra.mxu0 0.0
    %2964 = vmatprep.subr.mxu0 0.0
    %2965 = vmatpush1.msra.mxu0 0.0
    %2966 = vmatprep.subr.mxu0 0.0
    %2967 = vmatpush1.msra.mxu0 0.0
    %2968 = vmatprep.subr.mxu0 0.0
    %2969 = vmatpush1.msra.mxu0 0.0
    %2970 = vmatprep.subr.mxu0 0.0
    %2971 = vmatpush1.msra.mxu0 0.0
    %2972 = vmatprep.subr.mxu0 0.0
    %2973 = vmatpush1.msra.mxu0 0.0
    %2974 = vmatprep.subr.mxu0 0.0
    %2975 = vmatpush1.msra.mxu0 0.0
    %2976 = vmatprep.subr.mxu0 0.0
    %2977 = vmatpush1.msra.mxu0 0.0
    %2978 = vmatprep.subr.mxu0 0.0
    %2979 = vmatpush1.msra.mxu0 0.0
    %2980 = vmatprep.subr.mxu0 0.0
    %2981 = vmatpush1.msra.mxu0 0.0
    %2982 = vmatprep.subr.mxu0 0.0
    %2983 = vmatpush1.msra.mxu0 %v2948
    %2984 = vmatprep.subr.mxu0 0.0
    %2985 = vmatpush1.msra.mxu0 %v2946
    %2986 = vmatprep.subr.mxu0 0.0
    %2987 = vmatpush2.msra.mxu0 0.0
    %2988 = vmatprep.subr.mxu0 0.0
    %2989 = vmatpush2.msra.mxu0 0.0
    %2990 = vmatprep.subr.mxu0 0.0
    %2991 = vmatpush2.msra.mxu0 0.0
    %2992 = vmatprep.subr.mxu0 0.0
    %2993 = vmatpush2.msra.mxu0 0.0
    %2994 = vmatprep.subr.mxu0 0.0
    %2995 = vmatpush2.msra.mxu0 0.0
    %2996 = vmatprep.subr.mxu0 0.0
    %2997 = vmatpush2.msra.mxu0 0.0
    %2998 = vmatprep.subr.mxu0 0.0
    %2999 = vmatpush2.msra.mxu0 0.0
    %3000 = vmatprep.subr.mxu0 0.0
    %3001 = vmatpush2.msra.mxu0 0.0
    %3002 = vmatprep.subr.mxu0 0.0
    %3003 = vmatpush2.msra.mxu0 0.0
    %3004 = vmatprep.subr.mxu0 0.0
    %3005 = vmatpush2.msra.mxu0 0.0
    %3006 = vmatprep.subr.mxu0 0.0
    %3007 = vmatpush2.msra.mxu0 0.0
    %3008 = vmatprep.subr.mxu0 0.0
    %3009 = vmatpush2.msra.mxu0 0.0
    %3010 = vmatprep.subr.mxu0 0.0
    %3011 = vmatpush2.msra.mxu0 0.0
    %3012 = vmatprep.subr.mxu0 0.0
    %3013 = vmatpush2.msra.mxu0 0.0
    %3014 = vmatprep.subr.mxu0 0.0
    %3015 = vmatpush2.msra.mxu0 0.0
    %3016 = vmatprep.subr.mxu0 0.0
    %3017 = vmatpush2.msra.mxu0 0.0
    %3018 = vmatprep.mubr.f32.mxu0 0.0
    %3019 = vmatmul.mubr.f32.gmra.mxu0 %v2952
    %v3020 = vpop.f32.mrf.mxu0
    %v3021 = vadd.f32 0.0, %v3020
    %v3022 = vpop.f32.mrf.mxu0
    %3023 = vdwg.mxu0
    %v3024 = vadd.f32 %v2597, %v2940
    %v3025 = vadd.f32 %v2678, %v3021
    %v3026 = vmul.f32 %v1873, %v194
    %v3027 = vmul.f32 %v1878, %v194
    %v3029 = vsel %vm82, %v3026, 0
    %3031 = vmatprep.subr.mxu0 0.0
    %3032 = vmatpush1.xpose.msra.mxu0 0.0
    %3033 = vmatprep.subr.mxu0 0.0
    %3034 = vmatpush1.xpose.msra.mxu0 0.0
    %3035 = vmatprep.subr.mxu0 0.0
    %3036 = vmatpush1.xpose.msra.mxu0 0.0
    %3037 = vmatprep.subr.mxu0 0.0
    %3038 = vmatpush1.xpose.msra.mxu0 0.0
    %3039 = vmatprep.subr.mxu0 0.0
    %3040 = vmatpush1.xpose.msra.mxu0 0.0
    %3041 = vmatprep.subr.mxu0 0.0
    %3042 = vmatpush1.xpose.msra.mxu0 0.0
    %3043 = vmatprep.subr.mxu0 0.0
    %3044 = vmatpush1.xpose.msra.mxu0 0.0
    %3045 = vmatprep.subr.mxu0 0.0
    %3046 = vmatpush1.xpose.msra.mxu0 0.0
    %3047 = vmatprep.subr.mxu0 0.0
    %3048 = vmatpush1.xpose.msra.mxu0 0.0
    %3049 = vmatprep.subr.mxu0 0.0
    %3050 = vmatpush1.xpose.msra.mxu0 0.0
    %3051 = vmatprep.subr.mxu0 0.0
    %3052 = vmatpush1.xpose.msra.mxu0 0.0
    %3053 = vmatprep.subr.mxu0 0.0
    %3054 = vmatpush1.xpose.msra.mxu0 0.0
    %3055 = vmatprep.subr.mxu0 0.0
    %3056 = vmatpush1.xpose.msra.mxu0 0.0
    %3057 = vmatprep.subr.mxu0 0.0
    %3058 = vmatpush1.xpose.msra.mxu0 0.0
    %3059 = vmatprep.subr.mxu0 0.0
    %3060 = vmatpush1.xpose.msra.mxu0 %v1991
    %3061 = vmatprep.subr.mxu0 0.0
    %3062 = vmatpush1.xpose.msra.mxu0 %v1988
    %3063 = vmatprep.subr.mxu0 0.0
    %3064 = vmatpush2.xpose.msra.mxu0 0.0
    %3065 = vmatprep.subr.mxu0 0.0
    %3066 = vmatpush2.xpose.msra.mxu0 0.0
    %3067 = vmatprep.subr.mxu0 0.0
    %3068 = vmatpush2.xpose.msra.mxu0 0.0
    %3069 = vmatprep.subr.mxu0 0.0
    %3070 = vmatpush2.xpose.msra.mxu0 0.0
    %3071 = vmatprep.subr.mxu0 0.0
    %3072 = vmatpush2.xpose.msra.mxu0 0.0
    %3073 = vmatprep.subr.mxu0 0.0
    %3074 = vmatpush2.xpose.msra.mxu0 0.0
    %3075 = vmatprep.subr.mxu0 0.0
    %3076 = vmatpush2.xpose.msra.mxu0 0.0
    %3077 = vmatprep.subr.mxu0 0.0
    %3078 = vmatpush2.xpose.msra.mxu0 0.0
    %3079 = vmatprep.subr.mxu0 0.0
    %3080 = vmatpush2.xpose.msra.mxu0 0.0
    %3081 = vmatprep.subr.mxu0 0.0
    %3082 = vmatpush2.xpose.msra.mxu0 0.0
    %3083 = vmatprep.subr.mxu0 0.0
    %3084 = vmatpush2.xpose.msra.mxu0 0.0
    %3085 = vmatprep.subr.mxu0 0.0
    %3086 = vmatpush2.xpose.msra.mxu0 0.0
    %3087 = vmatprep.subr.mxu0 0.0
    %3088 = vmatpush2.xpose.msra.mxu0 0.0
    %3089 = vmatprep.subr.mxu0 0.0
    %3090 = vmatpush2.xpose.msra.mxu0 0.0
    %3091 = vmatprep.subr.mxu0 0.0
    %3092 = vmatpush2.xpose.msra.mxu0 0.0
    %3093 = vmatprep.subr.mxu0 0.0
    %3094 = vmatpush2.xpose.msra.mxu0 0.0
    %3095 = vmatprep.mubr.f32.mxu0 0.0
    %3096 = vmatmul.mubr.f32.gmra.mxu0 %v3029
    %v3097 = vpop.f32.mrf.mxu0
    %v3098 = vadd.f32 0.0, %v3097
    %v3099 = vpop.f32.mrf.mxu0
    %3100 = vdwg.mxu0
    %v3102 = vsel %vm82, %v3027, 0
    %3104 = vmatprep.subr.mxu0 0.0
    %3105 = vmatpush1.xpose.msra.mxu0 0.0
    %3106 = vmatprep.subr.mxu0 0.0
    %3107 = vmatpush1.xpose.msra.mxu0 0.0
    %3108 = vmatprep.subr.mxu0 0.0
    %3109 = vmatpush1.xpose.msra.mxu0 0.0
    %3110 = vmatprep.subr.mxu0 0.0
    %3111 = vmatpush1.xpose.msra.mxu0 0.0
    %3112 = vmatprep.subr.mxu0 0.0
    %3113 = vmatpush1.xpose.msra.mxu0 0.0
    %3114 = vmatprep.subr.mxu0 0.0
    %3115 = vmatpush1.xpose.msra.mxu0 0.0
    %3116 = vmatprep.subr.mxu0 0.0
    %3117 = vmatpush1.xpose.msra.mxu0 0.0
    %3118 = vmatprep.subr.mxu0 0.0
    %3119 = vmatpush1.xpose.msra.mxu0 0.0
    %3120 = vmatprep.subr.mxu0 0.0
    %3121 = vmatpush1.xpose.msra.mxu0 0.0
    %3122 = vmatprep.subr.mxu0 0.0
    %3123 = vmatpush1.xpose.msra.mxu0 0.0
    %3124 = vmatprep.subr.mxu0 0.0
    %3125 = vmatpush1.xpose.msra.mxu0 0.0
    %3126 = vmatprep.subr.mxu0 0.0
    %3127 = vmatpush1.xpose.msra.mxu0 0.0
    %3128 = vmatprep.subr.mxu0 0.0
    %3129 = vmatpush1.xpose.msra.mxu0 0.0
    %3130 = vmatprep.subr.mxu0 0.0
    %3131 = vmatpush1.xpose.msra.mxu0 0.0
    %3132 = vmatprep.subr.mxu0 0.0
    %3133 = vmatpush1.xpose.msra.mxu0 %v2070
    %3134 = vmatprep.subr.mxu0 0.0
    %3135 = vmatpush1.xpose.msra.mxu0 %v2067
    %3136 = vmatprep.subr.mxu0 0.0
    %3137 = vmatpush2.xpose.msra.mxu0 0.0
    %3138 = vmatprep.subr.mxu0 0.0
    %3139 = vmatpush2.xpose.msra.mxu0 0.0
    %3140 = vmatprep.subr.mxu0 0.0
    %3141 = vmatpush2.xpose.msra.mxu0 0.0
    %3142 = vmatprep.subr.mxu0 0.0
    %3143 = vmatpush2.xpose.msra.mxu0 0.0
    %3144 = vmatprep.subr.mxu0 0.0
    %3145 = vmatpush2.xpose.msra.mxu0 0.0
    %3146 = vmatprep.subr.mxu0 0.0
    %3147 = vmatpush2.xpose.msra.mxu0 0.0
    %3148 = vmatprep.subr.mxu0 0.0
    %3149 = vmatpush2.xpose.msra.mxu0 0.0
    %3150 = vmatprep.subr.mxu0 0.0
    %3151 = vmatpush2.xpose.msra.mxu0 0.0
    %3152 = vmatprep.subr.mxu0 0.0
    %3153 = vmatpush2.xpose.msra.mxu0 0.0
    %3154 = vmatprep.subr.mxu0 0.0
    %3155 = vmatpush2.xpose.msra.mxu0 0.0
    %3156 = vmatprep.subr.mxu0 0.0
    %3157 = vmatpush2.xpose.msra.mxu0 0.0
    %3158 = vmatprep.subr.mxu0 0.0
    %3159 = vmatpush2.xpose.msra.mxu0 0.0
    %3160 = vmatprep.subr.mxu0 0.0
    %3161 = vmatpush2.xpose.msra.mxu0 0.0
    %3162 = vmatprep.subr.mxu0 0.0
    %3163 = vmatpush2.xpose.msra.mxu0 0.0
    %3164 = vmatprep.subr.mxu0 0.0
    %3165 = vmatpush2.xpose.msra.mxu0 0.0
    %3166 = vmatprep.subr.mxu0 0.0
    %3167 = vmatpush2.xpose.msra.mxu0 0.0
    %3168 = vmatprep.mubr.f32.mxu0 0.0
    %3169 = vmatmul.mubr.f32.gmra.mxu0 %v3102
    %v3170 = vpop.f32.mrf.mxu0
    %v3171 = vadd.f32 0.0, %v3170
    %v3172 = vpop.f32.mrf.mxu0
    %3173 = vdwg.mxu0
    %v3174 = vmul.f32 %v3098, 0.17677669
    %v3175 = vmul.f32 %v3171, 0.17677669
    %v3176 = vadd.f32 %v3174, %v196
    %v3177 = vadd.f32 %v3175, %v196
    %v3178 = vsel %vm2146, %v3176, -inf
    %3179 = vmax.xlane.f32.xlu0 %v3178
    %v3180 = vpop.xlane.xlu0 %3179
    %v3181 = vsel %vm2146, %v3177, -inf
    %3182 = vmax.xlane.f32.xlu0 %v3181
    %v3183 = vpop.xlane.xlu0 %3182
    %v3184 = vsub.f32 %v3176, %v3180
    %v3185 = vsub.f32 %v3177, %v3183
    %v3186 = vmul.f32 %v3184, 1.442695
    %v3187 = vpow.pop %v3186
    %v3188 = vmul.f32 %v3185, 1.442695
    %v3189 = vpow.pop %v3188
    %v3190 = vsel %vm2146, %v3187, 0.0
    %3191 = vadd.xlane.f32.xlu0 %v3190
    %v3192 = vpop.xlane.xlu0 %3191
    %v3193 = vsel %vm2146, %v3189, 0.0
    %3194 = vadd.xlane.f32.xlu0 %v3193
    %v3195 = vpop.xlane.xlu0 %3194
    %v3196 = vrcp.pop %v3192
    %v3197 = vrcp.pop %v3195
    %v3198 = vmul.f32 %v3187, %v3196
    %v3199 = vmul.f32 %v3189, %v3197
    %3200 = vrot.lane.b32.xlu0 %v194, 32
    %v3201 = vpop.permute.xlu0 %3200
    %v3203 = vmul.f32 %v1964, %v3201
    %v3204 = vmul.f32 %v1969, %v3201
    %v3205 = vmul.f32 %v1974, %v3201
    %v3206 = vmul.f32 %v1979, %v3201
    %3209 = vrot.lane.b32.xlu0 %v3203, 96
    %v3210 = vpop.permute.xlu0 %3209
    %3211 = vrot.lane.b32.xlu0 %v3204, 96
    %v3212 = vpop.permute.xlu0 %3211
    %v3216 = vsel %vm2146, %v3198, 0
    %3218 = vmatprep.subr.mxu0 0.0
    %3219 = vmatpush1.msra.mxu0 0.0
    %3220 = vmatprep.subr.mxu0 0.0
    %3221 = vmatpush1.msra.mxu0 0.0
    %3222 = vmatprep.subr.mxu0 0.0
    %3223 = vmatpush1.msra.mxu0 0.0
    %3224 = vmatprep.subr.mxu0 0.0
    %3225 = vmatpush1.msra.mxu0 0.0
    %3226 = vmatprep.subr.mxu0 0.0
    %3227 = vmatpush1.msra.mxu0 0.0
    %3228 = vmatprep.subr.mxu0 0.0
    %3229 = vmatpush1.msra.mxu0 0.0
    %3230 = vmatprep.subr.mxu0 0.0
    %3231 = vmatpush1.msra.mxu0 0.0
    %3232 = vmatprep.subr.mxu0 0.0
    %3233 = vmatpush1.msra.mxu0 0.0
    %3234 = vmatprep.subr.mxu0 0.0
    %3235 = vmatpush1.msra.mxu0 0.0
    %3236 = vmatprep.subr.mxu0 0.0
    %3237 = vmatpush1.msra.mxu0 0.0
    %3238 = vmatprep.subr.mxu0 0.0
    %3239 = vmatpush1.msra.mxu0 0.0
    %3240 = vmatprep.subr.mxu0 0.0
    %3241 = vmatpush1.msra.mxu0 0.0
    %3242 = vmatprep.subr.mxu0 0.0
    %3243 = vmatpush1.msra.mxu0 0.0
    %3244 = vmatprep.subr.mxu0 0.0
    %3245 = vmatpush1.msra.mxu0 0.0
    %3246 = vmatprep.subr.mxu0 0.0
    %3247 = vmatpush1.msra.mxu0 %v3212
    %3248 = vmatprep.subr.mxu0 0.0
    %3249 = vmatpush1.msra.mxu0 %v3210
    %3250 = vmatprep.subr.mxu0 0.0
    %3251 = vmatpush2.msra.mxu0 0.0
    %3252 = vmatprep.subr.mxu0 0.0
    %3253 = vmatpush2.msra.mxu0 0.0
    %3254 = vmatprep.subr.mxu0 0.0
    %3255 = vmatpush2.msra.mxu0 0.0
    %3256 = vmatprep.subr.mxu0 0.0
    %3257 = vmatpush2.msra.mxu0 0.0
    %3258 = vmatprep.subr.mxu0 0.0
    %3259 = vmatpush2.msra.mxu0 0.0
    %3260 = vmatprep.subr.mxu0 0.0
    %3261 = vmatpush2.msra.mxu0 0.0
    %3262 = vmatprep.subr.mxu0 0.0
    %3263 = vmatpush2.msra.mxu0 0.0
    %3264 = vmatprep.subr.mxu0 0.0
    %3265 = vmatpush2.msra.mxu0 0.0
    %3266 = vmatprep.subr.mxu0 0.0
    %3267 = vmatpush2.msra.mxu0 0.0
    %3268 = vmatprep.subr.mxu0 0.0
    %3269 = vmatpush2.msra.mxu0 0.0
    %3270 = vmatprep.subr.mxu0 0.0
    %3271 = vmatpush2.msra.mxu0 0.0
    %3272 = vmatprep.subr.mxu0 0.0
    %3273 = vmatpush2.msra.mxu0 0.0
    %3274 = vmatprep.subr.mxu0 0.0
    %3275 = vmatpush2.msra.mxu0 0.0
    %3276 = vmatprep.subr.mxu0 0.0
    %3277 = vmatpush2.msra.mxu0 0.0
    %3278 = vmatprep.subr.mxu0 0.0
    %3279 = vmatpush2.msra.mxu0 0.0
    %3280 = vmatprep.subr.mxu0 0.0
    %3281 = vmatpush2.msra.mxu0 0.0
    %3282 = vmatprep.mubr.f32.mxu0 0.0
    %3283 = vmatmul.mubr.f32.gmra.mxu0 %v3216
    %v3284 = vpop.f32.mrf.mxu0
    %v3285 = vadd.f32 0.0, %v3284
    %v3286 = vpop.f32.mrf.mxu0
    %3287 = vdwg.mxu0
    %3290 = vrot.lane.b32.xlu0 %v3205, 96
    %v3291 = vpop.permute.xlu0 %3290
    %3292 = vrot.lane.b32.xlu0 %v3206, 96
    %v3293 = vpop.permute.xlu0 %3292
    %v3297 = vsel %vm2146, %v3199, 0
    %3299 = vmatprep.subr.mxu0 0.0
    %3300 = vmatpush1.msra.mxu0 0.0
    %3301 = vmatprep.subr.mxu0 0.0
    %3302 = vmatpush1.msra.mxu0 0.0
    %3303 = vmatprep.subr.mxu0 0.0
    %3304 = vmatpush1.msra.mxu0 0.0
    %3305 = vmatprep.subr.mxu0 0.0
    %3306 = vmatpush1.msra.mxu0 0.0
    %3307 = vmatprep.subr.mxu0 0.0
    %3308 = vmatpush1.msra.mxu0 0.0
    %3309 = vmatprep.subr.mxu0 0.0
    %3310 = vmatpush1.msra.mxu0 0.0
    %3311 = vmatprep.subr.mxu0 0.0
    %3312 = vmatpush1.msra.mxu0 0.0
    %3313 = vmatprep.subr.mxu0 0.0
    %3314 = vmatpush1.msra.mxu0 0.0
    %3315 = vmatprep.subr.mxu0 0.0
    %3316 = vmatpush1.msra.mxu0 0.0
    %3317 = vmatprep.subr.mxu0 0.0
    %3318 = vmatpush1.msra.mxu0 0.0
    %3319 = vmatprep.subr.mxu0 0.0
    %3320 = vmatpush1.msra.mxu0 0.0
    %3321 = vmatprep.subr.mxu0 0.0
    %3322 = vmatpush1.msra.mxu0 0.0
    %3323 = vmatprep.subr.mxu0 0.0
    %3324 = vmatpush1.msra.mxu0 0.0
    %3325 = vmatprep.subr.mxu0 0.0
    %3326 = vmatpush1.msra.mxu0 0.0
    %3327 = vmatprep.subr.mxu0 0.0
    %3328 = vmatpush1.msra.mxu0 %v3293
    %3329 = vmatprep.subr.mxu0 0.0
    %3330 = vmatpush1.msra.mxu0 %v3291
    %3331 = vmatprep.subr.mxu0 0.0
    %3332 = vmatpush2.msra.mxu0 0.0
    %3333 = vmatprep.subr.mxu0 0.0
    %3334 = vmatpush2.msra.mxu0 0.0
    %3335 = vmatprep.subr.mxu0 0.0
    %3336 = vmatpush2.msra.mxu0 0.0
    %3337 = vmatprep.subr.mxu0 0.0
    %3338 = vmatpush2.msra.mxu0 0.0
    %3339 = vmatprep.subr.mxu0 0.0
    %3340 = vmatpush2.msra.mxu0 0.0
    %3341 = vmatprep.subr.mxu0 0.0
    %3342 = vmatpush2.msra.mxu0 0.0
    %3343 = vmatprep.subr.mxu0 0.0
    %3344 = vmatpush2.msra.mxu0 0.0
    %3345 = vmatprep.subr.mxu0 0.0
    %3346 = vmatpush2.msra.mxu0 0.0
    %3347 = vmatprep.subr.mxu0 0.0
    %3348 = vmatpush2.msra.mxu0 0.0
    %3349 = vmatprep.subr.mxu0 0.0
    %3350 = vmatpush2.msra.mxu0 0.0
    %3351 = vmatprep.subr.mxu0 0.0
    %3352 = vmatpush2.msra.mxu0 0.0
    %3353 = vmatprep.subr.mxu0 0.0
    %3354 = vmatpush2.msra.mxu0 0.0
    %3355 = vmatprep.subr.mxu0 0.0
    %3356 = vmatpush2.msra.mxu0 0.0
    %3357 = vmatprep.subr.mxu0 0.0
    %3358 = vmatpush2.msra.mxu0 0.0
    %3359 = vmatprep.subr.mxu0 0.0
    %3360 = vmatpush2.msra.mxu0 0.0
    %3361 = vmatprep.subr.mxu0 0.0
    %3362 = vmatpush2.msra.mxu0 0.0
    %3363 = vmatprep.mubr.f32.mxu0 0.0
    %3364 = vmatmul.mubr.f32.gmra.mxu0 %v3297
    %v3365 = vpop.f32.mrf.mxu0
    %v3366 = vadd.f32 0.0, %v3365
    %v3367 = vpop.f32.mrf.mxu0
    %3368 = vdwg.mxu0
    %v3369 = vadd.f32 %v3024, %v3285
    %v3370 = vadd.f32 %v3025, %v3366
    %v3371 = vlaneseq
    %v3372 = vshrl.u32 %v3371, 7
    %v3373 = vsub.s32 0, %v3372
    %v3374 = vrot.slane %v233, %v3373
    %v3376 = vsel %vm82, %v3369, 0
    %v3379 = vsel %vm82, %v3370, 0
    %3381 = vmatprep.subr.mxu0 0.0
    %3382 = vmatpush1.msra.mxu0 0.0
    %3383 = vmatprep.subr.mxu0 0.0
    %3384 = vmatpush1.msra.mxu0 0.0
    %3385 = vmatprep.subr.mxu0 0.0
    %3386 = vmatpush1.msra.mxu0 0.0
    %3387 = vmatprep.subr.mxu0 0.0
    %3388 = vmatpush1.msra.mxu0 0.0
    %3389 = vmatprep.subr.mxu0 0.0
    %3390 = vmatpush1.msra.mxu0 0.0
    %3391 = vmatprep.subr.mxu0 0.0
    %3392 = vmatpush1.msra.mxu0 0.0
    %3393 = vmatprep.subr.mxu0 0.0
    %3394 = vmatpush1.msra.mxu0 0.0
    %3395 = vmatprep.subr.mxu0 0.0
    %3396 = vmatpush1.msra.mxu0 0.0
    %3397 = vmatprep.subr.mxu0 0.0
    %3398 = vmatpush1.msra.mxu0 0.0
    %3399 = vmatprep.subr.mxu0 0.0
    %3400 = vmatpush1.msra.mxu0 0.0
    %3401 = vmatprep.subr.mxu0 0.0
    %3402 = vmatpush1.msra.mxu0 0.0
    %3403 = vmatprep.subr.mxu0 0.0
    %3404 = vmatpush1.msra.mxu0 0.0
    %3405 = vmatprep.subr.mxu0 0.0
    %3406 = vmatpush1.msra.mxu0 %v216
    %3407 = vmatprep.subr.mxu0 0.0
    %3408 = vmatpush1.msra.mxu0 %v215
    %3409 = vmatprep.subr.mxu0 0.0
    %3410 = vmatpush1.msra.mxu0 %v214
    %3411 = vmatprep.subr.mxu0 0.0
    %3412 = vmatpush1.msra.mxu0 %v213
    %3413 = vmatprep.subr.mxu0 0.0
    %3414 = vmatpush2.msra.mxu0 0.0
    %3415 = vmatprep.subr.mxu0 0.0
    %3416 = vmatpush2.msra.mxu0 0.0
    %3417 = vmatprep.subr.mxu0 0.0
    %3418 = vmatpush2.msra.mxu0 0.0
    %3419 = vmatprep.subr.mxu0 0.0
    %3420 = vmatpush2.msra.mxu0 0.0
    %3421 = vmatprep.subr.mxu0 0.0
    %3422 = vmatpush2.msra.mxu0 0.0
    %3423 = vmatprep.subr.mxu0 0.0
    %3424 = vmatpush2.msra.mxu0 0.0
    %3425 = vmatprep.subr.mxu0 0.0
    %3426 = vmatpush2.msra.mxu0 0.0
    %3427 = vmatprep.subr.mxu0 0.0
    %3428 = vmatpush2.msra.mxu0 0.0
    %3429 = vmatprep.subr.mxu0 0.0
    %3430 = vmatpush2.msra.mxu0 0.0
    %3431 = vmatprep.subr.mxu0 0.0
    %3432 = vmatpush2.msra.mxu0 0.0
    %3433 = vmatprep.subr.mxu0 0.0
    %3434 = vmatpush2.msra.mxu0 0.0
    %3435 = vmatprep.subr.mxu0 0.0
    %3436 = vmatpush2.msra.mxu0 0.0
    %3437 = vmatprep.subr.mxu0 0.0
    %3438 = vmatpush2.msra.mxu0 0.0
    %3439 = vmatprep.subr.mxu0 0.0
    %3440 = vmatpush2.msra.mxu0 0.0
    %3441 = vmatprep.subr.mxu0 0.0
    %3442 = vmatpush2.msra.mxu0 0.0
    %3443 = vmatprep.subr.mxu0 0.0
    %3444 = vmatpush2.msra.mxu0 0.0
    %3445 = vmatprep.mubr.f32.mxu0 0.0
    %3446 = vmatmul.mubr.f32.gmra.mxu0 %v3376
    %v3447 = vpop.f32.mrf.mxu0
    %v3448 = vadd.f32 %v3374, %v3447
    %v3449 = vpop.f32.mrf.mxu0
    %3450 = vmatprep.mubr.f32.mxu0 0.0
    %3451 = vmatmul.mubr.f32.gmra.mxu0 %v3379
    %v3452 = vpop.f32.mrf.mxu0
    %v3453 = vadd.f32 %v3374, %v3452
    %v3454 = vpop.f32.mrf.mxu0
    %3455 = vdwg.mxu0
    %v3456 = vadd.f32 %v1794, %v3448
    %v3457 = vadd.f32 %v1795, %v3453
    %v3458 = vsel %vm82, %v3456, 0.0
    %3459 = vadd.xlane.f32.xlu0 %v3458
    %v3460 = vpop.xlane.xlu0 %3459
    %v3461 = vsel %vm82, %v3457, 0.0
    %3462 = vadd.xlane.f32.xlu0 %v3461
    %v3463 = vpop.xlane.xlu0 %3462
    %v3464 = vmul.f32 %v3460, %v1763
    %v3465 = vmul.f32 %v3463, %v1763
    %v3466 = vsub.f32 %v3456, %v3464
    %v3467 = vsub.f32 %v3457, %v3465
    %v3468 = vmul.f32 %v3466, %v3466
    %v3469 = vmul.f32 %v3467, %v3467
    %v3470 = vsel %vm82, %v3468, 0.0
    %3471 = vadd.xlane.f32.xlu0 %v3470
    %v3472 = vpop.xlane.xlu0 %3471
    %v3473 = vsel %vm82, %v3469, 0.0
    %3474 = vadd.xlane.f32.xlu0 %v3473
    %v3475 = vpop.xlane.xlu0 %3474
    %v3476 = vmul.f32 %v3472, %v1763
    %v3477 = vmul.f32 %v3475, %v1763
    %v3478 = vadd.f32 %v3476, 1e-05
    %v3479 = vadd.f32 %v3477, 1e-05
    %v3480 = vrsqrt.pop %v3478
    %v3481 = vrsqrt.pop %v3479
    %v3482 = vmul.f32 %v3466, %v3480
    %v3483 = vmul.f32 %v3467, %v3481
    %v3484 = vlaneseq
    %v3485 = vshrl.u32 %v3484, 7
    %v3486 = vsub.s32 0, %v3485
    %v3487 = vrot.slane %v238, %v3486
    %v3488 = vmul.f32 %v3482, %v3487
    %v3489 = vmul.f32 %v3483, %v3487
    %v3490 = vlaneseq
    %v3491 = vshrl.u32 %v3490, 7
    %v3492 = vsub.s32 0, %v3491
    %v3493 = vrot.slane %v239, %v3492
    %v3494 = vadd.f32 %v3488, %v3493
    %v3495 = vadd.f32 %v3489, %v3493
    %v3496 = vlaneseq
    %v3497 = vshrl.u32 %v3496, 7
    %v3498 = vsub.s32 0, %v3497
    %v3499 = vrot.slane %v234, %v3498
    %v3501 = vsel %vm82, %v3494, 0
    %v3504 = vsel %vm82, %v3495, 0
    %3506 = vmatprep.subr.mxu0 0.0
    %3507 = vmatpush1.msra.mxu0 0.0
    %3508 = vmatprep.subr.mxu0 0.0
    %3509 = vmatpush1.msra.mxu0 0.0
    %3510 = vmatprep.subr.mxu0 0.0
    %3511 = vmatpush1.msra.mxu0 0.0
    %3512 = vmatprep.subr.mxu0 0.0
    %3513 = vmatpush1.msra.mxu0 0.0
    %3514 = vmatprep.subr.mxu0 0.0
    %3515 = vmatpush1.msra.mxu0 0.0
    %3516 = vmatprep.subr.mxu0 0.0
    %3517 = vmatpush1.msra.mxu0 0.0
    %3518 = vmatprep.subr.mxu0 0.0
    %3519 = vmatpush1.msra.mxu0 0.0
    %3520 = vmatprep.subr.mxu0 0.0
    %3521 = vmatpush1.msra.mxu0 0.0
    %3522 = vmatprep.subr.mxu0 0.0
    %3523 = vmatpush1.msra.mxu0 0.0
    %3524 = vmatprep.subr.mxu0 0.0
    %3525 = vmatpush1.msra.mxu0 0.0
    %3526 = vmatprep.subr.mxu0 0.0
    %3527 = vmatpush1.msra.mxu0 0.0
    %3528 = vmatprep.subr.mxu0 0.0
    %3529 = vmatpush1.msra.mxu0 0.0
    %3530 = vmatprep.subr.mxu0 0.0
    %3531 = vmatpush1.msra.mxu0 %v220
    %3532 = vmatprep.subr.mxu0 0.0
    %3533 = vmatpush1.msra.mxu0 %v219
    %3534 = vmatprep.subr.mxu0 0.0
    %3535 = vmatpush1.msra.mxu0 %v218
    %3536 = vmatprep.subr.mxu0 0.0
    %3537 = vmatpush1.msra.mxu0 %v217
    %3538 = vmatprep.subr.mxu0 0.0
    %3539 = vmatpush2.msra.mxu0 0.0
    %3540 = vmatprep.subr.mxu0 0.0
    %3541 = vmatpush2.msra.mxu0 0.0
    %3542 = vmatprep.subr.mxu0 0.0
    %3543 = vmatpush2.msra.mxu0 0.0
    %3544 = vmatprep.subr.mxu0 0.0
    %3545 = vmatpush2.msra.mxu0 0.0
    %3546 = vmatprep.subr.mxu0 0.0
    %3547 = vmatpush2.msra.mxu0 0.0
    %3548 = vmatprep.subr.mxu0 0.0
    %3549 = vmatpush2.msra.mxu0 0.0
    %3550 = vmatprep.subr.mxu0 0.0
    %3551 = vmatpush2.msra.mxu0 0.0
    %3552 = vmatprep.subr.mxu0 0.0
    %3553 = vmatpush2.msra.mxu0 0.0
    %3554 = vmatprep.subr.mxu0 0.0
    %3555 = vmatpush2.msra.mxu0 0.0
    %3556 = vmatprep.subr.mxu0 0.0
    %3557 = vmatpush2.msra.mxu0 0.0
    %3558 = vmatprep.subr.mxu0 0.0
    %3559 = vmatpush2.msra.mxu0 0.0
    %3560 = vmatprep.subr.mxu0 0.0
    %3561 = vmatpush2.msra.mxu0 0.0
    %3562 = vmatprep.subr.mxu0 0.0
    %3563 = vmatpush2.msra.mxu0 0.0
    %3564 = vmatprep.subr.mxu0 0.0
    %3565 = vmatpush2.msra.mxu0 0.0
    %3566 = vmatprep.subr.mxu0 0.0
    %3567 = vmatpush2.msra.mxu0 0.0
    %3568 = vmatprep.subr.mxu0 0.0
    %3569 = vmatpush2.msra.mxu0 0.0
    %3570 = vmatprep.mubr.f32.mxu0 0.0
    %3571 = vmatmul.mubr.f32.gmra.mxu0 %v3501
    %v3572 = vpop.f32.mrf.mxu0
    %v3573 = vadd.f32 %v3499, %v3572
    %v3574 = vpop.f32.mrf.mxu0
    %3575 = vmatprep.mubr.f32.mxu0 0.0
    %3576 = vmatmul.mubr.f32.gmra.mxu0 %v3504
    %v3577 = vpop.f32.mrf.mxu0
    %v3578 = vadd.f32 %v3499, %v3577
    %v3579 = vpop.f32.mrf.mxu0
    %3580 = vdwg.mxu0
    %v3581 = vmax.f32 %v3573, 0.0
    %v3582 = vmax.f32 %v3578, 0.0
    %v3583 = vlaneseq
    %v3584 = vshrl.u32 %v3583, 7
    %v3585 = vsub.s32 0, %v3584
    %v3586 = vrot.slane %v235, %v3585
    %vm3587 = vcmask 523264
    %v3589 = vsel %vm3587, %v3581, 0
    %v3592 = vsel %vm3587, %v3582, 0
    %3594 = vmatprep.subr.mxu0 0.0
    %3595 = vmatpush1.msra.mxu0 0.0
    %3596 = vmatprep.subr.mxu0 0.0
    %3597 = vmatpush1.msra.mxu0 0.0
    %3598 = vmatprep.subr.mxu0 0.0
    %3599 = vmatpush1.msra.mxu0 0.0
    %3600 = vmatprep.subr.mxu0 0.0
    %3601 = vmatpush1.msra.mxu0 0.0
    %3602 = vmatprep.subr.mxu0 0.0
    %3603 = vmatpush1.msra.mxu0 0.0
    %3604 = vmatprep.subr.mxu0 0.0
    %3605 = vmatpush1.msra.mxu0 0.0
    %3606 = vmatprep.subr.mxu0 0.0
    %3607 = vmatpush1.msra.mxu0 0.0
    %3608 = vmatprep.subr.mxu0 0.0
    %3609 = vmatpush1.msra.mxu0 0.0
    %3610 = vmatprep.subr.mxu0 0.0
    %3611 = vmatpush1.msra.mxu0 %v228
    %3612 = vmatprep.subr.mxu0 0.0
    %3613 = vmatpush1.msra.mxu0 %v227
    %3614 = vmatprep.subr.mxu0 0.0
    %3615 = vmatpush1.msra.mxu0 %v226
    %3616 = vmatprep.subr.mxu0 0.0
    %3617 = vmatpush1.msra.mxu0 %v225
    %3618 = vmatprep.subr.mxu0 0.0
    %3619 = vmatpush1.msra.mxu0 %v224
    %3620 = vmatprep.subr.mxu0 0.0
    %3621 = vmatpush1.msra.mxu0 %v223
    %3622 = vmatprep.subr.mxu0 0.0
    %3623 = vmatpush1.msra.mxu0 %v222
    %3624 = vmatprep.subr.mxu0 0.0
    %3625 = vmatpush1.msra.mxu0 %v221
    %3626 = vmatprep.subr.mxu0 0.0
    %3627 = vmatpush2.msra.mxu0 0.0
    %3628 = vmatprep.subr.mxu0 0.0
    %3629 = vmatpush2.msra.mxu0 0.0
    %3630 = vmatprep.subr.mxu0 0.0
    %3631 = vmatpush2.msra.mxu0 0.0
    %3632 = vmatprep.subr.mxu0 0.0
    %3633 = vmatpush2.msra.mxu0 0.0
    %3634 = vmatprep.subr.mxu0 0.0
    %3635 = vmatpush2.msra.mxu0 0.0
    %3636 = vmatprep.subr.mxu0 0.0
    %3637 = vmatpush2.msra.mxu0 0.0
    %3638 = vmatprep.subr.mxu0 0.0
    %3639 = vmatpush2.msra.mxu0 0.0
    %3640 = vmatprep.subr.mxu0 0.0
    %3641 = vmatpush2.msra.mxu0 0.0
    %3642 = vmatprep.subr.mxu0 0.0
    %3643 = vmatpush2.msra.mxu0 0.0
    %3644 = vmatprep.subr.mxu0 0.0
    %3645 = vmatpush2.msra.mxu0 0.0
    %3646 = vmatprep.subr.mxu0 0.0
    %3647 = vmatpush2.msra.mxu0 0.0
    %3648 = vmatprep.subr.mxu0 0.0
    %3649 = vmatpush2.msra.mxu0 0.0
    %3650 = vmatprep.subr.mxu0 0.0
    %3651 = vmatpush2.msra.mxu0 0.0
    %3652 = vmatprep.subr.mxu0 0.0
    %3653 = vmatpush2.msra.mxu0 0.0
    %3654 = vmatprep.subr.mxu0 0.0
    %3655 = vmatpush2.msra.mxu0 0.0
    %3656 = vmatprep.subr.mxu0 0.0
    %3657 = vmatpush2.msra.mxu0 0.0
    %3658 = vmatprep.mubr.f32.mxu0 0.0
    %3659 = vmatmul.mubr.f32.gmra.mxu0 %v3589
    %v3660 = vpop.f32.mrf.mxu0
    %v3661 = vadd.f32 %v3586, %v3660
    %v3662 = vpop.f32.mrf.mxu0
    %3663 = vmatprep.mubr.f32.mxu0 0.0
    %3664 = vmatmul.mubr.f32.gmra.mxu0 %v3592
    %v3665 = vpop.f32.mrf.mxu0
    %v3666 = vadd.f32 %v3586, %v3665
    %v3667 = vpop.f32.mrf.mxu0
    %3668 = vdwg.mxu0
    %v3669 = vsel %vm82, %v3661, 0.0
    %3670 = vadd.xlane.f32.xlu0 %v3669
    %v3671 = vpop.xlane.xlu0 %3670
    %v3672 = vsel %vm82, %v3666, 0.0
    %3673 = vadd.xlane.f32.xlu0 %v3672
    %v3674 = vpop.xlane.xlu0 %3673
    %v3675 = vmul.f32 %v3671, %v1763
    %v3676 = vmul.f32 %v3674, %v1763
    %v3677 = vsub.f32 %v3661, %v3675
    %v3678 = vsub.f32 %v3666, %v3676
    %v3679 = vmul.f32 %v3677, %v3677
    %v3680 = vmul.f32 %v3678, %v3678
    %v3681 = vsel %vm82, %v3679, 0.0
    %3682 = vadd.xlane.f32.xlu0 %v3681
    %v3683 = vpop.xlane.xlu0 %3682
    %v3684 = vsel %vm82, %v3680, 0.0
    %3685 = vadd.xlane.f32.xlu0 %v3684
    %v3686 = vpop.xlane.xlu0 %3685
    %v3687 = vmul.f32 %v3683, %v1763
    %v3688 = vmul.f32 %v3686, %v1763
    %v3689 = vadd.f32 %v3687, 1e-05
    %v3690 = vadd.f32 %v3688, 1e-05
    %v3691 = vrsqrt.pop %v3689
    %v3692 = vrsqrt.pop %v3690
    %v3693 = vmul.f32 %v3677, %v3691
    %v3694 = vmul.f32 %v3678, %v3692
    %v3695 = vlaneseq
    %v3696 = vshrl.u32 %v3695, 7
    %v3697 = vsub.s32 0, %v3696
    %v3698 = vrot.slane %v240, %v3697
    %v3699 = vmul.f32 %v3693, %v3698
    %v3700 = vmul.f32 %v3694, %v3698
    %v3701 = vlaneseq
    %v3702 = vshrl.u32 %v3701, 7
    %v3703 = vsub.s32 0, %v3702
    %v3704 = vrot.slane %v241, %v3703
    %v3705 = vadd.f32 %v3699, %v3704
    %v3706 = vadd.f32 %v3700, %v3704
    %3707 = vst.msk [vmem:[#allocation8] sm:$0xff] %vm82, %v3705
    %3708 = vst.msk [vmem:[#allocation8 + $0x8] sm:$0xff] %vm82, %v3706
    // Predicated region
    $region34: #{tpu_custom_call.1} parent=1 // pred_check
      _
    $region35: #{tpu_custom_call.1} parent=1 // pred_check_branch
      %3710 = sbr.rel (0) target = $region37
    $region36: #{tpu_custom_call.1} parent=1 // pred_region
      %s3712 = ssub.s32 256, 256
      %3713 = vsyncadd [#allocation4], %s3712
      %s3714 = sshll.u32 [#allocation8], 4
      %s3715 = int_to_ptr.vmem [resolvable:$true] %s3714
      %3720 = dma.vmem_to_hbm [thread:$0]  %s3715, 256, %s5, [#allocation4], 128, 128, 8
    $region37: #{tpu_custom_call.1} parent=1 // pred_fallthru
      _
    // Predicated region
    $region38: #{tpu_custom_call.1} parent=1 // pred_check
      _
    $region39: #{tpu_custom_call.1} parent=1 // pred_check_branch
      %3722 = sbr.rel (0) target = $region41
    $region40: #{tpu_custom_call.1} parent=1 // pred_region
      %3723 = dma.done [#allocation4], 256
    $region41: #{tpu_custom_call.1} parent=1 // pred_fallthru
      _
    %3724 = vsyncpa [#allocation3], 1
    %3725 = vsyncpa [#allocation6], 1
    %3726 = vsyncpa [#allocation4], 1

</llo_original>
